<compile_context>
chip_gen: v7x
topology: tpu7x:2x2x1
jax: 0.10.0
libtpu: 0.0.40
codegen_flags: <defaults>
</compile_context>

<pallas_src>
import numpy as np
import jax
import jax.numpy as jnp
from jax.scipy.linalg import block_diag
from jax.experimental import pallas as pl
from jax.experimental.pallas import tpu as pltpu

EPS = 1e-5      # PyTorch BatchNorm3d default eps
ALIGN = 16      # sublane alignment that is tile-exact for both f32 (8) and bf16 (16)


def _round_up(x, m):
    return ((x + m - 1) // m) * m


# ----------------------- trace-time weight preparation -----------------------

def _fold_bn(bn):
    scale = bn["gamma"] / jnp.sqrt(bn["var"] + EPS)
    shift = bn["beta"] - bn["mean"] * scale
    return scale, shift


def _point_weight(w, bn, T, bias=None):
    """1x1x1 conv (+bias) + BN -> block-diagonal (T*Cin, T*Cout) matrix + lane shift."""
    Cout, Cin = w.shape[0], w.shape[1]
    scale, shift = _fold_bn(bn)
    Wb = jnp.kron(jnp.eye(T, dtype=jnp.float32), w.reshape(Cout, Cin).T)
    scale_l = jnp.tile(scale, T)
    shift_l = jnp.tile(shift, T)
    if bias is not None:
        shift_l = shift_l + jnp.tile(bias, T) * scale_l
    return Wb * scale_l[None, :], shift_l.reshape(1, -1)


def _temporal_weight(w, bn, T):
    """(1,1,3) conv, pad 1 along T, + BN -> banded (T*Cin, T*Cout) matrix + lane shift."""
    scale, shift = _fold_bn(bn)
    Cout, Cin = w.shape[0], w.shape[1]
    Wb = jnp.zeros((T * Cin, T * Cout), jnp.float32)
    for k in range(3):
        # input time t' contributes to output time t'+1-k with weight w[..., k]
        Wb = Wb + jnp.kron(jnp.eye(T, k=1 - k, dtype=jnp.float32), w[:, :, 0, 0, k].T)
    scale_l = jnp.tile(scale, T)
    shift_l = jnp.tile(shift, T)
    return Wb * scale_l[None, :], shift_l.reshape(1, -1)


def _spatial_taps(w, bn, T):
    """(3,3,1) conv + BN -> list of 9 per-tap (T*Cin, T*Cout) blocks + lane shift."""
    scale, shift = _fold_bn(bn)
    eyeT = jnp.eye(T, dtype=jnp.float32)
    scale_l = jnp.tile(scale, T)[None, :]
    taps = [jnp.kron(eyeT, w[:, :, kh, kw, 0].T) * scale_l
            for kh in range(3) for kw in range(3)]
    return taps, jnp.tile(shift, T).reshape(1, -1)


def _conv10_weight(w, bias, bn, T, mid):
    """Final 1x1x1 (with bias) + BN: 4 input-group blocks stacked -> (4*T*mid, T*Cout)."""
    scale, shift = _fold_bn(bn)
    eyeT = jnp.eye(T, dtype=jnp.float32)
    blocks = [jnp.kron(eyeT, w[:, i * mid:(i + 1) * mid, 0, 0, 0].T) for i in range(4)]
    Wall = jnp.concatenate(blocks, axis=0)
    scale_l = jnp.tile(scale, T)
    shift_l = jnp.tile(shift, T) + jnp.tile(bias, T) * scale_l
    return Wall * scale_l[None, :], shift_l.reshape(1, -1)


# --------------------------------- kernel ------------------------------------

def _make_kernel(H, W2a, T, cin, cone, cmid, lo):
    TCI = T * cin            # conv1 / residual / output lane width
    TCO = T * cone           # temporal-branch lane width
    TCM = T * cmid           # one spatial-branch lane width
    SPK = 4 * TCO            # packed [T1|T2|T3|T4] lane width (128 in the test)
    STC = 4 * TCM            # [ST1|ST2|ST3|ST4] lane width (== TCI)
    Hb = H * W2a             # aligned output band length (rows)
    taps = [(dh, dw) for dh in (-1, 0, 1) for dw in (-1, 0, 1)]

    def kernel(x_ref, mask_ref, w1_ref, wt_ref, wsp_ref, w10_ref, bias_ref,
               o_ref, tbuf):
        x = x_ref[0]                       # (R, TCI) f32, zero H/W halo
        m = mask_ref[...]                  # (R, TCO) f32: 1 interior, 0 halo/pad

        def mm(a, w, b):                   # bf16 MXU matmul + f32 folded-BN shift + relu
            y = jnp.dot(a.astype(jnp.bfloat16), w,
                        preferred_element_type=jnp.float32)
            return jnp.maximum(y + b, 0.0)

        # conv1 + bn1 + relu
        out1 = mm(x, w1_ref[...], bias_ref[0:1, :])                        # (R, TCI)

        # temporal chain T1..T4 ((1,1,3) convs); pack each into the bf16
        # [T1|T2|T3|T4] buffer with the spatial zero-halo mask applied.
        t = mm(out1, wt_ref[0:TCI, :], bias_ref[1:2, 0:TCO])
        tbuf[:, 0:TCO] = (t * m).astype(jnp.bfloat16)
        for i in range(1, 4):
            row0 = TCI + (i - 1) * TCO
            t = mm(t, wt_ref[row0:row0 + TCO, :], bias_ref[1 + i:2 + i, 0:TCO])
            tbuf[:, i * TCO:(i + 1) * TCO] = (t * m).astype(jnp.bfloat16)

        # spatial stage: 9 row-shifted taps; each tap weight is block-diagonal
        # over (conv6..conv9), so the result is already [ST1|ST2|ST3|ST4].
        acc = None
        for k, (dh, dw) in enumerate(taps):
            off = lo + dh * W2a + dw
            part = jnp.dot(tbuf[off:off + Hb, :],
                           wsp_ref[k * SPK:(k + 1) * SPK, :],
                           preferred_element_type=jnp.float32)
            acc = part if acc is None else acc + part
        st = jnp.maximum(acc + bias_ref[5:6, 0:STC], 0.0)                  # (Hb, STC)

        # conv10 (+bias, bn10) + relu, residual add, relu
        y = mm(st, w10_ref[...], bias_ref[6:7, :])                         # (Hb, TCI)
        o_ref[0] = jnp.maximum(y + x_ref[0, lo:lo + Hb, :], 0.0)

    return kernel


# ------------------------------ forward pass ----------------------------------

def bottleneck_forward(x_pt, p):
    """x_pt: (N, C, H, W, T), PyTorch layout. st_struc='A', stride 1, no downsample."""
    N, Cin, H, W, T = x_pt.shape
    one = p["w2"].shape[0]
    mid = p["w6"].shape[0]
    assert Cin == 4 * mid, "residual add requires inplane == 4*midplane"
    assert one == 2 * mid

    TCI, TCO, TCM = T * Cin, T * one, T * mid
    W2a = _round_up(W + 2, ALIGN)                      # aligned padded width
    lo = _round_up(W2a + 1, ALIGN)                     # first interior flat row, aligned
    LEAD = lo - W2a - 1                                # leading dummy flat rows
    Hb = H * W2a                                       # output band length
    R = _round_up(max(LEAD + (H + 2) * W2a, lo + Hb + W2a + 1), ALIGN)

    # channels-last, (t, c) flattened onto the lane axis, aligned zero halo.
    x = jnp.transpose(x_pt, (0, 2, 3, 4, 1)).astype(jnp.float32)       # (N,H,W,T,C)
    x = x.reshape(N, H, W, TCI)
    xp = jnp.pad(x, ((0, 0), (1, 1), (1, W2a - W - 1), (0, 0)))        # (N,H+2,W2a,TCI)
    xf = xp.reshape(N, (H + 2) * W2a, TCI)
    xf = jnp.pad(xf, ((0, 0), (LEAD, R - LEAD - (H + 2) * W2a), (0, 0)))   # (N,R,TCI)

    # interior mask (1 inside the original HxW image, 0 on halo / pad rows)
    hm = (jnp.arange(H + 2) >= 1) & (jnp.arange(H + 2) <= H)
    wm = (jnp.arange(W2a) >= 1) & (jnp.arange(W2a) <= W)
    m2 = (hm[:, None] & wm[None, :]).astype(jnp.float32).reshape(-1)
    m2 = jnp.pad(m2, (LEAD, R - LEAD - (H + 2) * W2a))
    mask = jnp.broadcast_to(m2[:, None], (R, TCO))

    # fold BN into weights (f32 math), then cast matmul operands to bf16.
    W1f, b1 = _point_weight(p["w1"], p["bn1"], T)
    wt_blocks, bt = [], []
    for nw, nb in (("w2", "bn2"), ("w3", "bn3"), ("w4", "bn4"), ("w5", "bn5")):
        wf, bf = _temporal_weight(p[nw], p[nb], T)
        wt_blocks.append(wf); bt.append(bf)
    Wt = jnp.concatenate(wt_blocks, axis=0)            # (TCI + 3*TCO, TCO)

    sp_taps, sp_shift = [], []
    for nw, nb in (("w6", "bn6"), ("w7", "bn7"), ("w8", "bn8"), ("w9", "bn9")):
        tps, sh = _spatial_taps(p[nw], p[nb], T)
        sp_taps.append(tps); sp_shift.append(sh)
    Wsp = jnp.concatenate(
        [block_diag(sp_taps[0][k], sp_taps[1][k], sp_taps[2][k], sp_taps[3][k])
         for k in range(9)], axis=0)                   # (9*4*TCO, 4*TCM)
    bsp = jnp.concatenate(sp_shift, axis=1)            # (1, 4*TCM)

    W10f, b10 = _conv10_weight(p["w10"], p["b10"], p["bn10"], T, mid)  # (4*TCM, TCI)

    BW = TCI                                            # widest bias (== 4*TCM)
    def padlane(b):
        return jnp.pad(b, ((0, 0), (0, BW - b.shape[1])))
    bias = jnp.concatenate(
        [padlane(b1)] + [padlane(b) for b in bt]
        + [padlane(bsp), padlane(b10), jnp.zeros((1, BW), jnp.float32)],
        axis=0)                                         # (8, BW) f32

    W1b = W1f.astype(jnp.bfloat16)
    Wtb = Wt.astype(jnp.bfloat16)
    Wspb = Wsp.astype(jnp.bfloat16)
    W10b = W10f.astype(jnp.bfloat16)

    kernel = _make_kernel(H, W2a, T, Cin, one, mid, lo)

    out = pl.pallas_call(
        kernel,
        out_shape=jax.ShapeDtypeStruct((N, Hb, TCI), jnp.float32),
        grid=(N,),
        in_specs=[
            pl.BlockSpec((1, R, TCI), lambda i: (i, 0, 0)),   # x (per-sample slab)
            pl.BlockSpec((R, TCO), lambda i: (0, 0)),         # mask
            pl.BlockSpec(W1b.shape, lambda i: (0, 0)),        # conv1 weights
            pl.BlockSpec(Wtb.shape, lambda i: (0, 0)),        # conv2..5 (temporal) slab
            pl.BlockSpec(Wspb.shape, lambda i: (0, 0)),       # conv6..9 (spatial) slab
            pl.BlockSpec(W10b.shape, lambda i: (0, 0)),       # conv10 weights
            pl.BlockSpec(bias.shape, lambda i: (0, 0)),       # folded-BN bias slab
        ],
        out_specs=pl.BlockSpec((1, Hb, TCI), lambda i: (i, 0, 0)),
        scratch_shapes=[pltpu.VMEM((R, 4 * TCO), jnp.bfloat16)],   # packed [T1..T4]
        compiler_params=pltpu.CompilerParams(
            dimension_semantics=("parallel",)),
    )(xf, mask, W1b, Wtb, Wspb, W10b, bias)

    # Drop the W-halo columns in the wrapper (cheap XLA slice, keeps the kernel
    # store lane-dense and sublane-aligned), then back to PyTorch layout.
    out = out.reshape(N, H, W2a, T, Cin)[:, :, :W]
    return jnp.transpose(out, (0, 4, 1, 2, 3))


# ----------------------------- params (synthetic) -----------------------------

def init_params(key, inplane=16, midplane=4):
    one = midplane * 2
    ks = iter(jax.random.split(key, 128))

    def w(shape):
        return 0.2 * jax.random.normal(next(ks), shape, jnp.float32)

    def bn(c):
        return dict(
            gamma=1.0 + 0.1 * jax.random.normal(next(ks), (c,), jnp.float32),
            beta=0.1 * jax.random.normal(next(ks), (c,), jnp.float32),
            mean=0.1 * jax.random.normal(next(ks), (c,), jnp.float32),
            var=0.5 + jax.random.uniform(next(ks), (c,), jnp.float32),
        )

    p = {}
    p["w1"] = w((inplane, inplane, 1, 1, 1)); p["bn1"] = bn(inplane)
    p["w2"] = w((one, inplane, 1, 1, 3));     p["bn2"] = bn(one)
    p["w6"] = w((midplane, one, 3, 3, 1));    p["bn6"] = bn(midplane)
    p["w3"] = w((one, one, 1, 1, 3));         p["bn3"] = bn(one)
    p["w7"] = w((midplane, one, 3, 3, 1));    p["bn7"] = bn(midplane)
    p["w4"] = w((one, one, 1, 1, 3));         p["bn4"] = bn(one)
    p["w8"] = w((midplane, one, 3, 3, 1));    p["bn8"] = bn(midplane)
    p["w5"] = w((one, one, 1, 1, 3));         p["bn5"] = bn(one)
    p["w9"] = w((midplane, one, 3, 3, 1));    p["bn9"] = bn(midplane)
    p["w10"] = w((midplane * 4, midplane * 4, 1, 1, 1))
    p["b10"] = 0.1 * jax.random.normal(next(ks), (midplane * 4,), jnp.float32)
    p["bn10"] = bn(midplane * 4)
    return p


# -------------------------- pure-JAX reference (check) ------------------------

def ref_forward(x, p):
    def conv(z, w, padding):
        return jax.lax.conv_general_dilated(
            z, w, window_strides=(1, 1, 1),
            padding=[(q, q) for q in padding],
            dimension_numbers=("NCDHW", "OIDHW", "NCDHW"))

    def bn(z, q):
        sh = (1, -1, 1, 1, 1)
        return ((z - q["mean"].reshape(sh)) / jnp.sqrt(q["var"].reshape(sh) + EPS)
                * q["gamma"].reshape(sh) + q["beta"].reshape(sh))

    relu = lambda z: jnp.maximum(z, 0.0)
    residual = x
    out = relu(bn(conv(x, p["w1"], (0, 0, 0)), p["bn1"]))
    T1 = relu(bn(conv(out, p["w2"], (0, 0, 1)), p["bn2"]))
    ST1 = relu(bn(conv(T1, p["w6"], (1, 1, 0)), p["bn6"]))
    T2 = relu(bn(conv(T1, p["w3"], (0, 0, 1)), p["bn3"]))
    ST2 = relu(bn(conv(T2, p["w7"], (1, 1, 0)), p["bn7"]))
    T3 = relu(bn(conv(T2, p["w4"], (0, 0, 1)), p["bn4"]))
    ST3 = relu(bn(conv(T3, p["w8"], (1, 1, 0)), p["bn8"]))
    T4 = relu(bn(conv(T3, p["w5"], (0, 0, 1)), p["bn5"]))
    ST4 = relu(bn(conv(T4, p["w9"], (1, 1, 0)), p["bn9"]))
    cat = jnp.concatenate([ST1, ST2, ST3, ST4], axis=1)
    out = conv(cat, p["w10"], (0, 0, 0)) + p["b10"].reshape(1, -1, 1, 1, 1)
    out = relu(bn(out, p["bn10"]))
    return relu(out + residual)


# ------------------------------------ main -------------------------------------

if __name__ == "__main__":
    key = jax.random.PRNGKey(0)
    kx, kp = jax.random.split(key)

    inplane, midplane = 16, 4          # inplane == 4*midplane -> residual adds cleanly
    N, H, W, T = 2, 8, 8, 4
    x = jax.random.normal(kx, (N, inplane, H, W, T), jnp.float32)
    params = init_params(kp, inplane=inplane, midplane=midplane)

    # TODO(synk): only st_struc='A', stride 1, no downsample, inference-mode BN
    # (running stats) is implemented; other st_struc variants / training BN are
    # not covered by this kernel.

    fwd = jax.jit(bottleneck_forward)
    out = jax.block_until_ready(fwd(x, params))

    ref = jax.block_until_ready(ref_forward(x, params))
    # bf16 MXU operands (f32 accumulate / epilogue) -> relaxed tolerance.
    np.testing.assert_allclose(np.asarray(out), np.asarray(ref),
                               rtol=5e-2, atol=5e-2)
    print("KERNEL_OK")
</pallas_src>

<mosaic_0001>
module attributes {stable_mosaic.version = 11 : i64} {
  func.func @kernel(%arg0: i32, %arg1: memref<1x192x64xf32, #tpu.memory_space<vmem>>, %arg2: memref<192x32xf32, #tpu.memory_space<vmem>>, %arg3: memref<64x64xbf16, #tpu.memory_space<vmem>>, %arg4: memref<160x32xbf16, #tpu.memory_space<vmem>>, %arg5: memref<1152x64xbf16, #tpu.memory_space<vmem>>, %arg6: memref<64x64xbf16, #tpu.memory_space<vmem>>, %arg7: memref<8x64xf32, #tpu.memory_space<vmem>>, %arg8: memref<1x128x64xf32, #tpu.memory_space<vmem>>, %arg9: memref<192x128xbf16, #tpu.memory_space<vmem>>) attributes {dimension_semantics = [#tpu.dimension_semantics<parallel>], iteration_bounds = array<i64: 2>, scalar_prefetch = 0 : i64, scratch_operands = 1 : i64, tpu.core_type = #tpu.core_type<tc>, window_params = [{transform_indices = @transform_0, window_bounds = array<i64: 1, 192, 64>}, {pipeline_mode = #tpu.pipeline_mode<synchronous>, transform_indices = @transform_1, window_bounds = array<i64: 192, 32>}, {pipeline_mode = #tpu.pipeline_mode<synchronous>, transform_indices = @transform_2, window_bounds = array<i64: 64, 64>}, {pipeline_mode = #tpu.pipeline_mode<synchronous>, transform_indices = @transform_3, window_bounds = array<i64: 160, 32>}, {pipeline_mode = #tpu.pipeline_mode<synchronous>, transform_indices = @transform_4, window_bounds = array<i64: 1152, 64>}, {pipeline_mode = #tpu.pipeline_mode<synchronous>, transform_indices = @transform_5, window_bounds = array<i64: 64, 64>}, {pipeline_mode = #tpu.pipeline_mode<synchronous>, transform_indices = @transform_6, window_bounds = array<i64: 8, 64>}, {transform_indices = @transform_7, window_bounds = array<i64: 1, 128, 64>}]} {
    %c0 = arith.constant 0 : index
    %c0_0 = arith.constant 0 : index
    %c0_1 = arith.constant 0 : index
    %0 = vector.load %arg1[%c0, %c0_0, %c0_1] : memref<1x192x64xf32, #tpu.memory_space<vmem>>, vector<1x192x64xf32>
    %1 = vector.shape_cast %0 : vector<1x192x64xf32> to vector<192x64xf32>
    %c0_2 = arith.constant 0 : index
    %c0_3 = arith.constant 0 : index
    %2 = vector.load %arg2[%c0_2, %c0_3] : memref<192x32xf32, #tpu.memory_space<vmem>>, vector<192x32xf32>
    %c0_4 = arith.constant 0 : index
    %c0_5 = arith.constant 0 : index
    %3 = vector.load %arg3[%c0_4, %c0_5] : memref<64x64xbf16, #tpu.memory_space<vmem>>, vector<64x64xbf16>
    %c0_6 = arith.constant 0 : index
    %c0_7 = arith.constant 0 : index
    %4 = vector.load %arg7[%c0_6, %c0_7] : memref<8x64xf32, #tpu.memory_space<vmem>>, vector<1x64xf32>
    %5 = arith.truncf %1 : vector<192x64xf32> to vector<192x64xbf16>
    %cst = arith.constant dense<0.000000e+00> : vector<192x64xf32>
    %6 = tpu.matmul %5, %3, %cst {dimension_numbers = #tpu.dot_dimension_numbers<[1], [0], [0], [1], [0, 0, 1, 1], [], []>} : vector<192x64xbf16>, vector<64x64xbf16>, vector<192x64xf32> -> vector<192x64xf32>
    %7 = vector.broadcast %4 : vector<1x64xf32> to vector<192x64xf32>
    %8 = arith.addf %6, %7 : vector<192x64xf32>
    %cst_8 = arith.constant 0.000000e+00 : f32
    %9 = vector.broadcast %cst_8 : f32 to vector<192x64xf32>
    %10 = arith.maximumf %8, %9 : vector<192x64xf32>
    %c0_9 = arith.constant 0 : index
    %c0_10 = arith.constant 0 : index
    %11 = vector.load %arg4[%c0_9, %c0_10] : memref<160x32xbf16, #tpu.memory_space<vmem>>, vector<64x32xbf16>
    %c1 = arith.constant 1 : index
    %c0_11 = arith.constant 0 : index
    %12 = vector.load %arg7[%c1, %c0_11] : memref<8x64xf32, #tpu.memory_space<vmem>>, vector<1x32xf32>
    %13 = arith.truncf %10 : vector<192x64xf32> to vector<192x64xbf16>
    %cst_12 = arith.constant dense<0.000000e+00> : vector<192x32xf32>
    %14 = tpu.matmul %13, %11, %cst_12 {dimension_numbers = #tpu.dot_dimension_numbers<[1], [0], [0], [1], [0, 0, 1, 1], [], []>} : vector<192x64xbf16>, vector<64x32xbf16>, vector<192x32xf32> -> vector<192x32xf32>
    %15 = vector.broadcast %12 : vector<1x32xf32> to vector<192x32xf32>
    %16 = arith.addf %14, %15 : vector<192x32xf32>
    %cst_13 = arith.constant 0.000000e+00 : f32
    %17 = vector.broadcast %cst_13 : f32 to vector<192x32xf32>
    %18 = arith.maximumf %16, %17 : vector<192x32xf32>
    %19 = arith.mulf %18, %2 : vector<192x32xf32>
    %20 = arith.truncf %19 : vector<192x32xf32> to vector<192x32xbf16>
    %c0_14 = arith.constant 0 : index
    %c0_15 = arith.constant 0 : index
    %21 = vector.load %arg9[%c0_14, %c0_15] : memref<192x128xbf16, #tpu.memory_space<vmem>>, vector<192x32xbf16>
    tpu.vector_store %arg9[%c0_14, %c0_15], %20 {strides = array<i32>} : memref<192x128xbf16, #tpu.memory_space<vmem>>, vector<192x32xbf16>,
    %c64 = arith.constant 64 : index
    %c0_16 = arith.constant 0 : index
    %22 = vector.load %arg4[%c64, %c0_16] : memref<160x32xbf16, #tpu.memory_space<vmem>>, vector<32x32xbf16>
    %c2 = arith.constant 2 : index
    %c0_17 = arith.constant 0 : index
    %23 = vector.load %arg7[%c2, %c0_17] : memref<8x64xf32, #tpu.memory_space<vmem>>, vector<1x32xf32>
    %24 = arith.truncf %18 : vector<192x32xf32> to vector<192x32xbf16>
    %cst_18 = arith.constant dense<0.000000e+00> : vector<192x32xf32>
    %25 = tpu.matmul %24, %22, %cst_18 {dimension_numbers = #tpu.dot_dimension_numbers<[1], [0], [0], [1], [0, 0, 1, 1], [], []>} : vector<192x32xbf16>, vector<32x32xbf16>, vector<192x32xf32> -> vector<192x32xf32>
    %26 = vector.broadcast %23 : vector<1x32xf32> to vector<192x32xf32>
    %27 = arith.addf %25, %26 : vector<192x32xf32>
    %cst_19 = arith.constant 0.000000e+00 : f32
    %28 = vector.broadcast %cst_19 : f32 to vector<192x32xf32>
    %29 = arith.maximumf %27, %28 : vector<192x32xf32>
    %30 = arith.mulf %29, %2 : vector<192x32xf32>
    %31 = arith.truncf %30 : vector<192x32xf32> to vector<192x32xbf16>
    %c0_20 = arith.constant 0 : index
    %c32 = arith.constant 32 : index
    %32 = vector.load %arg9[%c0_20, %c32] : memref<192x128xbf16, #tpu.memory_space<vmem>>, vector<192x32xbf16>
    tpu.vector_store %arg9[%c0_20, %c32], %31 {strides = array<i32>} : memref<192x128xbf16, #tpu.memory_space<vmem>>, vector<192x32xbf16>,
    %c96 = arith.constant 96 : index
    %c0_21 = arith.constant 0 : index
    %33 = vector.load %arg4[%c96, %c0_21] : memref<160x32xbf16, #tpu.memory_space<vmem>>, vector<32x32xbf16>
    %c3 = arith.constant 3 : index
    %c0_22 = arith.constant 0 : index
    %34 = vector.load %arg7[%c3, %c0_22] : memref<8x64xf32, #tpu.memory_space<vmem>>, vector<1x32xf32>
    %35 = arith.truncf %29 : vector<192x32xf32> to vector<192x32xbf16>
    %cst_23 = arith.constant dense<0.000000e+00> : vector<192x32xf32>
    %36 = tpu.matmul %35, %33, %cst_23 {dimension_numbers = #tpu.dot_dimension_numbers<[1], [0], [0], [1], [0, 0, 1, 1], [], []>} : vector<192x32xbf16>, vector<32x32xbf16>, vector<192x32xf32> -> vector<192x32xf32>
    %37 = vector.broadcast %34 : vector<1x32xf32> to vector<192x32xf32>
    %38 = arith.addf %36, %37 : vector<192x32xf32>
    %cst_24 = arith.constant 0.000000e+00 : f32
    %39 = vector.broadcast %cst_24 : f32 to vector<192x32xf32>
    %40 = arith.maximumf %38, %39 : vector<192x32xf32>
    %41 = arith.mulf %40, %2 : vector<192x32xf32>
    %42 = arith.truncf %41 : vector<192x32xf32> to vector<192x32xbf16>
    %c0_25 = arith.constant 0 : index
    %c64_26 = arith.constant 64 : index
    %43 = vector.load %arg9[%c0_25, %c64_26] : memref<192x128xbf16, #tpu.memory_space<vmem>>, vector<192x32xbf16>
    tpu.vector_store %arg9[%c0_25, %c64_26], %42 {strides = array<i32>} : memref<192x128xbf16, #tpu.memory_space<vmem>>, vector<192x32xbf16>,
    %c128 = arith.constant 128 : index
    %c0_27 = arith.constant 0 : index
    %44 = vector.load %arg4[%c128, %c0_27] : memref<160x32xbf16, #tpu.memory_space<vmem>>, vector<32x32xbf16>
    %c4 = arith.constant 4 : index
    %c0_28 = arith.constant 0 : index
    %45 = vector.load %arg7[%c4, %c0_28] : memref<8x64xf32, #tpu.memory_space<vmem>>, vector<1x32xf32>
    %46 = arith.truncf %40 : vector<192x32xf32> to vector<192x32xbf16>
    %cst_29 = arith.constant dense<0.000000e+00> : vector<192x32xf32>
    %47 = tpu.matmul %46, %44, %cst_29 {dimension_numbers = #tpu.dot_dimension_numbers<[1], [0], [0], [1], [0, 0, 1, 1], [], []>} : vector<192x32xbf16>, vector<32x32xbf16>, vector<192x32xf32> -> vector<192x32xf32>
    %48 = vector.broadcast %45 : vector<1x32xf32> to vector<192x32xf32>
    %49 = arith.addf %47, %48 : vector<192x32xf32>
    %cst_30 = arith.constant 0.000000e+00 : f32
    %50 = vector.broadcast %cst_30 : f32 to vector<192x32xf32>
    %51 = arith.maximumf %49, %50 : vector<192x32xf32>
    %52 = arith.mulf %51, %2 : vector<192x32xf32>
    %53 = arith.truncf %52 : vector<192x32xf32> to vector<192x32xbf16>
    %c0_31 = arith.constant 0 : index
    %c96_32 = arith.constant 96 : index
    %54 = vector.load %arg9[%c0_31, %c96_32] : memref<192x128xbf16, #tpu.memory_space<vmem>>, vector<192x32xbf16>
    tpu.vector_store %arg9[%c0_31, %c96_32], %53 {strides = array<i32>} : memref<192x128xbf16, #tpu.memory_space<vmem>>, vector<192x32xbf16>,
    %c15 = arith.constant 15 : index
    %c0_33 = arith.constant 0 : index
    %55 = vector.load %arg9[%c15, %c0_33] : memref<192x128xbf16, #tpu.memory_space<vmem>>, vector<128x128xbf16>
    %c0_34 = arith.constant 0 : index
    %c0_35 = arith.constant 0 : index
    %56 = vector.load %arg5[%c0_34, %c0_35] : memref<1152x64xbf16, #tpu.memory_space<vmem>>, vector<128x64xbf16>
    %cst_36 = arith.constant dense<0.000000e+00> : vector<128x64xf32>
    %57 = tpu.matmul %55, %56, %cst_36 {dimension_numbers = #tpu.dot_dimension_numbers<[1], [0], [0], [1], [0, 0, 1, 1], [], []>} : vector<128x128xbf16>, vector<128x64xbf16>, vector<128x64xf32> -> vector<128x64xf32>
    %c16 = arith.constant 16 : index
    %c0_37 = arith.constant 0 : index
    %58 = vector.load %arg9[%c16, %c0_37] : memref<192x128xbf16, #tpu.memory_space<vmem>>, vector<128x128xbf16>
    %c128_38 = arith.constant 128 : index
    %c0_39 = arith.constant 0 : index
    %59 = vector.load %arg5[%c128_38, %c0_39] : memref<1152x64xbf16, #tpu.memory_space<vmem>>, vector<128x64xbf16>
    %cst_40 = arith.constant dense<0.000000e+00> : vector<128x64xf32>
    %60 = tpu.matmul %58, %59, %cst_40 {dimension_numbers = #tpu.dot_dimension_numbers<[1], [0], [0], [1], [0, 0, 1, 1], [], []>} : vector<128x128xbf16>, vector<128x64xbf16>, vector<128x64xf32> -> vector<128x64xf32>
    %61 = arith.addf %57, %60 : vector<128x64xf32>
    %c17 = arith.constant 17 : index
    %c0_41 = arith.constant 0 : index
    %62 = vector.load %arg9[%c17, %c0_41] : memref<192x128xbf16, #tpu.memory_space<vmem>>, vector<128x128xbf16>
    %c256 = arith.constant 256 : index
    %c0_42 = arith.constant 0 : index
    %63 = vector.load %arg5[%c256, %c0_42] : memref<1152x64xbf16, #tpu.memory_space<vmem>>, vector<128x64xbf16>
    %cst_43 = arith.constant dense<0.000000e+00> : vector<128x64xf32>
    %64 = tpu.matmul %62, %63, %cst_43 {dimension_numbers = #tpu.dot_dimension_numbers<[1], [0], [0], [1], [0, 0, 1, 1], [], []>} : vector<128x128xbf16>, vector<128x64xbf16>, vector<128x64xf32> -> vector<128x64xf32>
    %65 = arith.addf %61, %64 : vector<128x64xf32>
    %c31 = arith.constant 31 : index
    %c0_44 = arith.constant 0 : index
    %66 = vector.load %arg9[%c31, %c0_44] : memref<192x128xbf16, #tpu.memory_space<vmem>>, vector<128x128xbf16>
    %c384 = arith.constant 384 : index
    %c0_45 = arith.constant 0 : index
    %67 = vector.load %arg5[%c384, %c0_45] : memref<1152x64xbf16, #tpu.memory_space<vmem>>, vector<128x64xbf16>
    %cst_46 = arith.constant dense<0.000000e+00> : vector<128x64xf32>
    %68 = tpu.matmul %66, %67, %cst_46 {dimension_numbers = #tpu.dot_dimension_numbers<[1], [0], [0], [1], [0, 0, 1, 1], [], []>} : vector<128x128xbf16>, vector<128x64xbf16>, vector<128x64xf32> -> vector<128x64xf32>
    %69 = arith.addf %65, %68 : vector<128x64xf32>
    %c32_47 = arith.constant 32 : index
    %c0_48 = arith.constant 0 : index
    %70 = vector.load %arg9[%c32_47, %c0_48] : memref<192x128xbf16, #tpu.memory_space<vmem>>, vector<128x128xbf16>
    %c512 = arith.constant 512 : index
    %c0_49 = arith.constant 0 : index
    %71 = vector.load %arg5[%c512, %c0_49] : memref<1152x64xbf16, #tpu.memory_space<vmem>>, vector<128x64xbf16>
    %cst_50 = arith.constant dense<0.000000e+00> : vector<128x64xf32>
    %72 = tpu.matmul %70, %71, %cst_50 {dimension_numbers = #tpu.dot_dimension_numbers<[1], [0], [0], [1], [0, 0, 1, 1], [], []>} : vector<128x128xbf16>, vector<128x64xbf16>, vector<128x64xf32> -> vector<128x64xf32>
    %73 = arith.addf %69, %72 : vector<128x64xf32>
    %c33 = arith.constant 33 : index
    %c0_51 = arith.constant 0 : index
    %74 = vector.load %arg9[%c33, %c0_51] : memref<192x128xbf16, #tpu.memory_space<vmem>>, vector<128x128xbf16>
    %c640 = arith.constant 640 : index
    %c0_52 = arith.constant 0 : index
    %75 = vector.load %arg5[%c640, %c0_52] : memref<1152x64xbf16, #tpu.memory_space<vmem>>, vector<128x64xbf16>
    %cst_53 = arith.constant dense<0.000000e+00> : vector<128x64xf32>
    %76 = tpu.matmul %74, %75, %cst_53 {dimension_numbers = #tpu.dot_dimension_numbers<[1], [0], [0], [1], [0, 0, 1, 1], [], []>} : vector<128x128xbf16>, vector<128x64xbf16>, vector<128x64xf32> -> vector<128x64xf32>
    %77 = arith.addf %73, %76 : vector<128x64xf32>
    %c47 = arith.constant 47 : index
    %c0_54 = arith.constant 0 : index
    %78 = vector.load %arg9[%c47, %c0_54] : memref<192x128xbf16, #tpu.memory_space<vmem>>, vector<128x128xbf16>
    %c768 = arith.constant 768 : index
    %c0_55 = arith.constant 0 : index
    %79 = vector.load %arg5[%c768, %c0_55] : memref<1152x64xbf16, #tpu.memory_space<vmem>>, vector<128x64xbf16>
    %cst_56 = arith.constant dense<0.000000e+00> : vector<128x64xf32>
    %80 = tpu.matmul %78, %79, %cst_56 {dimension_numbers = #tpu.dot_dimension_numbers<[1], [0], [0], [1], [0, 0, 1, 1], [], []>} : vector<128x128xbf16>, vector<128x64xbf16>, vector<128x64xf32> -> vector<128x64xf32>
    %81 = arith.addf %77, %80 : vector<128x64xf32>
    %c48 = arith.constant 48 : index
    %c0_57 = arith.constant 0 : index
    %82 = vector.load %arg9[%c48, %c0_57] : memref<192x128xbf16, #tpu.memory_space<vmem>>, vector<128x128xbf16>
    %c896 = arith.constant 896 : index
    %c0_58 = arith.constant 0 : index
    %83 = vector.load %arg5[%c896, %c0_58] : memref<1152x64xbf16, #tpu.memory_space<vmem>>, vector<128x64xbf16>
    %cst_59 = arith.constant dense<0.000000e+00> : vector<128x64xf32>
    %84 = tpu.matmul %82, %83, %cst_59 {dimension_numbers = #tpu.dot_dimension_numbers<[1], [0], [0], [1], [0, 0, 1, 1], [], []>} : vector<128x128xbf16>, vector<128x64xbf16>, vector<128x64xf32> -> vector<128x64xf32>
    %85 = arith.addf %81, %84 : vector<128x64xf32>
    %c49 = arith.constant 49 : index
    %c0_60 = arith.constant 0 : index
    %86 = vector.load %arg9[%c49, %c0_60] : memref<192x128xbf16, #tpu.memory_space<vmem>>, vector<128x128xbf16>
    %c1024 = arith.constant 1024 : index
    %c0_61 = arith.constant 0 : index
    %87 = vector.load %arg5[%c1024, %c0_61] : memref<1152x64xbf16, #tpu.memory_space<vmem>>, vector<128x64xbf16>
    %cst_62 = arith.constant dense<0.000000e+00> : vector<128x64xf32>
    %88 = tpu.matmul %86, %87, %cst_62 {dimension_numbers = #tpu.dot_dimension_numbers<[1], [0], [0], [1], [0, 0, 1, 1], [], []>} : vector<128x128xbf16>, vector<128x64xbf16>, vector<128x64xf32> -> vector<128x64xf32>
    %89 = arith.addf %85, %88 : vector<128x64xf32>
    %c5 = arith.constant 5 : index
    %c0_63 = arith.constant 0 : index
    %90 = vector.load %arg7[%c5, %c0_63] : memref<8x64xf32, #tpu.memory_space<vmem>>, vector<1x64xf32>
    %91 = vector.broadcast %90 : vector<1x64xf32> to vector<128x64xf32>
    %92 = arith.addf %89, %91 : vector<128x64xf32>
    %cst_64 = arith.constant 0.000000e+00 : f32
    %93 = vector.broadcast %cst_64 : f32 to vector<128x64xf32>
    %94 = arith.maximumf %92, %93 : vector<128x64xf32>
    %c0_65 = arith.constant 0 : index
    %c0_66 = arith.constant 0 : index
    %95 = vector.load %arg6[%c0_65, %c0_66] : memref<64x64xbf16, #tpu.memory_space<vmem>>, vector<64x64xbf16>
    %c6 = arith.constant 6 : index
    %c0_67 = arith.constant 0 : index
    %96 = vector.load %arg7[%c6, %c0_67] : memref<8x64xf32, #tpu.memory_space<vmem>>, vector<1x64xf32>
    %97 = arith.truncf %94 : vector<128x64xf32> to vector<128x64xbf16>
    %cst_68 = arith.constant dense<0.000000e+00> : vector<128x64xf32>
    %98 = tpu.matmul %97, %95, %cst_68 {dimension_numbers = #tpu.dot_dimension_numbers<[1], [0], [0], [1], [0, 0, 1, 1], [], []>} : vector<128x64xbf16>, vector<64x64xbf16>, vector<128x64xf32> -> vector<128x64xf32>
    %99 = vector.broadcast %96 : vector<1x64xf32> to vector<128x64xf32>
    %100 = arith.addf %98, %99 : vector<128x64xf32>
    %cst_69 = arith.constant 0.000000e+00 : f32
    %101 = vector.broadcast %cst_69 : f32 to vector<128x64xf32>
    %102 = arith.maximumf %100, %101 : vector<128x64xf32>
    %c0_70 = arith.constant 0 : index
    %c32_71 = arith.constant 32 : index
    %c0_72 = arith.constant 0 : index
    %103 = vector.load %arg1[%c0_70, %c32_71, %c0_72] : memref<1x192x64xf32, #tpu.memory_space<vmem>>, vector<1x128x64xf32>
    %104 = vector.shape_cast %103 : vector<1x128x64xf32> to vector<128x64xf32>
    %105 = arith.addf %102, %104 : vector<128x64xf32>
    %cst_73 = arith.constant 0.000000e+00 : f32
    %106 = vector.broadcast %cst_73 : f32 to vector<128x64xf32>
    %107 = arith.maximumf %105, %106 : vector<128x64xf32>
    %c0_74 = arith.constant 0 : index
    %c0_75 = arith.constant 0 : index
    %c0_76 = arith.constant 0 : index
    %108 = vector.load %arg8[%c0_74, %c0_75, %c0_76] : memref<1x128x64xf32, #tpu.memory_space<vmem>>, vector<1x128x64xf32>
    %109 = vector.shape_cast %108 : vector<1x128x64xf32> to vector<128x64xf32>
    %110 = vector.shape_cast %107 : vector<128x64xf32> to vector<1x128x64xf32>
    tpu.vector_store %arg8[%c0_74, %c0_75, %c0_76], %110 {strides = array<i32>} : memref<1x128x64xf32, #tpu.memory_space<vmem>>, vector<1x128x64xf32>,
    return
  }
  func.func @transform_0(%arg0: i32) -> (i32, i32, i32) {
    %c0_i32 = arith.constant 0 : i32
    %c0_i32_0 = arith.constant 0 : i32
    %c0_i32_1 = arith.constant 0 : i32
    return %arg0, %c0_i32, %c0_i32_0 : i32, i32, i32
  }
  func.func @transform_1(%arg0: i32) -> (i32, i32) {
    %c0_i32 = arith.constant 0 : i32
    %c0_i32_0 = arith.constant 0 : i32
    %c0_i32_1 = arith.constant 0 : i32
    return %c0_i32, %c0_i32_0 : i32, i32
  }
  func.func @transform_2(%arg0: i32) -> (i32, i32) {
    %c0_i32 = arith.constant 0 : i32
    %c0_i32_0 = arith.constant 0 : i32
    %c0_i32_1 = arith.constant 0 : i32
    return %c0_i32, %c0_i32_0 : i32, i32
  }
  func.func @transform_3(%arg0: i32) -> (i32, i32) {
    %c0_i32 = arith.constant 0 : i32
    %c0_i32_0 = arith.constant 0 : i32
    %c0_i32_1 = arith.constant 0 : i32
    return %c0_i32, %c0_i32_0 : i32, i32
  }
  func.func @transform_4(%arg0: i32) -> (i32, i32) {
    %c0_i32 = arith.constant 0 : i32
    %c0_i32_0 = arith.constant 0 : i32
    %c0_i32_1 = arith.constant 0 : i32
    return %c0_i32, %c0_i32_0 : i32, i32
  }
  func.func @transform_5(%arg0: i32) -> (i32, i32) {
    %c0_i32 = arith.constant 0 : i32
    %c0_i32_0 = arith.constant 0 : i32
    %c0_i32_1 = arith.constant 0 : i32
    return %c0_i32, %c0_i32_0 : i32, i32
  }
  func.func @transform_6(%arg0: i32) -> (i32, i32) {
    %c0_i32 = arith.constant 0 : i32
    %c0_i32_0 = arith.constant 0 : i32
    %c0_i32_1 = arith.constant 0 : i32
    return %c0_i32, %c0_i32_0 : i32, i32
  }
  func.func @transform_7(%arg0: i32) -> (i32, i32, i32) {
    %c0_i32 = arith.constant 0 : i32
    %c0_i32_0 = arith.constant 0 : i32
    %c0_i32_1 = arith.constant 0 : i32
    return %arg0, %c0_i32, %c0_i32_0 : i32, i32, i32
  }
}

</mosaic_0001>

<llo_original>
// kernel: tile.189
$region0: #{tile.189}
  #allocation0 [shape = 's32[1]{0}', space=sflag, size = 0x4, scoped, tag = 'scoped memory for tile.189']
  %s0 = inlined_call_operand.vmem [shape: f32[4], index: 0, kind: input, shape index: {}]
  %s1 = inlined_call_operand.vmem [shape: f32[4,4], index: 1, kind: output, shape index: {}]
  // Predicated region
  $region2: #{tile.189} parent=0 // pred_check
    _
  $region3: #{tile.189} parent=0 // pred_check_branch
    %3 = sbr.rel (0) target = $region5
  $region4: #{tile.189} parent=0 // pred_region
    _
  $region5: #{tile.189} parent=0 // pred_fallthru
    _
  %v4 = vld [vmem:[%s0] ss:$0 sm:$0xff]
  %5 = vst [vmem:[%s1] sm:$0xf] %v4

// kernel: mul.387
$region0: #{mul.387}
  %s0 = inlined_call_operand.vmem [shape: f32[4,4], index: 0, kind: input, shape index: {}]
  %s1 = inlined_call_operand.vmem [shape: f32[16], index: 1, kind: output, shape index: {}]
  $region1: #{mul.387} parent=0
    #allocation0 [shape = 'u8[4096]{0}', space=vmem, size = 0x1000, scoped, tag = 'scoped mem for output reshape']
    #allocation1 [shape = 'u8[4096]{0}', space=vmem, size = 0x1000, scoped, tag = 'scoped mem for input reshape']
    %s3 = sshllo.u32 0, 4
    %v4 = vld [vmem:[%s0] sm:%s3]
    %5 = vst [vmem:[#allocation1] sm:%s3] %v4
    %v6 = vld [vmem:[#allocation1] sm:$0x1]
    %vm7 = vcmask 31744
    %8 = vst.msk [vmem:[#allocation0] sm:$0x1] %vm7, %v6
    %s9 = scalar_lea.vmem [#allocation1], 3
    %v10 = vld [vmem:[%s9] sm:$0x1]
    %11 = vrot.lane.b32.xlu0 %v10, 12
    %v12 = vpop.permute.xlu0 %11
    %vm13 = vcmask 130144
    %14 = vst.msk [vmem:[#allocation0] sm:$0x1] %vm13, %v12
    %s15 = scalar_lea.vmem [#allocation1], 2
    %v16 = vld [vmem:[%s15] sm:$0x1]
    %17 = vrot.lane.b32.xlu0 %v16, 8
    %v18 = vpop.permute.xlu0 %17
    %vm19 = vcmask 97344
    %20 = vst.msk [vmem:[#allocation0] sm:$0x1] %vm19, %v18
    %s21 = scalar_lea.vmem [#allocation1], 1
    %v22 = vld [vmem:[%s21] sm:$0x1]
    %23 = vrot.lane.b32.xlu0 %v22, 4
    %v24 = vpop.permute.xlu0 %23
    %vm25 = vcmask 64544
    %26 = vst.msk [vmem:[#allocation0] sm:$0x1] %vm25, %v24
    %s28 = sshllo.u32 0, 1
    %v30 = vld [vmem:[#allocation0] sm:%s28]
    %s31 = sshllo.u32 0, 1
    %32 = vst [vmem:[%s1] sm:%s31] %v30

// kernel: tile.149
$region0: #{tile.149}
  #allocation0 [shape = 's32[1]{0}', space=sflag, size = 0x4, scoped, tag = 'scoped memory for tile.149']
  %s0 = inlined_call_operand.vmem [shape: f32[8], index: 0, kind: input, shape index: {}]
  %s1 = inlined_call_operand.vmem [shape: f32[4,8], index: 1, kind: output, shape index: {}]
  // Predicated region
  $region2: #{tile.149} parent=0 // pred_check
    _
  $region3: #{tile.149} parent=0 // pred_check_branch
    %3 = sbr.rel (0) target = $region5
  $region4: #{tile.149} parent=0 // pred_region
    _
  $region5: #{tile.149} parent=0 // pred_fallthru
    _
  %v4 = vld [vmem:[%s0] ss:$0 sm:$0xff]
  %5 = vst [vmem:[%s1] sm:$0xf] %v4

// kernel: mul.271
$region0: #{mul.271}
  %s0 = inlined_call_operand.vmem [shape: f32[4,8], index: 0, kind: input, shape index: {}]
  %s1 = inlined_call_operand.vmem [shape: f32[32], index: 1, kind: output, shape index: {}]
  $region1: #{mul.271} parent=0
    #allocation0 [shape = 'u8[4096]{0}', space=vmem, size = 0x1000, scoped, tag = 'scoped mem for output reshape']
    #allocation1 [shape = 'u8[4096]{0}', space=vmem, size = 0x1000, scoped, tag = 'scoped mem for input reshape']
    %s3 = sshllo.u32 0, 4
    %v4 = vld [vmem:[%s0] sm:%s3]
    %5 = vst [vmem:[#allocation1] sm:%s3] %v4
    %v6 = vld [vmem:[#allocation1] sm:$0x1]
    %vm7 = vcmask 64512
    %8 = vst.msk [vmem:[#allocation0] sm:$0x1] %vm7, %v6
    %s9 = scalar_lea.vmem [#allocation1], 3
    %v10 = vld [vmem:[%s9] sm:$0x1]
    %11 = vrot.lane.b32.xlu0 %v10, 24
    %v12 = vpop.permute.xlu0 %11
    %vm13 = vcmask 261312
    %14 = vst.msk [vmem:[#allocation0] sm:$0x1] %vm13, %v12
    %s15 = scalar_lea.vmem [#allocation1], 2
    %v16 = vld [vmem:[%s15] sm:$0x1]
    %17 = vrot.lane.b32.xlu0 %v16, 16
    %v18 = vpop.permute.xlu0 %17
    %vm19 = vcmask 195712
    %20 = vst.msk [vmem:[#allocation0] sm:$0x1] %vm19, %v18
    %s21 = scalar_lea.vmem [#allocation1], 1
    %v22 = vld [vmem:[%s21] sm:$0x1]
    %23 = vrot.lane.b32.xlu0 %v22, 8
    %v24 = vpop.permute.xlu0 %23
    %vm25 = vcmask 130112
    %26 = vst.msk [vmem:[#allocation0] sm:$0x1] %vm25, %v24
    %s28 = sshllo.u32 0, 1
    %v30 = vld [vmem:[#allocation0] sm:%s28]
    %s31 = sshllo.u32 0, 1
    %32 = vst [vmem:[%s1] sm:%s31] %v30

// kernel: tile.199
$region0: #{tile.199}
  #allocation0 [shape = 's32[1]{0}', space=sflag, size = 0x4, scoped, tag = 'scoped memory for tile.199']
  %s0 = inlined_call_operand.vmem [shape: f32[16], index: 0, kind: input, shape index: {}]
  %s1 = inlined_call_operand.vmem [shape: f32[4,16], index: 1, kind: output, shape index: {}]
  // Predicated region
  $region2: #{tile.199} parent=0 // pred_check
    _
  $region3: #{tile.199} parent=0 // pred_check_branch
    %3 = sbr.rel (0) target = $region5
  $region4: #{tile.199} parent=0 // pred_region
    _
  $region5: #{tile.199} parent=0 // pred_fallthru
    _
  %v4 = vld [vmem:[%s0] ss:$0 sm:$0xff]
  %5 = vst [vmem:[%s1] sm:$0xf] %v4

// kernel: mul.425
$region0: #{mul.425}
  %s0 = inlined_call_operand.vmem [shape: f32[4,16], index: 0, kind: input, shape index: {}]
  %s1 = inlined_call_operand.vmem [shape: f32[64], index: 1, kind: output, shape index: {}]
  $region1: #{mul.425} parent=0
    #allocation0 [shape = 'u8[4096]{0}', space=vmem, size = 0x1000, scoped, tag = 'scoped mem for output reshape']
    #allocation1 [shape = 'u8[4096]{0}', space=vmem, size = 0x1000, scoped, tag = 'scoped mem for input reshape']
    %s3 = sshllo.u32 0, 4
    %v4 = vld [vmem:[%s0] sm:%s3]
    %5 = vst [vmem:[#allocation1] sm:%s3] %v4
    %v6 = vld [vmem:[#allocation1] sm:$0x1]
    %vm7 = vcmask 130048
    %8 = vst.msk [vmem:[#allocation0] sm:$0x1] %vm7, %v6
    %s9 = scalar_lea.vmem [#allocation1], 3
    %v10 = vld [vmem:[%s9] sm:$0x1]
    %11 = vrot.lane.b32.xlu0 %v10, 48
    %v12 = vpop.permute.xlu0 %11
    %vm13 = vcmask 523648
    %14 = vst.msk [vmem:[#allocation0] sm:$0x1] %vm13, %v12
    %s15 = scalar_lea.vmem [#allocation1], 2
    %v16 = vld [vmem:[%s15] sm:$0x1]
    %17 = vrot.lane.b32.xlu0 %v16, 32
    %v18 = vpop.permute.xlu0 %17
    %vm19 = vcmask 392448
    %20 = vst.msk [vmem:[#allocation0] sm:$0x1] %vm19, %v18
    %s21 = scalar_lea.vmem [#allocation1], 1
    %v22 = vld [vmem:[%s21] sm:$0x1]
    %23 = vrot.lane.b32.xlu0 %v22, 16
    %v24 = vpop.permute.xlu0 %23
    %vm25 = vcmask 261248
    %26 = vst.msk [vmem:[#allocation0] sm:$0x1] %vm25, %v24
    %s28 = sshllo.u32 0, 1
    %v30 = vld [vmem:[#allocation0] sm:%s28]
    %s31 = sshllo.u32 0, 1
    %32 = vst [vmem:[%s1] sm:%s31] %v30

// kernel: tile.165
$region0: #{tile.165}
  %s0 = inlined_call_operand.vmem [shape: f32[4,4], index: 0, kind: input, shape index: {}]
  %s1 = inlined_call_operand.vmem [shape: f32[1,16], index: 1, kind: output, shape index: {}]
  $region1: #{tile.165} parent=0
    #allocation0 [shape = 'u8[4096]{0}', space=vmem, size = 0x1000, scoped, tag = 'scoped mem for output reshape']
    #allocation1 [shape = 'u8[4096]{0}', space=vmem, size = 0x1000, scoped, tag = 'scoped mem for input reshape']
    %s3 = sshllo.u32 0, 4
    %v4 = vld [vmem:[%s0] sm:%s3]
    %5 = vst [vmem:[#allocation1] sm:%s3] %v4
    %v6 = vld [vmem:[#allocation1] sm:$0x1]
    %vm7 = vcmask 31744
    %8 = vst.msk [vmem:[#allocation0] sm:$0x1] %vm7, %v6
    %s9 = scalar_lea.vmem [#allocation1], 3
    %v10 = vld [vmem:[%s9] sm:$0x1]
    %11 = vrot.lane.b32.xlu0 %v10, 12
    %v12 = vpop.permute.xlu0 %11
    %vm13 = vcmask 130144
    %14 = vst.msk [vmem:[#allocation0] sm:$0x1] %vm13, %v12
    %s15 = scalar_lea.vmem [#allocation1], 2
    %v16 = vld [vmem:[%s15] sm:$0x1]
    %17 = vrot.lane.b32.xlu0 %v16, 8
    %v18 = vpop.permute.xlu0 %17
    %vm19 = vcmask 97344
    %20 = vst.msk [vmem:[#allocation0] sm:$0x1] %vm19, %v18
    %s21 = scalar_lea.vmem [#allocation1], 1
    %v22 = vld [vmem:[%s21] sm:$0x1]
    %23 = vrot.lane.b32.xlu0 %v22, 4
    %v24 = vpop.permute.xlu0 %23
    %vm25 = vcmask 64544
    %26 = vst.msk [vmem:[#allocation0] sm:$0x1] %vm25, %v24
    %s28 = sshllo.u32 0, 1
    %v30 = vld [vmem:[#allocation0] sm:%s28]
    %s31 = sshllo.u32 0, 1
    %32 = vst [vmem:[%s1] sm:%s31] %v30

// kernel: tile.125
$region0: #{tile.125}
  %s0 = inlined_call_operand.vmem [shape: f32[4,8], index: 0, kind: input, shape index: {}]
  %s1 = inlined_call_operand.vmem [shape: f32[1,32], index: 1, kind: output, shape index: {}]
  $region1: #{tile.125} parent=0
    #allocation0 [shape = 'u8[4096]{0}', space=vmem, size = 0x1000, scoped, tag = 'scoped mem for output reshape']
    #allocation1 [shape = 'u8[4096]{0}', space=vmem, size = 0x1000, scoped, tag = 'scoped mem for input reshape']
    %s3 = sshllo.u32 0, 4
    %v4 = vld [vmem:[%s0] sm:%s3]
    %5 = vst [vmem:[#allocation1] sm:%s3] %v4
    %v6 = vld [vmem:[#allocation1] sm:$0x1]
    %vm7 = vcmask 64512
    %8 = vst.msk [vmem:[#allocation0] sm:$0x1] %vm7, %v6
    %s9 = scalar_lea.vmem [#allocation1], 3
    %v10 = vld [vmem:[%s9] sm:$0x1]
    %11 = vrot.lane.b32.xlu0 %v10, 24
    %v12 = vpop.permute.xlu0 %11
    %vm13 = vcmask 261312
    %14 = vst.msk [vmem:[#allocation0] sm:$0x1] %vm13, %v12
    %s15 = scalar_lea.vmem [#allocation1], 2
    %v16 = vld [vmem:[%s15] sm:$0x1]
    %17 = vrot.lane.b32.xlu0 %v16, 16
    %v18 = vpop.permute.xlu0 %17
    %vm19 = vcmask 195712
    %20 = vst.msk [vmem:[#allocation0] sm:$0x1] %vm19, %v18
    %s21 = scalar_lea.vmem [#allocation1], 1
    %v22 = vld [vmem:[%s21] sm:$0x1]
    %23 = vrot.lane.b32.xlu0 %v22, 8
    %v24 = vpop.permute.xlu0 %23
    %vm25 = vcmask 130112
    %26 = vst.msk [vmem:[#allocation0] sm:$0x1] %vm25, %v24
    %s28 = sshllo.u32 0, 1
    %v30 = vld [vmem:[#allocation0] sm:%s28]
    %s31 = sshllo.u32 0, 1
    %32 = vst [vmem:[%s1] sm:%s31] %v30

// kernel: bottleneck_forward.1
$region0: #{bottleneck_forward.1}
  #allocation0 [shape = 'u32[]', space=smem, size = 0x4, offset = 0x4, fixed_abs, tag = 'smem constant byte address 0x4 - core index']
  #allocation1 [shape = 'u32[144,128]{1,0:T(1,128)}', space=vmem, size = 0x12000, scoped, tag = 'internal scratch']
  #allocation2 [shape = 'bf16[192,128]{1,0:T(16,128)(2,1)}', space=vmem, size = 0xc000, scoped, tag = 'scratch operand']
  %s0 = inlined_call_operand.vmem [shape: f32[2,192,64], index: 0, kind: input, shape index: {}]
  %s1 = inlined_call_operand.vmem [shape: f32[192,32], index: 1, kind: input, shape index: {}]
  %s2 = inlined_call_operand.vmem [shape: bf16[64,64], index: 2, kind: input, shape index: {}]
  %s3 = inlined_call_operand.vmem [shape: bf16[160,32], index: 3, kind: input, shape index: {}]
  %s4 = inlined_call_operand.vmem [shape: bf16[1152,64], index: 4, kind: input, shape index: {}]
  %s5 = inlined_call_operand.vmem [shape: bf16[64,64], index: 5, kind: input, shape index: {}]
  %s6 = inlined_call_operand.vmem [shape: f32[8,64], index: 6, kind: input, shape index: {}]
  %s7 = inlined_call_operand.vmem [shape: f32[2,128,64], index: 7, kind: output, shape index: {}]
  %s8 = sld [smem:[#allocation0]]
  $region61: #{bottleneck_forward.1} parent=0
    _
  %s10 = ssub.s32 1, %s8
  %s11 = scalar_select 0, %s10, %s8
  loop: start=0, step=1, limit=4
  $region2: #{bottleneck_forward.1} parent=0 // loop_pre_header
    _
  $region3: #{bottleneck_forward.1} parent=0 // loop_header
    %s13 = sphi 0, %s17
    %p14 = scmp.ge.s32.totalorder %s13, 4
    %s23 = sphi 0, %s25
    %s26 = sphi 0, %s23
    %s27 = sphi 0, %s26
    %s43 = sphi 0, %s27
    %s47 = sphi 0, %s47
    %s49 = sphi 0, %s47
    %s50 = sphi 0, %s49
    %s64 = sphi 0, %s50
    %s68 = sphi 0, %s68
    %s70 = sphi 0, %s68
    %s71 = sphi 0, %s70
    %s85 = sphi 0, %s71
    %s89 = sphi 0, %s89
    %s91 = sphi 0, %s89
    %s92 = sphi 0, %s91
    %s106 = sphi 0, %s92
    %s110 = sphi 0, %s110
    %s112 = sphi 0, %s110
    %s113 = sphi 0, %s112
    %s127 = sphi 0, %s113
    %s131 = sphi 0, %s131
    %s133 = sphi 0, %s131
    %s134 = sphi 0, %s133
    %s148 = sphi 0, %s134
    %s152 = sphi 0, %s152
    %s154 = sphi 0, %s152
    %s155 = sphi 0, %s154
    %s169 = sphi 0, %s155
    %s175 = sphi 0, %s177
    %s178 = sphi 0, %s175
    %s179 = sphi 0, %s178
    %s195 = sphi 0, %s179
  $region4: #{bottleneck_forward.1} parent=0 // loop_header_branch
    %16 = sbr.rel (%p14) target = $region8
  $region5: #{bottleneck_forward.1} parent=0 // loop_body
    %s18 = ssub.s32 %s13, 1
    %s19 = ssub.s32 %s13, 2
    %s20 = sadd.s32 %s13, 1
    %s21 = ssub.s32 %s13, %s20
    %p22 = scmp.eq.s32.totalorder %s21, 0
    %s24 = sadd.s32 %s23, 1
    %s25 = scalar_select %p22, %s23, %s24
    %p28 = pneg %p22
    %p29 = scmp.eq.s32.totalorder %s13, 1
    %p30 = por %p28, %p29
    %p31 = scmp.ne.s32.totalorder %s23, %s26
    %p32 = scmp.eq.s32.totalorder %s13, 0
    %p33 = por %p31, %p32
    %p34 = scmp.ne.s32.totalorder %s23, %s26
    %p35 = scmp.eq.s32.totalorder %s18, 1
    %p36 = por %p34, %p35
    %p37 = scmp.ne.s32.totalorder %s26, %s27
    %p38 = scmp.eq.s32.totalorder %s18, 0
    %p39 = por %p37, %p38
    %p40 = scmp.ne.s32.totalorder %s26, %s27
    %p41 = scmp.eq.s32.totalorder %s19, 1
    %p42 = por %p40, %p41
    %p44 = scmp.ne.s32.totalorder %s27, %s43
    %p45 = scmp.eq.s32.totalorder %s19, 0
    %p46 = por %p44, %p45
    %s48 = sadd.s32 %s47, 1
    %p51 = scmp.eq.s32.totalorder %s13, 1
    %p52 = scmp.ne.s32.totalorder %s47, %s49
    %p53 = scmp.eq.s32.totalorder %s13, 0
    %p54 = por %p52, %p53
    %p55 = scmp.ne.s32.totalorder %s47, %s49
    %p56 = scmp.eq.s32.totalorder %s18, 1
    %p57 = por %p55, %p56
    %p58 = scmp.ne.s32.totalorder %s49, %s50
    %p59 = scmp.eq.s32.totalorder %s18, 0
    %p60 = por %p58, %p59
    %p61 = scmp.ne.s32.totalorder %s49, %s50
    %p62 = scmp.eq.s32.totalorder %s19, 1
    %p63 = por %p61, %p62
    %p65 = scmp.ne.s32.totalorder %s50, %s64
    %p66 = scmp.eq.s32.totalorder %s19, 0
    %p67 = por %p65, %p66
    %s69 = sadd.s32 %s68, 1
    %p72 = scmp.eq.s32.totalorder %s13, 1
    %p73 = scmp.ne.s32.totalorder %s68, %s70
    %p74 = scmp.eq.s32.totalorder %s13, 0
    %p75 = por %p73, %p74
    %p76 = scmp.ne.s32.totalorder %s68, %s70
    %p77 = scmp.eq.s32.totalorder %s18, 1
    %p78 = por %p76, %p77
    %p79 = scmp.ne.s32.totalorder %s70, %s71
    %p80 = scmp.eq.s32.totalorder %s18, 0
    %p81 = por %p79, %p80
    %p82 = scmp.ne.s32.totalorder %s70, %s71
    %p83 = scmp.eq.s32.totalorder %s19, 1
    %p84 = por %p82, %p83
    %p86 = scmp.ne.s32.totalorder %s71, %s85
    %p87 = scmp.eq.s32.totalorder %s19, 0
    %p88 = por %p86, %p87
    %s90 = sadd.s32 %s89, 1
    %p93 = scmp.eq.s32.totalorder %s13, 1
    %p94 = scmp.ne.s32.totalorder %s89, %s91
    %p95 = scmp.eq.s32.totalorder %s13, 0
    %p96 = por %p94, %p95
    %p97 = scmp.ne.s32.totalorder %s89, %s91
    %p98 = scmp.eq.s32.totalorder %s18, 1
    %p99 = por %p97, %p98
    %p100 = scmp.ne.s32.totalorder %s91, %s92
    %p101 = scmp.eq.s32.totalorder %s18, 0
    %p102 = por %p100, %p101
    %p103 = scmp.ne.s32.totalorder %s91, %s92
    %p104 = scmp.eq.s32.totalorder %s19, 1
    %p105 = por %p103, %p104
    %p107 = scmp.ne.s32.totalorder %s92, %s106
    %p108 = scmp.eq.s32.totalorder %s19, 0
    %p109 = por %p107, %p108
    %s111 = sadd.s32 %s110, 1
    %p114 = scmp.eq.s32.totalorder %s13, 1
    %p115 = scmp.ne.s32.totalorder %s110, %s112
    %p116 = scmp.eq.s32.totalorder %s13, 0
    %p117 = por %p115, %p116
    %p118 = scmp.ne.s32.totalorder %s110, %s112
    %p119 = scmp.eq.s32.totalorder %s18, 1
    %p120 = por %p118, %p119
    %p121 = scmp.ne.s32.totalorder %s112, %s113
    %p122 = scmp.eq.s32.totalorder %s18, 0
    %p123 = por %p121, %p122
    %p124 = scmp.ne.s32.totalorder %s112, %s113
    %p125 = scmp.eq.s32.totalorder %s19, 1
    %p126 = por %p124, %p125
    %p128 = scmp.ne.s32.totalorder %s113, %s127
    %p129 = scmp.eq.s32.totalorder %s19, 0
    %p130 = por %p128, %p129
    %s132 = sadd.s32 %s131, 1
    %p135 = scmp.eq.s32.totalorder %s13, 1
    %p136 = scmp.ne.s32.totalorder %s131, %s133
    %p137 = scmp.eq.s32.totalorder %s13, 0
    %p138 = por %p136, %p137
    %p139 = scmp.ne.s32.totalorder %s131, %s133
    %p140 = scmp.eq.s32.totalorder %s18, 1
    %p141 = por %p139, %p140
    %p142 = scmp.ne.s32.totalorder %s133, %s134
    %p143 = scmp.eq.s32.totalorder %s18, 0
    %p144 = por %p142, %p143
    %p145 = scmp.ne.s32.totalorder %s133, %s134
    %p146 = scmp.eq.s32.totalorder %s19, 1
    %p147 = por %p145, %p146
    %p149 = scmp.ne.s32.totalorder %s134, %s148
    %p150 = scmp.eq.s32.totalorder %s19, 0
    %p151 = por %p149, %p150
    %s153 = sadd.s32 %s152, 1
    %p156 = scmp.eq.s32.totalorder %s13, 1
    %p157 = scmp.ne.s32.totalorder %s152, %s154
    %p158 = scmp.eq.s32.totalorder %s13, 0
    %p159 = por %p157, %p158
    %p160 = scmp.ne.s32.totalorder %s152, %s154
    %p161 = scmp.eq.s32.totalorder %s18, 1
    %p162 = por %p160, %p161
    %p163 = scmp.ne.s32.totalorder %s154, %s155
    %p164 = scmp.eq.s32.totalorder %s18, 0
    %p165 = por %p163, %p164
    %p166 = scmp.ne.s32.totalorder %s154, %s155
    %p167 = scmp.eq.s32.totalorder %s19, 1
    %p168 = por %p166, %p167
    %p170 = scmp.ne.s32.totalorder %s155, %s169
    %p171 = scmp.eq.s32.totalorder %s19, 0
    %p172 = por %p170, %p171
    %s173 = ssub.s32 %s13, %s20
    %p174 = scmp.eq.s32.totalorder %s173, 0
    %s176 = sadd.s32 %s175, 1
    %s177 = scalar_select %p174, %s175, %s176
    %p180 = pneg %p174
    %p181 = scmp.eq.s32.totalorder %s13, 1
    %p182 = por %p180, %p181
    %p183 = scmp.ne.s32.totalorder %s175, %s178
    %p184 = scmp.eq.s32.totalorder %s13, 0
    %p185 = por %p183, %p184
    %p186 = scmp.ne.s32.totalorder %s175, %s178
    %p187 = scmp.eq.s32.totalorder %s18, 1
    %p188 = por %p186, %p187
    %p189 = scmp.ne.s32.totalorder %s178, %s179
    %p190 = scmp.eq.s32.totalorder %s18, 0
    %p191 = por %p189, %p190
    %p192 = scmp.ne.s32.totalorder %s178, %s179
    %p193 = scmp.eq.s32.totalorder %s19, 1
    %p194 = por %p192, %p193
    %p196 = scmp.ne.s32.totalorder %s179, %s195
    %p197 = scmp.eq.s32.totalorder %s19, 0
    %p198 = por %p196, %p197
    %p199 = scmp.le.s32.totalorder 1, %s13
    %p200 = scmp.lt.s32.totalorder %s13, 3
    %p201 = pnand %p199, %p200
    %p202 = pneg %p201
    // Predicated region
    $region9: #{bottleneck_forward.1} parent=5 // pred_check
      _
    $region10: #{bottleneck_forward.1} parent=5 // pred_check_branch
      %204 = sbr.rel (%p201) target = $region12
    $region11: #{bottleneck_forward.1} parent=5 // pred_region
      %s205 = ssub.s32 %s13, 1
      // Predicated region
      $region13: #{bottleneck_forward.1} parent=11 // pred_check
        %p206 = pneg %p60
      $region14: #{bottleneck_forward.1} parent=11 // pred_check_branch
        %208 = sbr.rel (%p206) target = $region16
      $region15: #{bottleneck_forward.1} parent=11 // pred_region
        _
      $region16: #{bottleneck_forward.1} parent=11 // pred_fallthru
        _
      // Predicated region
      $region17: #{bottleneck_forward.1} parent=11 // pred_check
        %p209 = pneg %p81
      $region18: #{bottleneck_forward.1} parent=11 // pred_check_branch
        %211 = sbr.rel (%p209) target = $region20
      $region19: #{bottleneck_forward.1} parent=11 // pred_region
        _
      $region20: #{bottleneck_forward.1} parent=11 // pred_fallthru
        _
      // Predicated region
      $region21: #{bottleneck_forward.1} parent=11 // pred_check
        %p212 = pneg %p102
      $region22: #{bottleneck_forward.1} parent=11 // pred_check_branch
        %214 = sbr.rel (%p212) target = $region24
      $region23: #{bottleneck_forward.1} parent=11 // pred_region
        _
      $region24: #{bottleneck_forward.1} parent=11 // pred_fallthru
        _
      // Predicated region
      $region25: #{bottleneck_forward.1} parent=11 // pred_check
        %p215 = pneg %p123
      $region26: #{bottleneck_forward.1} parent=11 // pred_check_branch
        %217 = sbr.rel (%p215) target = $region28
      $region27: #{bottleneck_forward.1} parent=11 // pred_region
        _
      $region28: #{bottleneck_forward.1} parent=11 // pred_fallthru
        _
      // Predicated region
      $region29: #{bottleneck_forward.1} parent=11 // pred_check
        %p218 = pneg %p144
      $region30: #{bottleneck_forward.1} parent=11 // pred_check_branch
        %220 = sbr.rel (%p218) target = $region32
      $region31: #{bottleneck_forward.1} parent=11 // pred_region
        _
      $region32: #{bottleneck_forward.1} parent=11 // pred_fallthru
        _
      // Predicated region
      $region33: #{bottleneck_forward.1} parent=11 // pred_check
        %p221 = pneg %p165
      $region34: #{bottleneck_forward.1} parent=11 // pred_check_branch
        %223 = sbr.rel (%p221) target = $region36
      $region35: #{bottleneck_forward.1} parent=11 // pred_region
        _
      $region36: #{bottleneck_forward.1} parent=11 // pred_fallthru
        _
    $region12: #{bottleneck_forward.1} parent=5 // pred_fallthru
      _
    %p224 = scmp.lt.s32.totalorder %s13, 2
    // Predicated region
    $region37: #{bottleneck_forward.1} parent=5 // pred_check
      %p225 = pneg %p224
    $region38: #{bottleneck_forward.1} parent=5 // pred_check_branch
      %227 = sbr.rel (%p225) target = $region40
    $region39: #{bottleneck_forward.1} parent=5 // pred_region
      // Predicated region
      $region41: #{bottleneck_forward.1} parent=39 // pred_check
        %p228 = pneg %p33
      $region42: #{bottleneck_forward.1} parent=39 // pred_check_branch
        %230 = sbr.rel (%p228) target = $region44
      $region43: #{bottleneck_forward.1} parent=39 // pred_region
        %p231 = scmp.lt.s32.totalorder %s13, 1
        %s232 = scalar_select %p231, %s13, 1
        %s233 = smul.addr %s232, 24
        %s234 = smul.addr %s233, 8
        %s235 = scalar_lea.vmem %s0, %s234
      $region44: #{bottleneck_forward.1} parent=39 // pred_fallthru
        _
    $region40: #{bottleneck_forward.1} parent=5 // pred_fallthru
      _
    %p236 = scmp.le.s32.totalorder 1, %s13
    %p237 = scmp.lt.s32.totalorder %s13, 3
    %p238 = pnand %p236, %p237
    %p239 = pneg %p238
    // Predicated region
    $region45: #{bottleneck_forward.1} parent=5 // pred_check
      _
    $region46: #{bottleneck_forward.1} parent=5 // pred_check_branch
      %241 = sbr.rel (%p238) target = $region48
    $region47: #{bottleneck_forward.1} parent=5 // pred_region
      %s242 = ssub.s32 %s13, 1
      %p243 = scmp.lt.s32.totalorder %s18, 1
      %s244 = scalar_select %p243, %s18, 1
      %s245 = smul.addr %s244, 24
      %s246 = smul.addr %s245, 8
      %s247 = scalar_lea.vmem %s0, %s246
      %p248 = pneg %p39
      %p249 = pneg %p36
      %p250 = pneg %p60
      %p251 = pneg %p57
      %p252 = pneg %p81
      %p253 = pneg %p78
      %p254 = pneg %p102
      %p255 = pneg %p99
      %p256 = pneg %p123
      %p257 = pneg %p120
      %p258 = pneg %p144
      %p259 = pneg %p141
      %p260 = pneg %p165
      %p261 = pneg %p162
      %p262 = pneg %p191
      %p263 = pneg %p188
      %p264 = scmp.lt.s32.totalorder %s18, 1
      %s265 = scalar_select %p264, %s18, 1
      %s266 = smul.addr %s265, 16
      %s267 = smul.addr %s266, 8
      %s268 = scalar_lea.vmem %s7, %s267
      %p269 = scmp.lt.s32.totalorder %s18, 1
      %s270 = scalar_select %p269, %s18, 1
      %s271 = smul.addr %s270, 24
      %s272 = smul.addr %s271, 8
      %s273 = scalar_lea.vmem %s0, %s272
      %p274 = scmp.lt.s32.totalorder %s18, 1
      %s275 = scalar_select %p274, %s18, 1
      %s276 = smul.addr %s275, 16
      %s277 = smul.addr %s276, 8
      %s278 = scalar_lea.vmem %s7, %s277
      %v280 = vld [vmem:[%s273] sm:$0xff]
      %v281 = vld [vmem:[%s273 + $0x8] sm:$0xff]
      %v282 = vld [vmem:[%s273 + $0x10] sm:$0xff]
      %v283 = vld [vmem:[%s273 + $0x18] sm:$0xff]
      %v284 = vld [vmem:[%s273 + $0x20] sm:$0xff]
      %v285 = vld [vmem:[%s273 + $0x28] sm:$0xff]
      %v286 = vld [vmem:[%s273 + $0x30] sm:$0xff]
      %v287 = vld [vmem:[%s273 + $0x38] sm:$0xff]
      %v288 = vld [vmem:[%s273 + $0x40] sm:$0xff]
      %v289 = vld [vmem:[%s273 + $0x48] sm:$0xff]
      %v290 = vld [vmem:[%s273 + $0x50] sm:$0xff]
      %v291 = vld [vmem:[%s273 + $0x58] sm:$0xff]
      %v292 = vld [vmem:[%s273 + $0x60] sm:$0xff]
      %v293 = vld [vmem:[%s273 + $0x68] sm:$0xff]
      %v294 = vld [vmem:[%s273 + $0x70] sm:$0xff]
      %v295 = vld [vmem:[%s273 + $0x78] sm:$0xff]
      %v296 = vld [vmem:[%s273 + $0x80] sm:$0xff]
      %v297 = vld [vmem:[%s273 + $0x88] sm:$0xff]
      %v298 = vld [vmem:[%s273 + $0x90] sm:$0xff]
      %v299 = vld [vmem:[%s273 + $0x98] sm:$0xff]
      %v300 = vld [vmem:[%s273 + $0xa0] sm:$0xff]
      %v301 = vld [vmem:[%s273 + $0xa8] sm:$0xff]
      %v302 = vld [vmem:[%s273 + $0xb0] sm:$0xff]
      %v303 = vld [vmem:[%s273 + $0xb8] sm:$0xff]
      %v304 = vld [vmem:[%s1] sm:$0xff]
      %v305 = vld [vmem:[%s1 + $0x8] sm:$0xff]
      %v306 = vld [vmem:[%s1 + $0x10] sm:$0xff]
      %v307 = vld [vmem:[%s1 + $0x18] sm:$0xff]
      %v308 = vld [vmem:[%s1 + $0x20] sm:$0xff]
      %v309 = vld [vmem:[%s1 + $0x28] sm:$0xff]
      %v310 = vld [vmem:[%s1 + $0x30] sm:$0xff]
      %v311 = vld [vmem:[%s1 + $0x38] sm:$0xff]
      %v312 = vld [vmem:[%s1 + $0x40] sm:$0xff]
      %v313 = vld [vmem:[%s1 + $0x48] sm:$0xff]
      %v314 = vld [vmem:[%s1 + $0x50] sm:$0xff]
      %v315 = vld [vmem:[%s1 + $0x58] sm:$0xff]
      %v316 = vld [vmem:[%s1 + $0x60] sm:$0xff]
      %v317 = vld [vmem:[%s1 + $0x68] sm:$0xff]
      %v318 = vld [vmem:[%s1 + $0x70] sm:$0xff]
      %v319 = vld [vmem:[%s1 + $0x78] sm:$0xff]
      %v320 = vld [vmem:[%s1 + $0x80] sm:$0xff]
      %v321 = vld [vmem:[%s1 + $0x88] sm:$0xff]
      %v322 = vld [vmem:[%s1 + $0x90] sm:$0xff]
      %v323 = vld [vmem:[%s1 + $0x98] sm:$0xff]
      %v324 = vld [vmem:[%s1 + $0xa0] sm:$0xff]
      %v325 = vld [vmem:[%s1 + $0xa8] sm:$0xff]
      %v326 = vld [vmem:[%s1 + $0xb0] sm:$0xff]
      %v327 = vld [vmem:[%s1 + $0xb8] sm:$0xff]
      %v328 = vld [vmem:[%s2] sm:$0xf]
      %v329 = vld [vmem:[%s2 + $0x4] sm:$0xf]
      %v330 = vld [vmem:[%s2 + $0x8] sm:$0xf]
      %v331 = vld [vmem:[%s2 + $0xc] sm:$0xf]
      %v332 = vld [vmem:[%s2 + $0x10] sm:$0xf]
      %v333 = vld [vmem:[%s2 + $0x14] sm:$0xf]
      %v334 = vld [vmem:[%s2 + $0x18] sm:$0xf]
      %v335 = vld [vmem:[%s2 + $0x1c] sm:$0xf]
      %v336 = vld [vmem:[%s6] sm:$0x1]
      %v337 = vpack.c.bf16 %v281, %v280
      %v338 = vpack.c.bf16 %v283, %v282
      %v339 = vpack.c.bf16 %v285, %v284
      %v340 = vpack.c.bf16 %v287, %v286
      %v341 = vpack.c.bf16 %v289, %v288
      %v342 = vpack.c.bf16 %v291, %v290
      %v343 = vpack.c.bf16 %v293, %v292
      %v344 = vpack.c.bf16 %v295, %v294
      %v345 = vpack.c.bf16 %v297, %v296
      %v346 = vpack.c.bf16 %v299, %v298
      %v347 = vpack.c.bf16 %v301, %v300
      %v348 = vpack.c.bf16 %v303, %v302
      %v349 = vlaneseq
      %v350 = vshrl.u32 %v349, 7
      %v351 = vsub.s32 0, %v350
      %v352 = vrot.slane %v336, %v351
      %v361 = vunpack.c.l.b16 %v328
      %v362 = vunpack.c.l.b16 %v329
      %v363 = vunpack.c.l.b16 %v330
      %v364 = vunpack.c.l.b16 %v331
      %v365 = vunpack.c.l.b16 %v332
      %v366 = vunpack.c.l.b16 %v333
      %v367 = vunpack.c.l.b16 %v334
      %v368 = vunpack.c.l.b16 %v335
      %v369 = vpack.c.b16 %v362, %v361
      %v370 = vpack.c.b16 %v364, %v363
      %v371 = vpack.c.b16 %v366, %v365
      %v372 = vpack.c.b16 %v368, %v367
      %vm377 = vcmask 523264
      %v379 = vsel %vm377, %v337, 0
      %v382 = vsel %vm377, %v338, 0
      %v385 = vsel %vm377, %v339, 0
      %v388 = vsel %vm377, %v340, 0
      %v391 = vsel %vm377, %v341, 0
      %v394 = vsel %vm377, %v342, 0
      %v397 = vsel %vm377, %v343, 0
      %v400 = vsel %vm377, %v344, 0
      %v403 = vsel %vm377, %v345, 0
      %v406 = vsel %vm377, %v346, 0
      %v409 = vsel %vm377, %v347, 0
      %v412 = vsel %vm377, %v348, 0
      %414 = vmatprep.subr.bf16.mxu0 0
      %415 = vmatpush1.bf16.msra.mxu0 %v369
      %416 = vmatprep.subr.bf16.mxu0 0
      %417 = vmatpush1.bf16.msra.mxu0 %v370
      %418 = vmatprep.subr.bf16.mxu0 0
      %419 = vmatpush1.bf16.msra.mxu0 %v371
      %420 = vmatprep.subr.bf16.mxu0 0
      %421 = vmatpush1.bf16.msra.mxu0 %v372
      %422 = vmatprep.subr.bf16.mxu0 0
      %423 = vmatpush1.bf16.msra.mxu0 0
      %424 = vmatprep.subr.bf16.mxu0 0
      %425 = vmatpush1.bf16.msra.mxu0 0
      %426 = vmatprep.subr.bf16.mxu0 0
      %427 = vmatpush1.bf16.msra.mxu0 0
      %428 = vmatprep.subr.bf16.mxu0 0
      %429 = vmatpush1.bf16.msra.mxu0 0
      %430 = vmatprep.subr.bf16.mxu0 0
      %431 = vmatpush1.bf16.msra.mxu0 0
      %432 = vmatprep.subr.bf16.mxu0 0
      %433 = vmatpush1.bf16.msra.mxu0 0
      %434 = vmatprep.subr.bf16.mxu0 0
      %435 = vmatpush1.bf16.msra.mxu0 0
      %436 = vmatprep.subr.bf16.mxu0 0
      %437 = vmatpush1.bf16.msra.mxu0 0
      %438 = vmatprep.subr.bf16.mxu0 0
      %439 = vmatpush1.bf16.msra.mxu0 0
      %440 = vmatprep.subr.bf16.mxu0 0
      %441 = vmatpush1.bf16.msra.mxu0 0
      %442 = vmatprep.subr.bf16.mxu0 0
      %443 = vmatpush1.bf16.msra.mxu0 0
      %444 = vmatprep.subr.bf16.mxu0 0
      %445 = vmatpush1.bf16.msra.mxu0 0
      %446 = vmatprep.mubr.bf16.mxu0 0
      %447 = vmatmul.mubr.bf16.gmra.mrb[0].mxu0 %v379
      %v448 = vpop.f32.mrb[0].mxu0
      %v449 = vadd.f32 %v352, %v448
      %v450 = vpop.f32.mrb[0].mxu0
      %v451 = vpop.f32.mrb[0].mxu0
      %v452 = vadd.f32 %v352, %v451
      %v453 = vpop.f32.mrb[0].mxu0
      %454 = vmatprep.mubr.bf16.mxu0 0
      %455 = vmatmul.mubr.bf16.gmra.mrb[0].mxu0 %v382
      %v456 = vpop.f32.mrb[0].mxu0
      %v457 = vadd.f32 %v352, %v456
      %v458 = vpop.f32.mrb[0].mxu0
      %v459 = vpop.f32.mrb[0].mxu0
      %v460 = vadd.f32 %v352, %v459
      %v461 = vpop.f32.mrb[0].mxu0
      %462 = vmatprep.mubr.bf16.mxu0 0
      %463 = vmatmul.mubr.bf16.gmra.mrb[0].mxu0 %v385
      %v464 = vpop.f32.mrb[0].mxu0
      %v465 = vadd.f32 %v352, %v464
      %v466 = vpop.f32.mrb[0].mxu0
      %v467 = vpop.f32.mrb[0].mxu0
      %v468 = vadd.f32 %v352, %v467
      %v469 = vpop.f32.mrb[0].mxu0
      %470 = vmatprep.mubr.bf16.mxu0 0
      %471 = vmatmul.mubr.bf16.gmra.mrb[0].mxu0 %v388
      %v472 = vpop.f32.mrb[0].mxu0
      %v473 = vadd.f32 %v352, %v472
      %v474 = vpop.f32.mrb[0].mxu0
      %v475 = vpop.f32.mrb[0].mxu0
      %v476 = vadd.f32 %v352, %v475
      %v477 = vpop.f32.mrb[0].mxu0
      %478 = vmatprep.mubr.bf16.mxu0 0
      %479 = vmatmul.mubr.bf16.gmra.mrb[0].mxu0 %v391
      %v480 = vpop.f32.mrb[0].mxu0
      %v481 = vadd.f32 %v352, %v480
      %v482 = vpop.f32.mrb[0].mxu0
      %v483 = vpop.f32.mrb[0].mxu0
      %v484 = vadd.f32 %v352, %v483
      %v485 = vpop.f32.mrb[0].mxu0
      %486 = vmatprep.mubr.bf16.mxu0 0
      %487 = vmatmul.mubr.bf16.gmra.mrb[0].mxu0 %v394
      %v488 = vpop.f32.mrb[0].mxu0
      %v489 = vadd.f32 %v352, %v488
      %v490 = vpop.f32.mrb[0].mxu0
      %v491 = vpop.f32.mrb[0].mxu0
      %v492 = vadd.f32 %v352, %v491
      %v493 = vpop.f32.mrb[0].mxu0
      %494 = vmatprep.mubr.bf16.mxu0 0
      %495 = vmatmul.mubr.bf16.gmra.mrb[0].mxu0 %v397
      %v496 = vpop.f32.mrb[0].mxu0
      %v497 = vadd.f32 %v352, %v496
      %v498 = vpop.f32.mrb[0].mxu0
      %v499 = vpop.f32.mrb[0].mxu0
      %v500 = vadd.f32 %v352, %v499
      %v501 = vpop.f32.mrb[0].mxu0
      %502 = vmatprep.mubr.bf16.mxu0 0
      %503 = vmatmul.mubr.bf16.gmra.mrb[0].mxu0 %v400
      %v504 = vpop.f32.mrb[0].mxu0
      %v505 = vadd.f32 %v352, %v504
      %v506 = vpop.f32.mrb[0].mxu0
      %v507 = vpop.f32.mrb[0].mxu0
      %v508 = vadd.f32 %v352, %v507
      %v509 = vpop.f32.mrb[0].mxu0
      %510 = vmatprep.mubr.bf16.mxu0 0
      %511 = vmatmul.mubr.bf16.gmra.mrb[0].mxu0 %v403
      %v512 = vpop.f32.mrb[0].mxu0
      %v513 = vadd.f32 %v352, %v512
      %v514 = vpop.f32.mrb[0].mxu0
      %v515 = vpop.f32.mrb[0].mxu0
      %v516 = vadd.f32 %v352, %v515
      %v517 = vpop.f32.mrb[0].mxu0
      %518 = vmatprep.mubr.bf16.mxu0 0
      %519 = vmatmul.mubr.bf16.gmra.mrb[0].mxu0 %v406
      %v520 = vpop.f32.mrb[0].mxu0
      %v521 = vadd.f32 %v352, %v520
      %v522 = vpop.f32.mrb[0].mxu0
      %v523 = vpop.f32.mrb[0].mxu0
      %v524 = vadd.f32 %v352, %v523
      %v525 = vpop.f32.mrb[0].mxu0
      %526 = vmatprep.mubr.bf16.mxu0 0
      %527 = vmatmul.mubr.bf16.gmra.mrb[0].mxu0 %v409
      %v528 = vpop.f32.mrb[0].mxu0
      %v529 = vadd.f32 %v352, %v528
      %v530 = vpop.f32.mrb[0].mxu0
      %v531 = vpop.f32.mrb[0].mxu0
      %v532 = vadd.f32 %v352, %v531
      %v533 = vpop.f32.mrb[0].mxu0
      %534 = vmatprep.mubr.bf16.mxu0 0
      %535 = vmatmul.mubr.bf16.gmra.mrb[0].mxu0 %v412
      %v536 = vpop.f32.mrb[0].mxu0
      %v537 = vadd.f32 %v352, %v536
      %v538 = vpop.f32.mrb[0].mxu0
      %v539 = vpop.f32.mrb[0].mxu0
      %v540 = vadd.f32 %v352, %v539
      %v541 = vpop.f32.mrb[0].mxu0
      %542 = vdwg.mxu0
      %v543 = vmax.f32 %v449, 0.0
      %v544 = vmax.f32 %v452, 0.0
      %v545 = vmax.f32 %v457, 0.0
      %v546 = vmax.f32 %v460, 0.0
      %v547 = vmax.f32 %v465, 0.0
      %v548 = vmax.f32 %v468, 0.0
      %v549 = vmax.f32 %v473, 0.0
      %v550 = vmax.f32 %v476, 0.0
      %v551 = vmax.f32 %v481, 0.0
      %v552 = vmax.f32 %v484, 0.0
      %v553 = vmax.f32 %v489, 0.0
      %v554 = vmax.f32 %v492, 0.0
      %v555 = vmax.f32 %v497, 0.0
      %v556 = vmax.f32 %v500, 0.0
      %v557 = vmax.f32 %v505, 0.0
      %v558 = vmax.f32 %v508, 0.0
      %v559 = vmax.f32 %v513, 0.0
      %v560 = vmax.f32 %v516, 0.0
      %v561 = vmax.f32 %v521, 0.0
      %v562 = vmax.f32 %v524, 0.0
      %v563 = vmax.f32 %v529, 0.0
      %v564 = vmax.f32 %v532, 0.0
      %v565 = vmax.f32 %v537, 0.0
      %v566 = vmax.f32 %v540, 0.0
      %v567 = vld [vmem:[%s3] sm:$0xf]
      %v568 = vld [vmem:[%s3 + $0x4] sm:$0xf]
      %v569 = vld [vmem:[%s3 + $0x8] sm:$0xf]
      %v570 = vld [vmem:[%s3 + $0xc] sm:$0xf]
      %v571 = vld [vmem:[%s3 + $0x10] sm:$0xf]
      %v572 = vld [vmem:[%s3 + $0x14] sm:$0xf]
      %v573 = vld [vmem:[%s3 + $0x18] sm:$0xf]
      %v574 = vld [vmem:[%s3 + $0x1c] sm:$0xf]
      %v575 = vld [vmem:[%s6 + $0x1] sm:$0x1]
      %v576 = vpack.c.bf16 %v544, %v543
      %v577 = vpack.c.bf16 %v546, %v545
      %v578 = vpack.c.bf16 %v548, %v547
      %v579 = vpack.c.bf16 %v550, %v549
      %v580 = vpack.c.bf16 %v552, %v551
      %v581 = vpack.c.bf16 %v554, %v553
      %v582 = vpack.c.bf16 %v556, %v555
      %v583 = vpack.c.bf16 %v558, %v557
      %v584 = vpack.c.bf16 %v560, %v559
      %v585 = vpack.c.bf16 %v562, %v561
      %v586 = vpack.c.bf16 %v564, %v563
      %v587 = vpack.c.bf16 %v566, %v565
      %v588 = vlaneseq
      %v589 = vshrl.u32 %v588, 7
      %v590 = vsub.s32 0, %v589
      %v591 = vrot.slane %v575, %v590
      %v600 = vunpack.c.l.b16 %v567
      %v601 = vunpack.c.l.b16 %v568
      %v602 = vunpack.c.l.b16 %v569
      %v603 = vunpack.c.l.b16 %v570
      %v604 = vunpack.c.l.b16 %v571
      %v605 = vunpack.c.l.b16 %v572
      %v606 = vunpack.c.l.b16 %v573
      %v607 = vunpack.c.l.b16 %v574
      %v608 = vpack.c.b16 %v601, %v600
      %v609 = vpack.c.b16 %v603, %v602
      %v610 = vpack.c.b16 %v605, %v604
      %v611 = vpack.c.b16 %v607, %v606
      %v617 = vsel %vm377, %v576, 0
      %v620 = vsel %vm377, %v577, 0
      %v623 = vsel %vm377, %v578, 0
      %v626 = vsel %vm377, %v579, 0
      %v629 = vsel %vm377, %v580, 0
      %v632 = vsel %vm377, %v581, 0
      %v635 = vsel %vm377, %v582, 0
      %v638 = vsel %vm377, %v583, 0
      %v641 = vsel %vm377, %v584, 0
      %v644 = vsel %vm377, %v585, 0
      %v647 = vsel %vm377, %v586, 0
      %v650 = vsel %vm377, %v587, 0
      %652 = vmatprep.subr.bf16.mxu0 0
      %653 = vmatpush1.bf16.msra.mxu0 %v608
      %654 = vmatprep.subr.bf16.mxu0 0
      %655 = vmatpush1.bf16.msra.mxu0 %v609
      %656 = vmatprep.subr.bf16.mxu0 0
      %657 = vmatpush1.bf16.msra.mxu0 %v610
      %658 = vmatprep.subr.bf16.mxu0 0
      %659 = vmatpush1.bf16.msra.mxu0 %v611
      %660 = vmatprep.subr.bf16.mxu0 0
      %661 = vmatpush1.bf16.msra.mxu0 0
      %662 = vmatprep.subr.bf16.mxu0 0
      %663 = vmatpush1.bf16.msra.mxu0 0
      %664 = vmatprep.subr.bf16.mxu0 0
      %665 = vmatpush1.bf16.msra.mxu0 0
      %666 = vmatprep.subr.bf16.mxu0 0
      %667 = vmatpush1.bf16.msra.mxu0 0
      %668 = vmatprep.subr.bf16.mxu0 0
      %669 = vmatpush1.bf16.msra.mxu0 0
      %670 = vmatprep.subr.bf16.mxu0 0
      %671 = vmatpush1.bf16.msra.mxu0 0
      %672 = vmatprep.subr.bf16.mxu0 0
      %673 = vmatpush1.bf16.msra.mxu0 0
      %674 = vmatprep.subr.bf16.mxu0 0
      %675 = vmatpush1.bf16.msra.mxu0 0
      %676 = vmatprep.subr.bf16.mxu0 0
      %677 = vmatpush1.bf16.msra.mxu0 0
      %678 = vmatprep.subr.bf16.mxu0 0
      %679 = vmatpush1.bf16.msra.mxu0 0
      %680 = vmatprep.subr.bf16.mxu0 0
      %681 = vmatpush1.bf16.msra.mxu0 0
      %682 = vmatprep.subr.bf16.mxu0 0
      %683 = vmatpush1.bf16.msra.mxu0 0
      %684 = vmatprep.mubr.bf16.mxu0 0
      %685 = vmatmul.mubr.bf16.gmra.mrb[0].mxu0 %v617
      %v686 = vpop.f32.mrb[0].mxu0
      %v687 = vadd.f32 %v591, %v686
      %v688 = vpop.f32.mrb[0].mxu0
      %v689 = vpop.f32.mrb[0].mxu0
      %v690 = vadd.f32 %v591, %v689
      %v691 = vpop.f32.mrb[0].mxu0
      %692 = vmatprep.mubr.bf16.mxu0 0
      %693 = vmatmul.mubr.bf16.gmra.mrb[0].mxu0 %v620
      %v694 = vpop.f32.mrb[0].mxu0
      %v695 = vadd.f32 %v591, %v694
      %v696 = vpop.f32.mrb[0].mxu0
      %v697 = vpop.f32.mrb[0].mxu0
      %v698 = vadd.f32 %v591, %v697
      %v699 = vpop.f32.mrb[0].mxu0
      %700 = vmatprep.mubr.bf16.mxu0 0
      %701 = vmatmul.mubr.bf16.gmra.mrb[0].mxu0 %v623
      %v702 = vpop.f32.mrb[0].mxu0
      %v703 = vadd.f32 %v591, %v702
      %v704 = vpop.f32.mrb[0].mxu0
      %v705 = vpop.f32.mrb[0].mxu0
      %v706 = vadd.f32 %v591, %v705
      %v707 = vpop.f32.mrb[0].mxu0
      %708 = vmatprep.mubr.bf16.mxu0 0
      %709 = vmatmul.mubr.bf16.gmra.mrb[0].mxu0 %v626
      %v710 = vpop.f32.mrb[0].mxu0
      %v711 = vadd.f32 %v591, %v710
      %v712 = vpop.f32.mrb[0].mxu0
      %v713 = vpop.f32.mrb[0].mxu0
      %v714 = vadd.f32 %v591, %v713
      %v715 = vpop.f32.mrb[0].mxu0
      %716 = vmatprep.mubr.bf16.mxu0 0
      %717 = vmatmul.mubr.bf16.gmra.mrb[0].mxu0 %v629
      %v718 = vpop.f32.mrb[0].mxu0
      %v719 = vadd.f32 %v591, %v718
      %v720 = vpop.f32.mrb[0].mxu0
      %v721 = vpop.f32.mrb[0].mxu0
      %v722 = vadd.f32 %v591, %v721
      %v723 = vpop.f32.mrb[0].mxu0
      %724 = vmatprep.mubr.bf16.mxu0 0
      %725 = vmatmul.mubr.bf16.gmra.mrb[0].mxu0 %v632
      %v726 = vpop.f32.mrb[0].mxu0
      %v727 = vadd.f32 %v591, %v726
      %v728 = vpop.f32.mrb[0].mxu0
      %v729 = vpop.f32.mrb[0].mxu0
      %v730 = vadd.f32 %v591, %v729
      %v731 = vpop.f32.mrb[0].mxu0
      %732 = vmatprep.mubr.bf16.mxu0 0
      %733 = vmatmul.mubr.bf16.gmra.mrb[0].mxu0 %v635
      %v734 = vpop.f32.mrb[0].mxu0
      %v735 = vadd.f32 %v591, %v734
      %v736 = vpop.f32.mrb[0].mxu0
      %v737 = vpop.f32.mrb[0].mxu0
      %v738 = vadd.f32 %v591, %v737
      %v739 = vpop.f32.mrb[0].mxu0
      %740 = vmatprep.mubr.bf16.mxu0 0
      %741 = vmatmul.mubr.bf16.gmra.mrb[0].mxu0 %v638
      %v742 = vpop.f32.mrb[0].mxu0
      %v743 = vadd.f32 %v591, %v742
      %v744 = vpop.f32.mrb[0].mxu0
      %v745 = vpop.f32.mrb[0].mxu0
      %v746 = vadd.f32 %v591, %v745
      %v747 = vpop.f32.mrb[0].mxu0
      %748 = vmatprep.mubr.bf16.mxu0 0
      %749 = vmatmul.mubr.bf16.gmra.mrb[0].mxu0 %v641
      %v750 = vpop.f32.mrb[0].mxu0
      %v751 = vadd.f32 %v591, %v750
      %v752 = vpop.f32.mrb[0].mxu0
      %v753 = vpop.f32.mrb[0].mxu0
      %v754 = vadd.f32 %v591, %v753
      %v755 = vpop.f32.mrb[0].mxu0
      %756 = vmatprep.mubr.bf16.mxu0 0
      %757 = vmatmul.mubr.bf16.gmra.mrb[0].mxu0 %v644
      %v758 = vpop.f32.mrb[0].mxu0
      %v759 = vadd.f32 %v591, %v758
      %v760 = vpop.f32.mrb[0].mxu0
      %v761 = vpop.f32.mrb[0].mxu0
      %v762 = vadd.f32 %v591, %v761
      %v763 = vpop.f32.mrb[0].mxu0
      %764 = vmatprep.mubr.bf16.mxu0 0
      %765 = vmatmul.mubr.bf16.gmra.mrb[0].mxu0 %v647
      %v766 = vpop.f32.mrb[0].mxu0
      %v767 = vadd.f32 %v591, %v766
      %v768 = vpop.f32.mrb[0].mxu0
      %v769 = vpop.f32.mrb[0].mxu0
      %v770 = vadd.f32 %v591, %v769
      %v771 = vpop.f32.mrb[0].mxu0
      %772 = vmatprep.mubr.bf16.mxu0 0
      %773 = vmatmul.mubr.bf16.gmra.mrb[0].mxu0 %v650
      %v774 = vpop.f32.mrb[0].mxu0
      %v775 = vadd.f32 %v591, %v774
      %v776 = vpop.f32.mrb[0].mxu0
      %v777 = vpop.f32.mrb[0].mxu0
      %v778 = vadd.f32 %v591, %v777
      %v779 = vpop.f32.mrb[0].mxu0
      %780 = vdwg.mxu0
      %v781 = vmax.f32 %v687, 0.0
      %v782 = vmax.f32 %v690, 0.0
      %v783 = vmax.f32 %v695, 0.0
      %v784 = vmax.f32 %v698, 0.0
      %v785 = vmax.f32 %v703, 0.0
      %v786 = vmax.f32 %v706, 0.0
      %v787 = vmax.f32 %v711, 0.0
      %v788 = vmax.f32 %v714, 0.0
      %v789 = vmax.f32 %v719, 0.0
      %v790 = vmax.f32 %v722, 0.0
      %v791 = vmax.f32 %v727, 0.0
      %v792 = vmax.f32 %v730, 0.0
      %v793 = vmax.f32 %v735, 0.0
      %v794 = vmax.f32 %v738, 0.0
      %v795 = vmax.f32 %v743, 0.0
      %v796 = vmax.f32 %v746, 0.0
      %v797 = vmax.f32 %v751, 0.0
      %v798 = vmax.f32 %v754, 0.0
      %v799 = vmax.f32 %v759, 0.0
      %v800 = vmax.f32 %v762, 0.0
      %v801 = vmax.f32 %v767, 0.0
      %v802 = vmax.f32 %v770, 0.0
      %v803 = vmax.f32 %v775, 0.0
      %v804 = vmax.f32 %v778, 0.0
      %v805 = vmul.f32 %v781, %v304
      %v806 = vmul.f32 %v782, %v305
      %v807 = vmul.f32 %v783, %v306
      %v808 = vmul.f32 %v784, %v307
      %v809 = vmul.f32 %v785, %v308
      %v810 = vmul.f32 %v786, %v309
      %v811 = vmul.f32 %v787, %v310
      %v812 = vmul.f32 %v788, %v311
      %v813 = vmul.f32 %v789, %v312
      %v814 = vmul.f32 %v790, %v313
      %v815 = vmul.f32 %v791, %v314
      %v816 = vmul.f32 %v792, %v315
      %v817 = vmul.f32 %v793, %v316
      %v818 = vmul.f32 %v794, %v317
      %v819 = vmul.f32 %v795, %v318
      %v820 = vmul.f32 %v796, %v319
      %v821 = vmul.f32 %v797, %v320
      %v822 = vmul.f32 %v798, %v321
      %v823 = vmul.f32 %v799, %v322
      %v824 = vmul.f32 %v800, %v323
      %v825 = vmul.f32 %v801, %v324
      %v826 = vmul.f32 %v802, %v325
      %v827 = vmul.f32 %v803, %v326
      %v828 = vmul.f32 %v804, %v327
      %v829 = vpack.c.bf16 %v806, %v805
      %v830 = vpack.c.bf16 %v808, %v807
      %v831 = vpack.c.bf16 %v810, %v809
      %v832 = vpack.c.bf16 %v812, %v811
      %v833 = vpack.c.bf16 %v814, %v813
      %v834 = vpack.c.bf16 %v816, %v815
      %v835 = vpack.c.bf16 %v818, %v817
      %v836 = vpack.c.bf16 %v820, %v819
      %v837 = vpack.c.bf16 %v822, %v821
      %v838 = vpack.c.bf16 %v824, %v823
      %v839 = vpack.c.bf16 %v826, %v825
      %v840 = vpack.c.bf16 %v828, %v827
      %vm841 = vcmask 261120
      %842 = vst.msk [vmem:[#allocation2] sm:$0xff] %vm841, %v829
      %843 = vst.msk [vmem:[#allocation2 + $0x8] sm:$0xff] %vm841, %v830
      %844 = vst.msk [vmem:[#allocation2 + $0x10] sm:$0xff] %vm841, %v831
      %845 = vst.msk [vmem:[#allocation2 + $0x18] sm:$0xff] %vm841, %v832
      %846 = vst.msk [vmem:[#allocation2 + $0x20] sm:$0xff] %vm841, %v833
      %847 = vst.msk [vmem:[#allocation2 + $0x28] sm:$0xff] %vm841, %v834
      %848 = vst.msk [vmem:[#allocation2 + $0x30] sm:$0xff] %vm841, %v835
      %849 = vst.msk [vmem:[#allocation2 + $0x38] sm:$0xff] %vm841, %v836
      %850 = vst.msk [vmem:[#allocation2 + $0x40] sm:$0xff] %vm841, %v837
      %851 = vst.msk [vmem:[#allocation2 + $0x48] sm:$0xff] %vm841, %v838
      %852 = vst.msk [vmem:[#allocation2 + $0x50] sm:$0xff] %vm841, %v839
      %853 = vst.msk [vmem:[#allocation2 + $0x58] sm:$0xff] %vm841, %v840
      %v854 = vld [vmem:[%s3 + $0x20] sm:$0xf]
      %v855 = vld [vmem:[%s3 + $0x24] sm:$0xf]
      %v856 = vld [vmem:[%s3 + $0x28] sm:$0xf]
      %v857 = vld [vmem:[%s3 + $0x2c] sm:$0xf]
      %v858 = vld [vmem:[%s6 + $0x2] sm:$0x1]
      %v859 = vpack.c.bf16 %v782, %v781
      %v860 = vpack.c.bf16 %v784, %v783
      %v861 = vpack.c.bf16 %v786, %v785
      %v862 = vpack.c.bf16 %v788, %v787
      %v863 = vpack.c.bf16 %v790, %v789
      %v864 = vpack.c.bf16 %v792, %v791
      %v865 = vpack.c.bf16 %v794, %v793
      %v866 = vpack.c.bf16 %v796, %v795
      %v867 = vpack.c.bf16 %v798, %v797
      %v868 = vpack.c.bf16 %v800, %v799
      %v869 = vpack.c.bf16 %v802, %v801
      %v870 = vpack.c.bf16 %v804, %v803
      %v871 = vlaneseq
      %v872 = vshrl.u32 %v871, 7
      %v873 = vsub.s32 0, %v872
      %v874 = vrot.slane %v858, %v873
      %v879 = vunpack.c.l.b16 %v854
      %v880 = vunpack.c.l.b16 %v855
      %v881 = vunpack.c.l.b16 %v856
      %v882 = vunpack.c.l.b16 %v857
      %v883 = vpack.c.b16 %v880, %v879
      %v884 = vpack.c.b16 %v882, %v881
      %v888 = vsel %vm841, %v859, 0
      %v891 = vsel %vm841, %v860, 0
      %v894 = vsel %vm841, %v861, 0
      %v897 = vsel %vm841, %v862, 0
      %v900 = vsel %vm841, %v863, 0
      %v903 = vsel %vm841, %v864, 0
      %v906 = vsel %vm841, %v865, 0
      %v909 = vsel %vm841, %v866, 0
      %v912 = vsel %vm841, %v867, 0
      %v915 = vsel %vm841, %v868, 0
      %v918 = vsel %vm841, %v869, 0
      %v921 = vsel %vm841, %v870, 0
      %923 = vmatprep.subr.bf16.mxu0 0
      %924 = vmatpush1.bf16.msra.mxu0 %v883
      %925 = vmatprep.subr.bf16.mxu0 0
      %926 = vmatpush1.bf16.msra.mxu0 %v884
      %927 = vmatprep.subr.bf16.mxu0 0
      %928 = vmatpush1.bf16.msra.mxu0 0
      %929 = vmatprep.subr.bf16.mxu0 0
      %930 = vmatpush1.bf16.msra.mxu0 0
      %931 = vmatprep.subr.bf16.mxu0 0
      %932 = vmatpush1.bf16.msra.mxu0 0
      %933 = vmatprep.subr.bf16.mxu0 0
      %934 = vmatpush1.bf16.msra.mxu0 0
      %935 = vmatprep.subr.bf16.mxu0 0
      %936 = vmatpush1.bf16.msra.mxu0 0
      %937 = vmatprep.subr.bf16.mxu0 0
      %938 = vmatpush1.bf16.msra.mxu0 0
      %939 = vmatprep.subr.bf16.mxu0 0
      %940 = vmatpush1.bf16.msra.mxu0 0
      %941 = vmatprep.subr.bf16.mxu0 0
      %942 = vmatpush1.bf16.msra.mxu0 0
      %943 = vmatprep.subr.bf16.mxu0 0
      %944 = vmatpush1.bf16.msra.mxu0 0
      %945 = vmatprep.subr.bf16.mxu0 0
      %946 = vmatpush1.bf16.msra.mxu0 0
      %947 = vmatprep.subr.bf16.mxu0 0
      %948 = vmatpush1.bf16.msra.mxu0 0
      %949 = vmatprep.subr.bf16.mxu0 0
      %950 = vmatpush1.bf16.msra.mxu0 0
      %951 = vmatprep.subr.bf16.mxu0 0
      %952 = vmatpush1.bf16.msra.mxu0 0
      %953 = vmatprep.subr.bf16.mxu0 0
      %954 = vmatpush1.bf16.msra.mxu0 0
      %955 = vmatprep.mubr.bf16.mxu0 0
      %956 = vmatmul.mubr.bf16.gmra.mrb[0].mxu0 %v888
      %v957 = vpop.f32.mrb[0].mxu0
      %v958 = vadd.f32 %v874, %v957
      %v959 = vpop.f32.mrb[0].mxu0
      %v960 = vpop.f32.mrb[0].mxu0
      %v961 = vadd.f32 %v874, %v960
      %v962 = vpop.f32.mrb[0].mxu0
      %963 = vmatprep.mubr.bf16.mxu0 0
      %964 = vmatmul.mubr.bf16.gmra.mrb[0].mxu0 %v891
      %v965 = vpop.f32.mrb[0].mxu0
      %v966 = vadd.f32 %v874, %v965
      %v967 = vpop.f32.mrb[0].mxu0
      %v968 = vpop.f32.mrb[0].mxu0
      %v969 = vadd.f32 %v874, %v968
      %v970 = vpop.f32.mrb[0].mxu0
      %971 = vmatprep.mubr.bf16.mxu0 0
      %972 = vmatmul.mubr.bf16.gmra.mrb[0].mxu0 %v894
      %v973 = vpop.f32.mrb[0].mxu0
      %v974 = vadd.f32 %v874, %v973
      %v975 = vpop.f32.mrb[0].mxu0
      %v976 = vpop.f32.mrb[0].mxu0
      %v977 = vadd.f32 %v874, %v976
      %v978 = vpop.f32.mrb[0].mxu0
      %979 = vmatprep.mubr.bf16.mxu0 0
      %980 = vmatmul.mubr.bf16.gmra.mrb[0].mxu0 %v897
      %v981 = vpop.f32.mrb[0].mxu0
      %v982 = vadd.f32 %v874, %v981
      %v983 = vpop.f32.mrb[0].mxu0
      %v984 = vpop.f32.mrb[0].mxu0
      %v985 = vadd.f32 %v874, %v984
      %v986 = vpop.f32.mrb[0].mxu0
      %987 = vmatprep.mubr.bf16.mxu0 0
      %988 = vmatmul.mubr.bf16.gmra.mrb[0].mxu0 %v900
      %v989 = vpop.f32.mrb[0].mxu0
      %v990 = vadd.f32 %v874, %v989
      %v991 = vpop.f32.mrb[0].mxu0
      %v992 = vpop.f32.mrb[0].mxu0
      %v993 = vadd.f32 %v874, %v992
      %v994 = vpop.f32.mrb[0].mxu0
      %995 = vmatprep.mubr.bf16.mxu0 0
      %996 = vmatmul.mubr.bf16.gmra.mrb[0].mxu0 %v903
      %v997 = vpop.f32.mrb[0].mxu0
      %v998 = vadd.f32 %v874, %v997
      %v999 = vpop.f32.mrb[0].mxu0
      %v1000 = vpop.f32.mrb[0].mxu0
      %v1001 = vadd.f32 %v874, %v1000
      %v1002 = vpop.f32.mrb[0].mxu0
      %1003 = vmatprep.mubr.bf16.mxu0 0
      %1004 = vmatmul.mubr.bf16.gmra.mrb[0].mxu0 %v906
      %v1005 = vpop.f32.mrb[0].mxu0
      %v1006 = vadd.f32 %v874, %v1005
      %v1007 = vpop.f32.mrb[0].mxu0
      %v1008 = vpop.f32.mrb[0].mxu0
      %v1009 = vadd.f32 %v874, %v1008
      %v1010 = vpop.f32.mrb[0].mxu0
      %1011 = vmatprep.mubr.bf16.mxu0 0
      %1012 = vmatmul.mubr.bf16.gmra.mrb[0].mxu0 %v909
      %v1013 = vpop.f32.mrb[0].mxu0
      %v1014 = vadd.f32 %v874, %v1013
      %v1015 = vpop.f32.mrb[0].mxu0
      %v1016 = vpop.f32.mrb[0].mxu0
      %v1017 = vadd.f32 %v874, %v1016
      %v1018 = vpop.f32.mrb[0].mxu0
      %1019 = vmatprep.mubr.bf16.mxu0 0
      %1020 = vmatmul.mubr.bf16.gmra.mrb[0].mxu0 %v912
      %v1021 = vpop.f32.mrb[0].mxu0
      %v1022 = vadd.f32 %v874, %v1021
      %v1023 = vpop.f32.mrb[0].mxu0
      %v1024 = vpop.f32.mrb[0].mxu0
      %v1025 = vadd.f32 %v874, %v1024
      %v1026 = vpop.f32.mrb[0].mxu0
      %1027 = vmatprep.mubr.bf16.mxu0 0
      %1028 = vmatmul.mubr.bf16.gmra.mrb[0].mxu0 %v915
      %v1029 = vpop.f32.mrb[0].mxu0
      %v1030 = vadd.f32 %v874, %v1029
      %v1031 = vpop.f32.mrb[0].mxu0
      %v1032 = vpop.f32.mrb[0].mxu0
      %v1033 = vadd.f32 %v874, %v1032
      %v1034 = vpop.f32.mrb[0].mxu0
      %1035 = vmatprep.mubr.bf16.mxu0 0
      %1036 = vmatmul.mubr.bf16.gmra.mrb[0].mxu0 %v918
      %v1037 = vpop.f32.mrb[0].mxu0
      %v1038 = vadd.f32 %v874, %v1037
      %v1039 = vpop.f32.mrb[0].mxu0
      %v1040 = vpop.f32.mrb[0].mxu0
      %v1041 = vadd.f32 %v874, %v1040
      %v1042 = vpop.f32.mrb[0].mxu0
      %1043 = vmatprep.mubr.bf16.mxu0 0
      %1044 = vmatmul.mubr.bf16.gmra.mrb[0].mxu0 %v921
      %v1045 = vpop.f32.mrb[0].mxu0
      %v1046 = vadd.f32 %v874, %v1045
      %v1047 = vpop.f32.mrb[0].mxu0
      %v1048 = vpop.f32.mrb[0].mxu0
      %v1049 = vadd.f32 %v874, %v1048
      %v1050 = vpop.f32.mrb[0].mxu0
      %1051 = vdwg.mxu0
      %v1052 = vmax.f32 %v958, 0.0
      %v1053 = vmax.f32 %v961, 0.0
      %v1054 = vmax.f32 %v966, 0.0
      %v1055 = vmax.f32 %v969, 0.0
      %v1056 = vmax.f32 %v974, 0.0
      %v1057 = vmax.f32 %v977, 0.0
      %v1058 = vmax.f32 %v982, 0.0
      %v1059 = vmax.f32 %v985, 0.0
      %v1060 = vmax.f32 %v990, 0.0
      %v1061 = vmax.f32 %v993, 0.0
      %v1062 = vmax.f32 %v998, 0.0
      %v1063 = vmax.f32 %v1001, 0.0
      %v1064 = vmax.f32 %v1006, 0.0
      %v1065 = vmax.f32 %v1009, 0.0
      %v1066 = vmax.f32 %v1014, 0.0
      %v1067 = vmax.f32 %v1017, 0.0
      %v1068 = vmax.f32 %v1022, 0.0
      %v1069 = vmax.f32 %v1025, 0.0
      %v1070 = vmax.f32 %v1030, 0.0
      %v1071 = vmax.f32 %v1033, 0.0
      %v1072 = vmax.f32 %v1038, 0.0
      %v1073 = vmax.f32 %v1041, 0.0
      %v1074 = vmax.f32 %v1046, 0.0
      %v1075 = vmax.f32 %v1049, 0.0
      %v1076 = vmul.f32 %v1052, %v304
      %v1077 = vmul.f32 %v1053, %v305
      %v1078 = vmul.f32 %v1054, %v306
      %v1079 = vmul.f32 %v1055, %v307
      %v1080 = vmul.f32 %v1056, %v308
      %v1081 = vmul.f32 %v1057, %v309
      %v1082 = vmul.f32 %v1058, %v310
      %v1083 = vmul.f32 %v1059, %v311
      %v1084 = vmul.f32 %v1060, %v312
      %v1085 = vmul.f32 %v1061, %v313
      %v1086 = vmul.f32 %v1062, %v314
      %v1087 = vmul.f32 %v1063, %v315
      %v1088 = vmul.f32 %v1064, %v316
      %v1089 = vmul.f32 %v1065, %v317
      %v1090 = vmul.f32 %v1066, %v318
      %v1091 = vmul.f32 %v1067, %v319
      %v1092 = vmul.f32 %v1068, %v320
      %v1093 = vmul.f32 %v1069, %v321
      %v1094 = vmul.f32 %v1070, %v322
      %v1095 = vmul.f32 %v1071, %v323
      %v1096 = vmul.f32 %v1072, %v324
      %v1097 = vmul.f32 %v1073, %v325
      %v1098 = vmul.f32 %v1074, %v326
      %v1099 = vmul.f32 %v1075, %v327
      %v1100 = vpack.c.bf16 %v1077, %v1076
      %v1101 = vpack.c.bf16 %v1079, %v1078
      %v1102 = vpack.c.bf16 %v1081, %v1080
      %v1103 = vpack.c.bf16 %v1083, %v1082
      %v1104 = vpack.c.bf16 %v1085, %v1084
      %v1105 = vpack.c.bf16 %v1087, %v1086
      %v1106 = vpack.c.bf16 %v1089, %v1088
      %v1107 = vpack.c.bf16 %v1091, %v1090
      %v1108 = vpack.c.bf16 %v1093, %v1092
      %v1109 = vpack.c.bf16 %v1095, %v1094
      %v1110 = vpack.c.bf16 %v1097, %v1096
      %v1111 = vpack.c.bf16 %v1099, %v1098
      %1124 = vrot.lane.b32.xlu0 %v1100, 32
      %v1125 = vpop.permute.xlu0 %1124
      %1126 = vrot.lane.b32.xlu0 %v1101, 32
      %v1127 = vpop.permute.xlu0 %1126
      %1128 = vrot.lane.b32.xlu0 %v1102, 32
      %v1129 = vpop.permute.xlu0 %1128
      %1130 = vrot.lane.b32.xlu0 %v1103, 32
      %v1131 = vpop.permute.xlu0 %1130
      %1132 = vrot.lane.b32.xlu0 %v1104, 32
      %v1133 = vpop.permute.xlu0 %1132
      %1134 = vrot.lane.b32.xlu0 %v1105, 32
      %v1135 = vpop.permute.xlu0 %1134
      %1136 = vrot.lane.b32.xlu0 %v1106, 32
      %v1137 = vpop.permute.xlu0 %1136
      %1138 = vrot.lane.b32.xlu0 %v1107, 32
      %v1139 = vpop.permute.xlu0 %1138
      %1140 = vrot.lane.b32.xlu0 %v1108, 32
      %v1141 = vpop.permute.xlu0 %1140
      %1142 = vrot.lane.b32.xlu0 %v1109, 32
      %v1143 = vpop.permute.xlu0 %1142
      %1144 = vrot.lane.b32.xlu0 %v1110, 32
      %v1145 = vpop.permute.xlu0 %1144
      %1146 = vrot.lane.b32.xlu0 %v1111, 32
      %v1147 = vpop.permute.xlu0 %1146
      %vm1160 = vcmask 523520
      %1161 = vst.msk [vmem:[#allocation2] sm:$0xff] %vm1160, %v1125
      %1162 = vst.msk [vmem:[#allocation2 + $0x8] sm:$0xff] %vm1160, %v1127
      %1163 = vst.msk [vmem:[#allocation2 + $0x10] sm:$0xff] %vm1160, %v1129
      %1164 = vst.msk [vmem:[#allocation2 + $0x18] sm:$0xff] %vm1160, %v1131
      %1165 = vst.msk [vmem:[#allocation2 + $0x20] sm:$0xff] %vm1160, %v1133
      %1166 = vst.msk [vmem:[#allocation2 + $0x28] sm:$0xff] %vm1160, %v1135
      %1167 = vst.msk [vmem:[#allocation2 + $0x30] sm:$0xff] %vm1160, %v1137
      %1168 = vst.msk [vmem:[#allocation2 + $0x38] sm:$0xff] %vm1160, %v1139
      %1169 = vst.msk [vmem:[#allocation2 + $0x40] sm:$0xff] %vm1160, %v1141
      %1170 = vst.msk [vmem:[#allocation2 + $0x48] sm:$0xff] %vm1160, %v1143
      %1171 = vst.msk [vmem:[#allocation2 + $0x50] sm:$0xff] %vm1160, %v1145
      %1172 = vst.msk [vmem:[#allocation2 + $0x58] sm:$0xff] %vm1160, %v1147
      %v1173 = vld [vmem:[%s3 + $0x30] sm:$0xf]
      %v1174 = vld [vmem:[%s3 + $0x34] sm:$0xf]
      %v1175 = vld [vmem:[%s3 + $0x38] sm:$0xf]
      %v1176 = vld [vmem:[%s3 + $0x3c] sm:$0xf]
      %v1177 = vld [vmem:[%s6 + $0x3] sm:$0x1]
      %v1178 = vpack.c.bf16 %v1053, %v1052
      %v1179 = vpack.c.bf16 %v1055, %v1054
      %v1180 = vpack.c.bf16 %v1057, %v1056
      %v1181 = vpack.c.bf16 %v1059, %v1058
      %v1182 = vpack.c.bf16 %v1061, %v1060
      %v1183 = vpack.c.bf16 %v1063, %v1062
      %v1184 = vpack.c.bf16 %v1065, %v1064
      %v1185 = vpack.c.bf16 %v1067, %v1066
      %v1186 = vpack.c.bf16 %v1069, %v1068
      %v1187 = vpack.c.bf16 %v1071, %v1070
      %v1188 = vpack.c.bf16 %v1073, %v1072
      %v1189 = vpack.c.bf16 %v1075, %v1074
      %v1190 = vlaneseq
      %v1191 = vshrl.u32 %v1190, 7
      %v1192 = vsub.s32 0, %v1191
      %v1193 = vrot.slane %v1177, %v1192
      %v1198 = vunpack.c.l.b16 %v1173
      %v1199 = vunpack.c.l.b16 %v1174
      %v1200 = vunpack.c.l.b16 %v1175
      %v1201 = vunpack.c.l.b16 %v1176
      %v1202 = vpack.c.b16 %v1199, %v1198
      %v1203 = vpack.c.b16 %v1201, %v1200
      %v1207 = vsel %vm841, %v1178, 0
      %v1210 = vsel %vm841, %v1179, 0
      %v1213 = vsel %vm841, %v1180, 0
      %v1216 = vsel %vm841, %v1181, 0
      %v1219 = vsel %vm841, %v1182, 0
      %v1222 = vsel %vm841, %v1183, 0
      %v1225 = vsel %vm841, %v1184, 0
      %v1228 = vsel %vm841, %v1185, 0
      %v1231 = vsel %vm841, %v1186, 0
      %v1234 = vsel %vm841, %v1187, 0
      %v1237 = vsel %vm841, %v1188, 0
      %v1240 = vsel %vm841, %v1189, 0
      %1242 = vmatprep.subr.bf16.mxu0 0
      %1243 = vmatpush1.bf16.msra.mxu0 %v1202
      %1244 = vmatprep.subr.bf16.mxu0 0
      %1245 = vmatpush1.bf16.msra.mxu0 %v1203
      %1246 = vmatprep.subr.bf16.mxu0 0
      %1247 = vmatpush1.bf16.msra.mxu0 0
      %1248 = vmatprep.subr.bf16.mxu0 0
      %1249 = vmatpush1.bf16.msra.mxu0 0
      %1250 = vmatprep.subr.bf16.mxu0 0
      %1251 = vmatpush1.bf16.msra.mxu0 0
      %1252 = vmatprep.subr.bf16.mxu0 0
      %1253 = vmatpush1.bf16.msra.mxu0 0
      %1254 = vmatprep.subr.bf16.mxu0 0
      %1255 = vmatpush1.bf16.msra.mxu0 0
      %1256 = vmatprep.subr.bf16.mxu0 0
      %1257 = vmatpush1.bf16.msra.mxu0 0
      %1258 = vmatprep.subr.bf16.mxu0 0
      %1259 = vmatpush1.bf16.msra.mxu0 0
      %1260 = vmatprep.subr.bf16.mxu0 0
      %1261 = vmatpush1.bf16.msra.mxu0 0
      %1262 = vmatprep.subr.bf16.mxu0 0
      %1263 = vmatpush1.bf16.msra.mxu0 0
      %1264 = vmatprep.subr.bf16.mxu0 0
      %1265 = vmatpush1.bf16.msra.mxu0 0
      %1266 = vmatprep.subr.bf16.mxu0 0
      %1267 = vmatpush1.bf16.msra.mxu0 0
      %1268 = vmatprep.subr.bf16.mxu0 0
      %1269 = vmatpush1.bf16.msra.mxu0 0
      %1270 = vmatprep.subr.bf16.mxu0 0
      %1271 = vmatpush1.bf16.msra.mxu0 0
      %1272 = vmatprep.subr.bf16.mxu0 0
      %1273 = vmatpush1.bf16.msra.mxu0 0
      %1274 = vmatprep.mubr.bf16.mxu0 0
      %1275 = vmatmul.mubr.bf16.gmra.mrb[0].mxu0 %v1207
      %v1276 = vpop.f32.mrb[0].mxu0
      %v1277 = vadd.f32 %v1193, %v1276
      %v1278 = vpop.f32.mrb[0].mxu0
      %v1279 = vpop.f32.mrb[0].mxu0
      %v1280 = vadd.f32 %v1193, %v1279
      %v1281 = vpop.f32.mrb[0].mxu0
      %1282 = vmatprep.mubr.bf16.mxu0 0
      %1283 = vmatmul.mubr.bf16.gmra.mrb[0].mxu0 %v1210
      %v1284 = vpop.f32.mrb[0].mxu0
      %v1285 = vadd.f32 %v1193, %v1284
      %v1286 = vpop.f32.mrb[0].mxu0
      %v1287 = vpop.f32.mrb[0].mxu0
      %v1288 = vadd.f32 %v1193, %v1287
      %v1289 = vpop.f32.mrb[0].mxu0
      %1290 = vmatprep.mubr.bf16.mxu0 0
      %1291 = vmatmul.mubr.bf16.gmra.mrb[0].mxu0 %v1213
      %v1292 = vpop.f32.mrb[0].mxu0
      %v1293 = vadd.f32 %v1193, %v1292
      %v1294 = vpop.f32.mrb[0].mxu0
      %v1295 = vpop.f32.mrb[0].mxu0
      %v1296 = vadd.f32 %v1193, %v1295
      %v1297 = vpop.f32.mrb[0].mxu0
      %1298 = vmatprep.mubr.bf16.mxu0 0
      %1299 = vmatmul.mubr.bf16.gmra.mrb[0].mxu0 %v1216
      %v1300 = vpop.f32.mrb[0].mxu0
      %v1301 = vadd.f32 %v1193, %v1300
      %v1302 = vpop.f32.mrb[0].mxu0
      %v1303 = vpop.f32.mrb[0].mxu0
      %v1304 = vadd.f32 %v1193, %v1303
      %v1305 = vpop.f32.mrb[0].mxu0
      %1306 = vmatprep.mubr.bf16.mxu0 0
      %1307 = vmatmul.mubr.bf16.gmra.mrb[0].mxu0 %v1219
      %v1308 = vpop.f32.mrb[0].mxu0
      %v1309 = vadd.f32 %v1193, %v1308
      %v1310 = vpop.f32.mrb[0].mxu0
      %v1311 = vpop.f32.mrb[0].mxu0
      %v1312 = vadd.f32 %v1193, %v1311
      %v1313 = vpop.f32.mrb[0].mxu0
      %1314 = vmatprep.mubr.bf16.mxu0 0
      %1315 = vmatmul.mubr.bf16.gmra.mrb[0].mxu0 %v1222
      %v1316 = vpop.f32.mrb[0].mxu0
      %v1317 = vadd.f32 %v1193, %v1316
      %v1318 = vpop.f32.mrb[0].mxu0
      %v1319 = vpop.f32.mrb[0].mxu0
      %v1320 = vadd.f32 %v1193, %v1319
      %v1321 = vpop.f32.mrb[0].mxu0
      %1322 = vmatprep.mubr.bf16.mxu0 0
      %1323 = vmatmul.mubr.bf16.gmra.mrb[0].mxu0 %v1225
      %v1324 = vpop.f32.mrb[0].mxu0
      %v1325 = vadd.f32 %v1193, %v1324
      %v1326 = vpop.f32.mrb[0].mxu0
      %v1327 = vpop.f32.mrb[0].mxu0
      %v1328 = vadd.f32 %v1193, %v1327
      %v1329 = vpop.f32.mrb[0].mxu0
      %1330 = vmatprep.mubr.bf16.mxu0 0
      %1331 = vmatmul.mubr.bf16.gmra.mrb[0].mxu0 %v1228
      %v1332 = vpop.f32.mrb[0].mxu0
      %v1333 = vadd.f32 %v1193, %v1332
      %v1334 = vpop.f32.mrb[0].mxu0
      %v1335 = vpop.f32.mrb[0].mxu0
      %v1336 = vadd.f32 %v1193, %v1335
      %v1337 = vpop.f32.mrb[0].mxu0
      %1338 = vmatprep.mubr.bf16.mxu0 0
      %1339 = vmatmul.mubr.bf16.gmra.mrb[0].mxu0 %v1231
      %v1340 = vpop.f32.mrb[0].mxu0
      %v1341 = vadd.f32 %v1193, %v1340
      %v1342 = vpop.f32.mrb[0].mxu0
      %v1343 = vpop.f32.mrb[0].mxu0
      %v1344 = vadd.f32 %v1193, %v1343
      %v1345 = vpop.f32.mrb[0].mxu0
      %1346 = vmatprep.mubr.bf16.mxu0 0
      %1347 = vmatmul.mubr.bf16.gmra.mrb[0].mxu0 %v1234
      %v1348 = vpop.f32.mrb[0].mxu0
      %v1349 = vadd.f32 %v1193, %v1348
      %v1350 = vpop.f32.mrb[0].mxu0
      %v1351 = vpop.f32.mrb[0].mxu0
      %v1352 = vadd.f32 %v1193, %v1351
      %v1353 = vpop.f32.mrb[0].mxu0
      %1354 = vmatprep.mubr.bf16.mxu0 0
      %1355 = vmatmul.mubr.bf16.gmra.mrb[0].mxu0 %v1237
      %v1356 = vpop.f32.mrb[0].mxu0
      %v1357 = vadd.f32 %v1193, %v1356
      %v1358 = vpop.f32.mrb[0].mxu0
      %v1359 = vpop.f32.mrb[0].mxu0
      %v1360 = vadd.f32 %v1193, %v1359
      %v1361 = vpop.f32.mrb[0].mxu0
      %1362 = vmatprep.mubr.bf16.mxu0 0
      %1363 = vmatmul.mubr.bf16.gmra.mrb[0].mxu0 %v1240
      %v1364 = vpop.f32.mrb[0].mxu0
      %v1365 = vadd.f32 %v1193, %v1364
      %v1366 = vpop.f32.mrb[0].mxu0
      %v1367 = vpop.f32.mrb[0].mxu0
      %v1368 = vadd.f32 %v1193, %v1367
      %v1369 = vpop.f32.mrb[0].mxu0
      %1370 = vdwg.mxu0
      %v1371 = vmax.f32 %v1277, 0.0
      %v1372 = vmax.f32 %v1280, 0.0
      %v1373 = vmax.f32 %v1285, 0.0
      %v1374 = vmax.f32 %v1288, 0.0
      %v1375 = vmax.f32 %v1293, 0.0
      %v1376 = vmax.f32 %v1296, 0.0
      %v1377 = vmax.f32 %v1301, 0.0
      %v1378 = vmax.f32 %v1304, 0.0
      %v1379 = vmax.f32 %v1309, 0.0
      %v1380 = vmax.f32 %v1312, 0.0
      %v1381 = vmax.f32 %v1317, 0.0
      %v1382 = vmax.f32 %v1320, 0.0
      %v1383 = vmax.f32 %v1325, 0.0
      %v1384 = vmax.f32 %v1328, 0.0
      %v1385 = vmax.f32 %v1333, 0.0
      %v1386 = vmax.f32 %v1336, 0.0
      %v1387 = vmax.f32 %v1341, 0.0
      %v1388 = vmax.f32 %v1344, 0.0
      %v1389 = vmax.f32 %v1349, 0.0
      %v1390 = vmax.f32 %v1352, 0.0
      %v1391 = vmax.f32 %v1357, 0.0
      %v1392 = vmax.f32 %v1360, 0.0
      %v1393 = vmax.f32 %v1365, 0.0
      %v1394 = vmax.f32 %v1368, 0.0
      %v1395 = vmul.f32 %v1371, %v304
      %v1396 = vmul.f32 %v1372, %v305
      %v1397 = vmul.f32 %v1373, %v306
      %v1398 = vmul.f32 %v1374, %v307
      %v1399 = vmul.f32 %v1375, %v308
      %v1400 = vmul.f32 %v1376, %v309
      %v1401 = vmul.f32 %v1377, %v310
      %v1402 = vmul.f32 %v1378, %v311
      %v1403 = vmul.f32 %v1379, %v312
      %v1404 = vmul.f32 %v1380, %v313
      %v1405 = vmul.f32 %v1381, %v314
      %v1406 = vmul.f32 %v1382, %v315
      %v1407 = vmul.f32 %v1383, %v316
      %v1408 = vmul.f32 %v1384, %v317
      %v1409 = vmul.f32 %v1385, %v318
      %v1410 = vmul.f32 %v1386, %v319
      %v1411 = vmul.f32 %v1387, %v320
      %v1412 = vmul.f32 %v1388, %v321
      %v1413 = vmul.f32 %v1389, %v322
      %v1414 = vmul.f32 %v1390, %v323
      %v1415 = vmul.f32 %v1391, %v324
      %v1416 = vmul.f32 %v1392, %v325
      %v1417 = vmul.f32 %v1393, %v326
      %v1418 = vmul.f32 %v1394, %v327
      %v1419 = vpack.c.bf16 %v1396, %v1395
      %v1420 = vpack.c.bf16 %v1398, %v1397
      %v1421 = vpack.c.bf16 %v1400, %v1399
      %v1422 = vpack.c.bf16 %v1402, %v1401
      %v1423 = vpack.c.bf16 %v1404, %v1403
      %v1424 = vpack.c.bf16 %v1406, %v1405
      %v1425 = vpack.c.bf16 %v1408, %v1407
      %v1426 = vpack.c.bf16 %v1410, %v1409
      %v1427 = vpack.c.bf16 %v1412, %v1411
      %v1428 = vpack.c.bf16 %v1414, %v1413
      %v1429 = vpack.c.bf16 %v1416, %v1415
      %v1430 = vpack.c.bf16 %v1418, %v1417
      %1443 = vrot.lane.b32.xlu0 %v1419, 64
      %v1444 = vpop.permute.xlu0 %1443
      %1445 = vrot.lane.b32.xlu0 %v1420, 64
      %v1446 = vpop.permute.xlu0 %1445
      %1447 = vrot.lane.b32.xlu0 %v1421, 64
      %v1448 = vpop.permute.xlu0 %1447
      %1449 = vrot.lane.b32.xlu0 %v1422, 64
      %v1450 = vpop.permute.xlu0 %1449
      %1451 = vrot.lane.b32.xlu0 %v1423, 64
      %v1452 = vpop.permute.xlu0 %1451
      %1453 = vrot.lane.b32.xlu0 %v1424, 64
      %v1454 = vpop.permute.xlu0 %1453
      %1455 = vrot.lane.b32.xlu0 %v1425, 64
      %v1456 = vpop.permute.xlu0 %1455
      %1457 = vrot.lane.b32.xlu0 %v1426, 64
      %v1458 = vpop.permute.xlu0 %1457
      %1459 = vrot.lane.b32.xlu0 %v1427, 64
      %v1460 = vpop.permute.xlu0 %1459
      %1461 = vrot.lane.b32.xlu0 %v1428, 64
      %v1462 = vpop.permute.xlu0 %1461
      %1463 = vrot.lane.b32.xlu0 %v1429, 64
      %v1464 = vpop.permute.xlu0 %1463
      %1465 = vrot.lane.b32.xlu0 %v1430, 64
      %v1466 = vpop.permute.xlu0 %1465
      %vm1479 = vcmask 785920
      %1480 = vst.msk [vmem:[#allocation2] sm:$0xff] %vm1479, %v1444
      %1481 = vst.msk [vmem:[#allocation2 + $0x8] sm:$0xff] %vm1479, %v1446
      %1482 = vst.msk [vmem:[#allocation2 + $0x10] sm:$0xff] %vm1479, %v1448
      %1483 = vst.msk [vmem:[#allocation2 + $0x18] sm:$0xff] %vm1479, %v1450
      %1484 = vst.msk [vmem:[#allocation2 + $0x20] sm:$0xff] %vm1479, %v1452
      %1485 = vst.msk [vmem:[#allocation2 + $0x28] sm:$0xff] %vm1479, %v1454
      %1486 = vst.msk [vmem:[#allocation2 + $0x30] sm:$0xff] %vm1479, %v1456
      %1487 = vst.msk [vmem:[#allocation2 + $0x38] sm:$0xff] %vm1479, %v1458
      %1488 = vst.msk [vmem:[#allocation2 + $0x40] sm:$0xff] %vm1479, %v1460
      %1489 = vst.msk [vmem:[#allocation2 + $0x48] sm:$0xff] %vm1479, %v1462
      %1490 = vst.msk [vmem:[#allocation2 + $0x50] sm:$0xff] %vm1479, %v1464
      %1491 = vst.msk [vmem:[#allocation2 + $0x58] sm:$0xff] %vm1479, %v1466
      %v1492 = vld [vmem:[%s3 + $0x40] sm:$0xf]
      %v1493 = vld [vmem:[%s3 + $0x44] sm:$0xf]
      %v1494 = vld [vmem:[%s3 + $0x48] sm:$0xf]
      %v1495 = vld [vmem:[%s3 + $0x4c] sm:$0xf]
      %v1496 = vld [vmem:[%s6 + $0x4] sm:$0x1]
      %v1497 = vpack.c.bf16 %v1372, %v1371
      %v1498 = vpack.c.bf16 %v1374, %v1373
      %v1499 = vpack.c.bf16 %v1376, %v1375
      %v1500 = vpack.c.bf16 %v1378, %v1377
      %v1501 = vpack.c.bf16 %v1380, %v1379
      %v1502 = vpack.c.bf16 %v1382, %v1381
      %v1503 = vpack.c.bf16 %v1384, %v1383
      %v1504 = vpack.c.bf16 %v1386, %v1385
      %v1505 = vpack.c.bf16 %v1388, %v1387
      %v1506 = vpack.c.bf16 %v1390, %v1389
      %v1507 = vpack.c.bf16 %v1392, %v1391
      %v1508 = vpack.c.bf16 %v1394, %v1393
      %v1509 = vlaneseq
      %v1510 = vshrl.u32 %v1509, 7
      %v1511 = vsub.s32 0, %v1510
      %v1512 = vrot.slane %v1496, %v1511
      %v1517 = vunpack.c.l.b16 %v1492
      %v1518 = vunpack.c.l.b16 %v1493
      %v1519 = vunpack.c.l.b16 %v1494
      %v1520 = vunpack.c.l.b16 %v1495
      %v1521 = vpack.c.b16 %v1518, %v1517
      %v1522 = vpack.c.b16 %v1520, %v1519
      %v1526 = vsel %vm841, %v1497, 0
      %v1529 = vsel %vm841, %v1498, 0
      %v1532 = vsel %vm841, %v1499, 0
      %v1535 = vsel %vm841, %v1500, 0
      %v1538 = vsel %vm841, %v1501, 0
      %v1541 = vsel %vm841, %v1502, 0
      %v1544 = vsel %vm841, %v1503, 0
      %v1547 = vsel %vm841, %v1504, 0
      %v1550 = vsel %vm841, %v1505, 0
      %v1553 = vsel %vm841, %v1506, 0
      %v1556 = vsel %vm841, %v1507, 0
      %v1559 = vsel %vm841, %v1508, 0
      %1561 = vmatprep.subr.bf16.mxu0 0
      %1562 = vmatpush1.bf16.msra.mxu0 %v1521
      %1563 = vmatprep.subr.bf16.mxu0 0
      %1564 = vmatpush1.bf16.msra.mxu0 %v1522
      %1565 = vmatprep.subr.bf16.mxu0 0
      %1566 = vmatpush1.bf16.msra.mxu0 0
      %1567 = vmatprep.subr.bf16.mxu0 0
      %1568 = vmatpush1.bf16.msra.mxu0 0
      %1569 = vmatprep.subr.bf16.mxu0 0
      %1570 = vmatpush1.bf16.msra.mxu0 0
      %1571 = vmatprep.subr.bf16.mxu0 0
      %1572 = vmatpush1.bf16.msra.mxu0 0
      %1573 = vmatprep.subr.bf16.mxu0 0
      %1574 = vmatpush1.bf16.msra.mxu0 0
      %1575 = vmatprep.subr.bf16.mxu0 0
      %1576 = vmatpush1.bf16.msra.mxu0 0
      %1577 = vmatprep.subr.bf16.mxu0 0
      %1578 = vmatpush1.bf16.msra.mxu0 0
      %1579 = vmatprep.subr.bf16.mxu0 0
      %1580 = vmatpush1.bf16.msra.mxu0 0
      %1581 = vmatprep.subr.bf16.mxu0 0
      %1582 = vmatpush1.bf16.msra.mxu0 0
      %1583 = vmatprep.subr.bf16.mxu0 0
      %1584 = vmatpush1.bf16.msra.mxu0 0
      %1585 = vmatprep.subr.bf16.mxu0 0
      %1586 = vmatpush1.bf16.msra.mxu0 0
      %1587 = vmatprep.subr.bf16.mxu0 0
      %1588 = vmatpush1.bf16.msra.mxu0 0
      %1589 = vmatprep.subr.bf16.mxu0 0
      %1590 = vmatpush1.bf16.msra.mxu0 0
      %1591 = vmatprep.subr.bf16.mxu0 0
      %1592 = vmatpush1.bf16.msra.mxu0 0
      %1593 = vmatprep.mubr.bf16.mxu0 0
      %1594 = vmatmul.mubr.bf16.gmra.mrb[0].mxu0 %v1526
      %v1595 = vpop.f32.mrb[0].mxu0
      %v1596 = vadd.f32 %v1512, %v1595
      %v1597 = vpop.f32.mrb[0].mxu0
      %v1598 = vpop.f32.mrb[0].mxu0
      %v1599 = vadd.f32 %v1512, %v1598
      %v1600 = vpop.f32.mrb[0].mxu0
      %1601 = vmatprep.mubr.bf16.mxu0 0
      %1602 = vmatmul.mubr.bf16.gmra.mrb[0].mxu0 %v1529
      %v1603 = vpop.f32.mrb[0].mxu0
      %v1604 = vadd.f32 %v1512, %v1603
      %v1605 = vpop.f32.mrb[0].mxu0
      %v1606 = vpop.f32.mrb[0].mxu0
      %v1607 = vadd.f32 %v1512, %v1606
      %v1608 = vpop.f32.mrb[0].mxu0
      %1609 = vmatprep.mubr.bf16.mxu0 0
      %1610 = vmatmul.mubr.bf16.gmra.mrb[0].mxu0 %v1532
      %v1611 = vpop.f32.mrb[0].mxu0
      %v1612 = vadd.f32 %v1512, %v1611
      %v1613 = vpop.f32.mrb[0].mxu0
      %v1614 = vpop.f32.mrb[0].mxu0
      %v1615 = vadd.f32 %v1512, %v1614
      %v1616 = vpop.f32.mrb[0].mxu0
      %1617 = vmatprep.mubr.bf16.mxu0 0
      %1618 = vmatmul.mubr.bf16.gmra.mrb[0].mxu0 %v1535
      %v1619 = vpop.f32.mrb[0].mxu0
      %v1620 = vadd.f32 %v1512, %v1619
      %v1621 = vpop.f32.mrb[0].mxu0
      %v1622 = vpop.f32.mrb[0].mxu0
      %v1623 = vadd.f32 %v1512, %v1622
      %v1624 = vpop.f32.mrb[0].mxu0
      %1625 = vmatprep.mubr.bf16.mxu0 0
      %1626 = vmatmul.mubr.bf16.gmra.mrb[0].mxu0 %v1538
      %v1627 = vpop.f32.mrb[0].mxu0
      %v1628 = vadd.f32 %v1512, %v1627
      %v1629 = vpop.f32.mrb[0].mxu0
      %v1630 = vpop.f32.mrb[0].mxu0
      %v1631 = vadd.f32 %v1512, %v1630
      %v1632 = vpop.f32.mrb[0].mxu0
      %1633 = vmatprep.mubr.bf16.mxu0 0
      %1634 = vmatmul.mubr.bf16.gmra.mrb[0].mxu0 %v1541
      %v1635 = vpop.f32.mrb[0].mxu0
      %v1636 = vadd.f32 %v1512, %v1635
      %v1637 = vpop.f32.mrb[0].mxu0
      %v1638 = vpop.f32.mrb[0].mxu0
      %v1639 = vadd.f32 %v1512, %v1638
      %v1640 = vpop.f32.mrb[0].mxu0
      %1641 = vmatprep.mubr.bf16.mxu0 0
      %1642 = vmatmul.mubr.bf16.gmra.mrb[0].mxu0 %v1544
      %v1643 = vpop.f32.mrb[0].mxu0
      %v1644 = vadd.f32 %v1512, %v1643
      %v1645 = vpop.f32.mrb[0].mxu0
      %v1646 = vpop.f32.mrb[0].mxu0
      %v1647 = vadd.f32 %v1512, %v1646
      %v1648 = vpop.f32.mrb[0].mxu0
      %1649 = vmatprep.mubr.bf16.mxu0 0
      %1650 = vmatmul.mubr.bf16.gmra.mrb[0].mxu0 %v1547
      %v1651 = vpop.f32.mrb[0].mxu0
      %v1652 = vadd.f32 %v1512, %v1651
      %v1653 = vpop.f32.mrb[0].mxu0
      %v1654 = vpop.f32.mrb[0].mxu0
      %v1655 = vadd.f32 %v1512, %v1654
      %v1656 = vpop.f32.mrb[0].mxu0
      %1657 = vmatprep.mubr.bf16.mxu0 0
      %1658 = vmatmul.mubr.bf16.gmra.mrb[0].mxu0 %v1550
      %v1659 = vpop.f32.mrb[0].mxu0
      %v1660 = vadd.f32 %v1512, %v1659
      %v1661 = vpop.f32.mrb[0].mxu0
      %v1662 = vpop.f32.mrb[0].mxu0
      %v1663 = vadd.f32 %v1512, %v1662
      %v1664 = vpop.f32.mrb[0].mxu0
      %1665 = vmatprep.mubr.bf16.mxu0 0
      %1666 = vmatmul.mubr.bf16.gmra.mrb[0].mxu0 %v1553
      %v1667 = vpop.f32.mrb[0].mxu0
      %v1668 = vadd.f32 %v1512, %v1667
      %v1669 = vpop.f32.mrb[0].mxu0
      %v1670 = vpop.f32.mrb[0].mxu0
      %v1671 = vadd.f32 %v1512, %v1670
      %v1672 = vpop.f32.mrb[0].mxu0
      %1673 = vmatprep.mubr.bf16.mxu0 0
      %1674 = vmatmul.mubr.bf16.gmra.mrb[0].mxu0 %v1556
      %v1675 = vpop.f32.mrb[0].mxu0
      %v1676 = vadd.f32 %v1512, %v1675
      %v1677 = vpop.f32.mrb[0].mxu0
      %v1678 = vpop.f32.mrb[0].mxu0
      %v1679 = vadd.f32 %v1512, %v1678
      %v1680 = vpop.f32.mrb[0].mxu0
      %1681 = vmatprep.mubr.bf16.mxu0 0
      %1682 = vmatmul.mubr.bf16.gmra.mrb[0].mxu0 %v1559
      %v1683 = vpop.f32.mrb[0].mxu0
      %v1684 = vadd.f32 %v1512, %v1683
      %v1685 = vpop.f32.mrb[0].mxu0
      %v1686 = vpop.f32.mrb[0].mxu0
      %v1687 = vadd.f32 %v1512, %v1686
      %v1688 = vpop.f32.mrb[0].mxu0
      %1689 = vdwg.mxu0
      %v1690 = vmax.f32 %v1596, 0.0
      %v1691 = vmax.f32 %v1599, 0.0
      %v1692 = vmax.f32 %v1604, 0.0
      %v1693 = vmax.f32 %v1607, 0.0
      %v1694 = vmax.f32 %v1612, 0.0
      %v1695 = vmax.f32 %v1615, 0.0
      %v1696 = vmax.f32 %v1620, 0.0
      %v1697 = vmax.f32 %v1623, 0.0
      %v1698 = vmax.f32 %v1628, 0.0
      %v1699 = vmax.f32 %v1631, 0.0
      %v1700 = vmax.f32 %v1636, 0.0
      %v1701 = vmax.f32 %v1639, 0.0
      %v1702 = vmax.f32 %v1644, 0.0
      %v1703 = vmax.f32 %v1647, 0.0
      %v1704 = vmax.f32 %v1652, 0.0
      %v1705 = vmax.f32 %v1655, 0.0
      %v1706 = vmax.f32 %v1660, 0.0
      %v1707 = vmax.f32 %v1663, 0.0
      %v1708 = vmax.f32 %v1668, 0.0
      %v1709 = vmax.f32 %v1671, 0.0
      %v1710 = vmax.f32 %v1676, 0.0
      %v1711 = vmax.f32 %v1679, 0.0
      %v1712 = vmax.f32 %v1684, 0.0
      %v1713 = vmax.f32 %v1687, 0.0
      %v1714 = vmul.f32 %v1690, %v304
      %v1715 = vmul.f32 %v1691, %v305
      %v1716 = vmul.f32 %v1692, %v306
      %v1717 = vmul.f32 %v1693, %v307
      %v1718 = vmul.f32 %v1694, %v308
      %v1719 = vmul.f32 %v1695, %v309
      %v1720 = vmul.f32 %v1696, %v310
      %v1721 = vmul.f32 %v1697, %v311
      %v1722 = vmul.f32 %v1698, %v312
      %v1723 = vmul.f32 %v1699, %v313
      %v1724 = vmul.f32 %v1700, %v314
      %v1725 = vmul.f32 %v1701, %v315
      %v1726 = vmul.f32 %v1702, %v316
      %v1727 = vmul.f32 %v1703, %v317
      %v1728 = vmul.f32 %v1704, %v318
      %v1729 = vmul.f32 %v1705, %v319
      %v1730 = vmul.f32 %v1706, %v320
      %v1731 = vmul.f32 %v1707, %v321
      %v1732 = vmul.f32 %v1708, %v322
      %v1733 = vmul.f32 %v1709, %v323
      %v1734 = vmul.f32 %v1710, %v324
      %v1735 = vmul.f32 %v1711, %v325
      %v1736 = vmul.f32 %v1712, %v326
      %v1737 = vmul.f32 %v1713, %v327
      %v1738 = vpack.c.bf16 %v1715, %v1714
      %v1739 = vpack.c.bf16 %v1717, %v1716
      %v1740 = vpack.c.bf16 %v1719, %v1718
      %v1741 = vpack.c.bf16 %v1721, %v1720
      %v1742 = vpack.c.bf16 %v1723, %v1722
      %v1743 = vpack.c.bf16 %v1725, %v1724
      %v1744 = vpack.c.bf16 %v1727, %v1726
      %v1745 = vpack.c.bf16 %v1729, %v1728
      %v1746 = vpack.c.bf16 %v1731, %v1730
      %v1747 = vpack.c.bf16 %v1733, %v1732
      %v1748 = vpack.c.bf16 %v1735, %v1734
      %v1749 = vpack.c.bf16 %v1737, %v1736
      %1762 = vrot.lane.b32.xlu0 %v1738, 96
      %v1763 = vpop.permute.xlu0 %1762
      %1764 = vrot.lane.b32.xlu0 %v1739, 96
      %v1765 = vpop.permute.xlu0 %1764
      %1766 = vrot.lane.b32.xlu0 %v1740, 96
      %v1767 = vpop.permute.xlu0 %1766
      %1768 = vrot.lane.b32.xlu0 %v1741, 96
      %v1769 = vpop.permute.xlu0 %1768
      %1770 = vrot.lane.b32.xlu0 %v1742, 96
      %v1771 = vpop.permute.xlu0 %1770
      %1772 = vrot.lane.b32.xlu0 %v1743, 96
      %v1773 = vpop.permute.xlu0 %1772
      %1774 = vrot.lane.b32.xlu0 %v1744, 96
      %v1775 = vpop.permute.xlu0 %1774
      %1776 = vrot.lane.b32.xlu0 %v1745, 96
      %v1777 = vpop.permute.xlu0 %1776
      %1778 = vrot.lane.b32.xlu0 %v1746, 96
      %v1779 = vpop.permute.xlu0 %1778
      %1780 = vrot.lane.b32.xlu0 %v1747, 96
      %v1781 = vpop.permute.xlu0 %1780
      %1782 = vrot.lane.b32.xlu0 %v1748, 96
      %v1783 = vpop.permute.xlu0 %1782
      %1784 = vrot.lane.b32.xlu0 %v1749, 96
      %v1785 = vpop.permute.xlu0 %1784
      %vm1798 = vcmask 1048320
      %1799 = vst.msk [vmem:[#allocation2] sm:$0xff] %vm1798, %v1763
      %1800 = vst.msk [vmem:[#allocation2 + $0x8] sm:$0xff] %vm1798, %v1765
      %1801 = vst.msk [vmem:[#allocation2 + $0x10] sm:$0xff] %vm1798, %v1767
      %1802 = vst.msk [vmem:[#allocation2 + $0x18] sm:$0xff] %vm1798, %v1769
      %1803 = vst.msk [vmem:[#allocation2 + $0x20] sm:$0xff] %vm1798, %v1771
      %1804 = vst.msk [vmem:[#allocation2 + $0x28] sm:$0xff] %vm1798, %v1773
      %1805 = vst.msk [vmem:[#allocation2 + $0x30] sm:$0xff] %vm1798, %v1775
      %1806 = vst.msk [vmem:[#allocation2 + $0x38] sm:$0xff] %vm1798, %v1777
      %1807 = vst.msk [vmem:[#allocation2 + $0x40] sm:$0xff] %vm1798, %v1779
      %1808 = vst.msk [vmem:[#allocation2 + $0x48] sm:$0xff] %vm1798, %v1781
      %1809 = vst.msk [vmem:[#allocation2 + $0x50] sm:$0xff] %vm1798, %v1783
      %1810 = vst.msk [vmem:[#allocation2 + $0x58] sm:$0xff] %vm1798, %v1785
      %v1811 = vld [vmem:[#allocation2] sm:$0x80]
      %v1812 = vld [vmem:[#allocation2 + $0x8] sm:$0xff]
      %v1813 = vld [vmem:[#allocation2 + $0x10] sm:$0xff]
      %v1814 = vld [vmem:[#allocation2 + $0x18] sm:$0xff]
      %v1815 = vld [vmem:[#allocation2 + $0x20] sm:$0xff]
      %v1816 = vld [vmem:[#allocation2 + $0x28] sm:$0xff]
      %v1817 = vld [vmem:[#allocation2 + $0x30] sm:$0xff]
      %v1818 = vld [vmem:[#allocation2 + $0x38] sm:$0xff]
      %v1819 = vld [vmem:[#allocation2 + $0x40] sm:$0xff]
      %v1820 = vld [vmem:[%s4] sm:$0xf]
      %v1821 = vld [vmem:[%s4 + $0x4] sm:$0xf]
      %v1822 = vld [vmem:[%s4 + $0x8] sm:$0xf]
      %v1823 = vld [vmem:[%s4 + $0xc] sm:$0xf]
      %v1824 = vld [vmem:[%s4 + $0x10] sm:$0xf]
      %v1825 = vld [vmem:[%s4 + $0x14] sm:$0xf]
      %v1826 = vld [vmem:[%s4 + $0x18] sm:$0xf]
      %v1827 = vld [vmem:[%s4 + $0x1c] sm:$0xf]
      %v1828 = vld [vmem:[%s4 + $0x20] sm:$0xf]
      %v1829 = vld [vmem:[%s4 + $0x24] sm:$0xf]
      %v1830 = vld [vmem:[%s4 + $0x28] sm:$0xf]
      %v1831 = vld [vmem:[%s4 + $0x2c] sm:$0xf]
      %v1832 = vld [vmem:[%s4 + $0x30] sm:$0xf]
      %v1833 = vld [vmem:[%s4 + $0x34] sm:$0xf]
      %v1834 = vld [vmem:[%s4 + $0x38] sm:$0xf]
      %v1835 = vld [vmem:[%s4 + $0x3c] sm:$0xf]
      %v1836 = vld [vmem:[%s4 + $0x40] sm:$0xf]
      %v1837 = vld [vmem:[%s4 + $0x44] sm:$0xf]
      %v1838 = vld [vmem:[%s4 + $0x48] sm:$0xf]
      %v1839 = vld [vmem:[%s4 + $0x4c] sm:$0xf]
      %v1840 = vld [vmem:[%s4 + $0x50] sm:$0xf]
      %v1841 = vld [vmem:[%s4 + $0x54] sm:$0xf]
      %v1842 = vld [vmem:[%s4 + $0x58] sm:$0xf]
      %v1843 = vld [vmem:[%s4 + $0x5c] sm:$0xf]
      %v1844 = vld [vmem:[%s4 + $0x60] sm:$0xf]
      %v1845 = vld [vmem:[%s4 + $0x64] sm:$0xf]
      %v1846 = vld [vmem:[%s4 + $0x68] sm:$0xf]
      %v1847 = vld [vmem:[%s4 + $0x6c] sm:$0xf]
      %v1848 = vld [vmem:[%s4 + $0x70] sm:$0xf]
      %v1849 = vld [vmem:[%s4 + $0x74] sm:$0xf]
      %v1850 = vld [vmem:[%s4 + $0x78] sm:$0xf]
      %v1851 = vld [vmem:[%s4 + $0x7c] sm:$0xf]
      %v1868 = vunpack.c.l.b16 %v1836
      %v1869 = vunpack.c.l.b16 %v1837
      %v1870 = vunpack.c.l.b16 %v1838
      %v1871 = vunpack.c.l.b16 %v1839
      %v1872 = vunpack.c.l.b16 %v1840
      %v1873 = vunpack.c.l.b16 %v1841
      %v1874 = vunpack.c.l.b16 %v1842
      %v1875 = vunpack.c.l.b16 %v1843
      %v1876 = vunpack.c.l.b16 %v1844
      %v1877 = vunpack.c.l.b16 %v1845
      %v1878 = vunpack.c.l.b16 %v1846
      %v1879 = vunpack.c.l.b16 %v1847
      %v1880 = vunpack.c.l.b16 %v1848
      %v1881 = vunpack.c.l.b16 %v1849
      %v1882 = vunpack.c.l.b16 %v1850
      %v1883 = vunpack.c.l.b16 %v1851
      %v1884 = vpack.c.b16 %v1869, %v1868
      %v1885 = vpack.c.b16 %v1871, %v1870
      %v1886 = vpack.c.b16 %v1873, %v1872
      %v1887 = vpack.c.b16 %v1875, %v1874
      %v1888 = vpack.c.b16 %v1877, %v1876
      %v1889 = vpack.c.b16 %v1879, %v1878
      %v1890 = vpack.c.b16 %v1881, %v1880
      %v1891 = vpack.c.b16 %v1883, %v1882
      %1900 = vmatprep.subr.bf16.mxu0 0
      %1901 = vmatpush1.bf16.msra.mxu0 %v1884
      %1902 = vmatprep.subr.bf16.mxu0 0
      %1903 = vmatpush1.bf16.msra.mxu0 %v1885
      %1904 = vmatprep.subr.bf16.mxu0 0
      %1905 = vmatpush1.bf16.msra.mxu0 %v1886
      %1906 = vmatprep.subr.bf16.mxu0 0
      %1907 = vmatpush1.bf16.msra.mxu0 %v1887
      %1908 = vmatprep.subr.bf16.mxu0 0
      %1909 = vmatpush1.bf16.msra.mxu0 %v1888
      %1910 = vmatprep.subr.bf16.mxu0 0
      %1911 = vmatpush1.bf16.msra.mxu0 %v1889
      %1912 = vmatprep.subr.bf16.mxu0 0
      %1913 = vmatpush1.bf16.msra.mxu0 %v1890
      %1914 = vmatprep.subr.bf16.mxu0 0
      %1915 = vmatpush1.bf16.msra.mxu0 %v1891
      %1916 = vmatprep.subr.bf16.mxu0 0
      %1917 = vmatpush1.bf16.msra.mxu0 0
      %1918 = vmatprep.subr.bf16.mxu0 0
      %1919 = vmatpush1.bf16.msra.mxu0 0
      %1920 = vmatprep.subr.bf16.mxu0 0
      %1921 = vmatpush1.bf16.msra.mxu0 0
      %1922 = vmatprep.subr.bf16.mxu0 0
      %1923 = vmatpush1.bf16.msra.mxu0 0
      %1924 = vmatprep.subr.bf16.mxu0 0
      %1925 = vmatpush1.bf16.msra.mxu0 0
      %1926 = vmatprep.subr.bf16.mxu0 0
      %1927 = vmatpush1.bf16.msra.mxu0 0
      %1928 = vmatprep.subr.bf16.mxu0 0
      %1929 = vmatpush1.bf16.msra.mxu0 0
      %1930 = vmatprep.subr.bf16.mxu0 0
      %1931 = vmatpush1.bf16.msra.mxu0 0
      %1932 = vmatprep.mubr.bf16.mxu0 0
      %1933 = vmatmul.mubr.bf16.gmra.mrb[0].mxu0 %v1812
      %v1934 = vpop.f32.mrb[0].mxu0
      %v1935 = vadd.f32 0.0, %v1934
      %v1936 = vpop.f32.mrb[0].mxu0
      %v1937 = vpop.f32.mrb[0].mxu0
      %v1938 = vadd.f32 0.0, %v1937
      %v1939 = vpop.f32.mrb[0].mxu0
      %1940 = vmatprep.mubr.bf16.mxu0 0
      %1941 = vmatmul.mubr.bf16.gmra.mrb[0].mxu0 %v1813
      %v1942 = vpop.f32.mrb[0].mxu0
      %v1943 = vadd.f32 0.0, %v1942
      %v1944 = vpop.f32.mrb[0].mxu0
      %v1945 = vpop.f32.mrb[0].mxu0
      %v1946 = vadd.f32 0.0, %v1945
      %v1947 = vpop.f32.mrb[0].mxu0
      %1948 = vmatprep.mubr.bf16.mxu0 0
      %1949 = vmatmul.mubr.bf16.gmra.mrb[0].mxu0 %v1814
      %v1950 = vpop.f32.mrb[0].mxu0
      %v1951 = vadd.f32 0.0, %v1950
      %v1952 = vpop.f32.mrb[0].mxu0
      %v1953 = vpop.f32.mrb[0].mxu0
      %v1954 = vadd.f32 0.0, %v1953
      %v1955 = vpop.f32.mrb[0].mxu0
      %1956 = vmatprep.mubr.bf16.mxu0 0
      %1957 = vmatmul.mubr.bf16.gmra.mrb[0].mxu0 %v1815
      %v1958 = vpop.f32.mrb[0].mxu0
      %v1959 = vadd.f32 0.0, %v1958
      %v1960 = vpop.f32.mrb[0].mxu0
      %v1961 = vpop.f32.mrb[0].mxu0
      %v1962 = vadd.f32 0.0, %v1961
      %v1963 = vpop.f32.mrb[0].mxu0
      %1964 = vmatprep.mubr.bf16.mxu0 0
      %1965 = vmatmul.mubr.bf16.gmra.mrb[0].mxu0 %v1816
      %v1966 = vpop.f32.mrb[0].mxu0
      %v1967 = vadd.f32 0.0, %v1966
      %v1968 = vpop.f32.mrb[0].mxu0
      %v1969 = vpop.f32.mrb[0].mxu0
      %v1970 = vadd.f32 0.0, %v1969
      %v1971 = vpop.f32.mrb[0].mxu0
      %1972 = vmatprep.mubr.bf16.mxu0 0
      %1973 = vmatmul.mubr.bf16.gmra.mrb[0].mxu0 %v1817
      %v1974 = vpop.f32.mrb[0].mxu0
      %v1975 = vadd.f32 0.0, %v1974
      %v1976 = vpop.f32.mrb[0].mxu0
      %v1977 = vpop.f32.mrb[0].mxu0
      %v1978 = vadd.f32 0.0, %v1977
      %v1979 = vpop.f32.mrb[0].mxu0
      %1980 = vmatprep.mubr.bf16.mxu0 0
      %1981 = vmatmul.mubr.bf16.gmra.mrb[0].mxu0 %v1818
      %v1982 = vpop.f32.mrb[0].mxu0
      %v1983 = vadd.f32 0.0, %v1982
      %v1984 = vpop.f32.mrb[0].mxu0
      %v1985 = vpop.f32.mrb[0].mxu0
      %v1986 = vadd.f32 0.0, %v1985
      %v1987 = vpop.f32.mrb[0].mxu0
      %1988 = vmatprep.mubr.bf16.mxu0 0
      %1989 = vmatmul.mubr.bf16.gmra.mrb[0].mxu0 %v1819
      %v1990 = vpop.f32.mrb[0].mxu0
      %v1991 = vadd.f32 0.0, %v1990
      %v1992 = vpop.f32.mrb[0].mxu0
      %v1993 = vpop.f32.mrb[0].mxu0
      %v1994 = vadd.f32 0.0, %v1993
      %v1995 = vpop.f32.mrb[0].mxu0
      %1996 = vdwg.mxu0
      %vm1997 = vsmask.f32 256
      %v1999 = vshrl.u32 %v1811, 16
      %v2001 = vrot.slane %v1999, 7
      %v2003 = vshrl.u32 %v1812, 16
      %v2005 = vrot.slane %v2003, 7
      %v2006 = vshll.u32 %v1812, 16
      %v2008 = vor.u32 %v2005, %v2006
      %v2009 = vsel %vm1997, %v2001, %v2008
      %v2011 = vshrl.u32 %v1813, 16
      %v2013 = vrot.slane %v2011, 7
      %v2014 = vshll.u32 %v1813, 16
      %v2016 = vor.u32 %v2013, %v2014
      %v2017 = vsel %vm1997, %v2005, %v2016
      %v2019 = vshrl.u32 %v1814, 16
      %v2021 = vrot.slane %v2019, 7
      %v2022 = vshll.u32 %v1814, 16
      %v2024 = vor.u32 %v2021, %v2022
      %v2025 = vsel %vm1997, %v2013, %v2024
      %v2027 = vshrl.u32 %v1815, 16
      %v2029 = vrot.slane %v2027, 7
      %v2030 = vshll.u32 %v1815, 16
      %v2032 = vor.u32 %v2029, %v2030
      %v2033 = vsel %vm1997, %v2021, %v2032
      %v2035 = vshrl.u32 %v1816, 16
      %v2037 = vrot.slane %v2035, 7
      %v2038 = vshll.u32 %v1816, 16
      %v2040 = vor.u32 %v2037, %v2038
      %v2041 = vsel %vm1997, %v2029, %v2040
      %v2043 = vshrl.u32 %v1817, 16
      %v2045 = vrot.slane %v2043, 7
      %v2046 = vshll.u32 %v1817, 16
      %v2048 = vor.u32 %v2045, %v2046
      %v2049 = vsel %vm1997, %v2037, %v2048
      %v2051 = vshrl.u32 %v1818, 16
      %v2053 = vrot.slane %v2051, 7
      %v2054 = vshll.u32 %v1818, 16
      %v2056 = vor.u32 %v2053, %v2054
      %v2057 = vsel %vm1997, %v2045, %v2056
      %v2059 = vshrl.u32 %v1819, 16
      %v2061 = vrot.slane %v2059, 7
      %v2062 = vshll.u32 %v1819, 16
      %v2064 = vor.u32 %v2061, %v2062
      %v2065 = vsel %vm1997, %v2053, %v2064
      %v2090 = vunpack.c.l.b16 %v1820
      %v2091 = vunpack.c.l.b16 %v1821
      %v2092 = vunpack.c.l.b16 %v1822
      %v2093 = vunpack.c.l.b16 %v1823
      %v2094 = vunpack.c.l.b16 %v1824
      %v2095 = vunpack.c.l.b16 %v1825
      %v2096 = vunpack.c.l.b16 %v1826
      %v2097 = vunpack.c.l.b16 %v1827
      %v2098 = vunpack.c.l.b16 %v1828
      %v2099 = vunpack.c.l.b16 %v1829
      %v2100 = vunpack.c.l.b16 %v1830
      %v2101 = vunpack.c.l.b16 %v1831
      %v2102 = vunpack.c.l.b16 %v1832
      %v2103 = vunpack.c.l.b16 %v1833
      %v2104 = vunpack.c.l.b16 %v1834
      %v2105 = vunpack.c.l.b16 %v1835
      %v2106 = vpack.c.b16 %v2091, %v2090
      %v2107 = vpack.c.b16 %v2093, %v2092
      %v2108 = vpack.c.b16 %v2095, %v2094
      %v2109 = vpack.c.b16 %v2097, %v2096
      %v2110 = vpack.c.b16 %v2099, %v2098
      %v2111 = vpack.c.b16 %v2101, %v2100
      %v2112 = vpack.c.b16 %v2103, %v2102
      %v2113 = vpack.c.b16 %v2105, %v2104
      %2122 = vmatprep.subr.bf16.mxu0 0
      %2123 = vmatpush1.bf16.msra.mxu0 %v2106
      %2124 = vmatprep.subr.bf16.mxu0 0
      %2125 = vmatpush1.bf16.msra.mxu0 %v2107
      %2126 = vmatprep.subr.bf16.mxu0 0
      %2127 = vmatpush1.bf16.msra.mxu0 %v2108
      %2128 = vmatprep.subr.bf16.mxu0 0
      %2129 = vmatpush1.bf16.msra.mxu0 %v2109
      %2130 = vmatprep.subr.bf16.mxu0 0
      %2131 = vmatpush1.bf16.msra.mxu0 %v2110
      %2132 = vmatprep.subr.bf16.mxu0 0
      %2133 = vmatpush1.bf16.msra.mxu0 %v2111
      %2134 = vmatprep.subr.bf16.mxu0 0
      %2135 = vmatpush1.bf16.msra.mxu0 %v2112
      %2136 = vmatprep.subr.bf16.mxu0 0
      %2137 = vmatpush1.bf16.msra.mxu0 %v2113
      %2138 = vmatprep.subr.bf16.mxu0 0
      %2139 = vmatpush1.bf16.msra.mxu0 0
      %2140 = vmatprep.subr.bf16.mxu0 0
      %2141 = vmatpush1.bf16.msra.mxu0 0
      %2142 = vmatprep.subr.bf16.mxu0 0
      %2143 = vmatpush1.bf16.msra.mxu0 0
      %2144 = vmatprep.subr.bf16.mxu0 0
      %2145 = vmatpush1.bf16.msra.mxu0 0
      %2146 = vmatprep.subr.bf16.mxu0 0
      %2147 = vmatpush1.bf16.msra.mxu0 0
      %2148 = vmatprep.subr.bf16.mxu0 0
      %2149 = vmatpush1.bf16.msra.mxu0 0
      %2150 = vmatprep.subr.bf16.mxu0 0
      %2151 = vmatpush1.bf16.msra.mxu0 0
      %2152 = vmatprep.subr.bf16.mxu0 0
      %2153 = vmatpush1.bf16.msra.mxu0 0
      %2154 = vmatprep.mubr.bf16.mxu0 0
      %2155 = vmatmul.mubr.bf16.gmra.mrb[0].mxu0 %v2009
      %v2156 = vpop.f32.mrb[0].mxu0
      %v2157 = vadd.f32 %v1935, %v2156
      %v2158 = vpop.f32.mrb[0].mxu0
      %v2159 = vpop.f32.mrb[0].mxu0
      %v2160 = vadd.f32 %v1938, %v2159
      %v2161 = vpop.f32.mrb[0].mxu0
      %2162 = vmatprep.mubr.bf16.mxu0 0
      %2163 = vmatmul.mubr.bf16.gmra.mrb[0].mxu0 %v2017
      %v2164 = vpop.f32.mrb[0].mxu0
      %v2165 = vadd.f32 %v1943, %v2164
      %v2166 = vpop.f32.mrb[0].mxu0
      %v2167 = vpop.f32.mrb[0].mxu0
      %v2168 = vadd.f32 %v1946, %v2167
      %v2169 = vpop.f32.mrb[0].mxu0
      %2170 = vmatprep.mubr.bf16.mxu0 0
      %2171 = vmatmul.mubr.bf16.gmra.mrb[0].mxu0 %v2025
      %v2172 = vpop.f32.mrb[0].mxu0
      %v2173 = vadd.f32 %v1951, %v2172
      %v2174 = vpop.f32.mrb[0].mxu0
      %v2175 = vpop.f32.mrb[0].mxu0
      %v2176 = vadd.f32 %v1954, %v2175
      %v2177 = vpop.f32.mrb[0].mxu0
      %2178 = vmatprep.mubr.bf16.mxu0 0
      %2179 = vmatmul.mubr.bf16.gmra.mrb[0].mxu0 %v2033
      %v2180 = vpop.f32.mrb[0].mxu0
      %v2181 = vadd.f32 %v1959, %v2180
      %v2182 = vpop.f32.mrb[0].mxu0
      %v2183 = vpop.f32.mrb[0].mxu0
      %v2184 = vadd.f32 %v1962, %v2183
      %v2185 = vpop.f32.mrb[0].mxu0
      %2186 = vmatprep.mubr.bf16.mxu0 0
      %2187 = vmatmul.mubr.bf16.gmra.mrb[0].mxu0 %v2041
      %v2188 = vpop.f32.mrb[0].mxu0
      %v2189 = vadd.f32 %v1967, %v2188
      %v2190 = vpop.f32.mrb[0].mxu0
      %v2191 = vpop.f32.mrb[0].mxu0
      %v2192 = vadd.f32 %v1970, %v2191
      %v2193 = vpop.f32.mrb[0].mxu0
      %2194 = vmatprep.mubr.bf16.mxu0 0
      %2195 = vmatmul.mubr.bf16.gmra.mrb[0].mxu0 %v2049
      %v2196 = vpop.f32.mrb[0].mxu0
      %v2197 = vadd.f32 %v1975, %v2196
      %v2198 = vpop.f32.mrb[0].mxu0
      %v2199 = vpop.f32.mrb[0].mxu0
      %v2200 = vadd.f32 %v1978, %v2199
      %v2201 = vpop.f32.mrb[0].mxu0
      %2202 = vmatprep.mubr.bf16.mxu0 0
      %2203 = vmatmul.mubr.bf16.gmra.mrb[0].mxu0 %v2057
      %v2204 = vpop.f32.mrb[0].mxu0
      %v2205 = vadd.f32 %v1983, %v2204
      %v2206 = vpop.f32.mrb[0].mxu0
      %v2207 = vpop.f32.mrb[0].mxu0
      %v2208 = vadd.f32 %v1986, %v2207
      %v2209 = vpop.f32.mrb[0].mxu0
      %2210 = vmatprep.mubr.bf16.mxu0 0
      %2211 = vmatmul.mubr.bf16.gmra.mrb[0].mxu0 %v2065
      %v2212 = vpop.f32.mrb[0].mxu0
      %v2213 = vadd.f32 %v1991, %v2212
      %v2214 = vpop.f32.mrb[0].mxu0
      %v2215 = vpop.f32.mrb[0].mxu0
      %v2216 = vadd.f32 %v1994, %v2215
      %v2217 = vpop.f32.mrb[0].mxu0
      %2218 = vdwg.mxu0
      %v2219 = vld [vmem:[#allocation2 + $0x8] sm:$0xff]
      %v2220 = vld [vmem:[#allocation2 + $0x10] sm:$0xff]
      %v2221 = vld [vmem:[#allocation2 + $0x18] sm:$0xff]
      %v2222 = vld [vmem:[#allocation2 + $0x20] sm:$0xff]
      %v2223 = vld [vmem:[#allocation2 + $0x28] sm:$0xff]
      %v2224 = vld [vmem:[#allocation2 + $0x30] sm:$0xff]
      %v2225 = vld [vmem:[#allocation2 + $0x38] sm:$0xff]
      %v2226 = vld [vmem:[#allocation2 + $0x40] sm:$0xff]
      %v2227 = vld [vmem:[#allocation2 + $0x48] sm:$0x1]
      %v2228 = vld [vmem:[%s4 + $0x80] sm:$0xf]
      %v2229 = vld [vmem:[%s4 + $0x84] sm:$0xf]
      %v2230 = vld [vmem:[%s4 + $0x88] sm:$0xf]
      %v2231 = vld [vmem:[%s4 + $0x8c] sm:$0xf]
      %v2232 = vld [vmem:[%s4 + $0x90] sm:$0xf]
      %v2233 = vld [vmem:[%s4 + $0x94] sm:$0xf]
      %v2234 = vld [vmem:[%s4 + $0x98] sm:$0xf]
      %v2235 = vld [vmem:[%s4 + $0x9c] sm:$0xf]
      %v2236 = vld [vmem:[%s4 + $0xa0] sm:$0xf]
      %v2237 = vld [vmem:[%s4 + $0xa4] sm:$0xf]
      %v2238 = vld [vmem:[%s4 + $0xa8] sm:$0xf]
      %v2239 = vld [vmem:[%s4 + $0xac] sm:$0xf]
      %v2240 = vld [vmem:[%s4 + $0xb0] sm:$0xf]
      %v2241 = vld [vmem:[%s4 + $0xb4] sm:$0xf]
      %v2242 = vld [vmem:[%s4 + $0xb8] sm:$0xf]
      %v2243 = vld [vmem:[%s4 + $0xbc] sm:$0xf]
      %vm2244 = vsmask.f32 7424
      %v2246 = vshrl.u32 %v2219, 16
      %v2248 = vshll.u32 %v2219, 16
      %v2250 = vrot.slane %v2248, 1
      %v2251 = vor.u32 %v2246, %v2250
      %v2253 = vshll.u32 %v2220, 16
      %v2255 = vrot.slane %v2253, 1
      %v2256 = vsel %vm2244, %v2251, %v2255
      %v2257 = vshrl.u32 %v2220, 16
      %v2259 = vor.u32 %v2257, %v2255
      %v2261 = vshll.u32 %v2221, 16
      %v2263 = vrot.slane %v2261, 1
      %v2264 = vsel %vm2244, %v2259, %v2263
      %v2265 = vshrl.u32 %v2221, 16
      %v2267 = vor.u32 %v2265, %v2263
      %v2269 = vshll.u32 %v2222, 16
      %v2271 = vrot.slane %v2269, 1
      %v2272 = vsel %vm2244, %v2267, %v2271
      %v2273 = vshrl.u32 %v2222, 16
      %v2275 = vor.u32 %v2273, %v2271
      %v2277 = vshll.u32 %v2223, 16
      %v2279 = vrot.slane %v2277, 1
      %v2280 = vsel %vm2244, %v2275, %v2279
      %v2281 = vshrl.u32 %v2223, 16
      %v2283 = vor.u32 %v2281, %v2279
      %v2285 = vshll.u32 %v2224, 16
      %v2287 = vrot.slane %v2285, 1
      %v2288 = vsel %vm2244, %v2283, %v2287
      %v2289 = vshrl.u32 %v2224, 16
      %v2291 = vor.u32 %v2289, %v2287
      %v2293 = vshll.u32 %v2225, 16
      %v2295 = vrot.slane %v2293, 1
      %v2296 = vsel %vm2244, %v2291, %v2295
      %v2297 = vshrl.u32 %v2225, 16
      %v2299 = vor.u32 %v2297, %v2295
      %v2301 = vshll.u32 %v2226, 16
      %v2303 = vrot.slane %v2301, 1
      %v2304 = vsel %vm2244, %v2299, %v2303
      %v2305 = vshrl.u32 %v2226, 16
      %v2307 = vor.u32 %v2305, %v2303
      %v2309 = vshll.u32 %v2227, 16
      %v2311 = vrot.slane %v2309, 1
      %v2312 = vsel %vm2244, %v2307, %v2311
      %v2337 = vunpack.c.l.b16 %v2228
      %v2338 = vunpack.c.l.b16 %v2229
      %v2339 = vunpack.c.l.b16 %v2230
      %v2340 = vunpack.c.l.b16 %v2231
      %v2341 = vunpack.c.l.b16 %v2232
      %v2342 = vunpack.c.l.b16 %v2233
      %v2343 = vunpack.c.l.b16 %v2234
      %v2344 = vunpack.c.l.b16 %v2235
      %v2345 = vunpack.c.l.b16 %v2236
      %v2346 = vunpack.c.l.b16 %v2237
      %v2347 = vunpack.c.l.b16 %v2238
      %v2348 = vunpack.c.l.b16 %v2239
      %v2349 = vunpack.c.l.b16 %v2240
      %v2350 = vunpack.c.l.b16 %v2241
      %v2351 = vunpack.c.l.b16 %v2242
      %v2352 = vunpack.c.l.b16 %v2243
      %v2353 = vpack.c.b16 %v2338, %v2337
      %v2354 = vpack.c.b16 %v2340, %v2339
      %v2355 = vpack.c.b16 %v2342, %v2341
      %v2356 = vpack.c.b16 %v2344, %v2343
      %v2357 = vpack.c.b16 %v2346, %v2345
      %v2358 = vpack.c.b16 %v2348, %v2347
      %v2359 = vpack.c.b16 %v2350, %v2349
      %v2360 = vpack.c.b16 %v2352, %v2351
      %2369 = vmatprep.subr.bf16.mxu0 0
      %2370 = vmatpush1.bf16.msra.mxu0 %v2353
      %2371 = vmatprep.subr.bf16.mxu0 0
      %2372 = vmatpush1.bf16.msra.mxu0 %v2354
      %2373 = vmatprep.subr.bf16.mxu0 0
      %2374 = vmatpush1.bf16.msra.mxu0 %v2355
      %2375 = vmatprep.subr.bf16.mxu0 0
      %2376 = vmatpush1.bf16.msra.mxu0 %v2356
      %2377 = vmatprep.subr.bf16.mxu0 0
      %2378 = vmatpush1.bf16.msra.mxu0 %v2357
      %2379 = vmatprep.subr.bf16.mxu0 0
      %2380 = vmatpush1.bf16.msra.mxu0 %v2358
      %2381 = vmatprep.subr.bf16.mxu0 0
      %2382 = vmatpush1.bf16.msra.mxu0 %v2359
      %2383 = vmatprep.subr.bf16.mxu0 0
      %2384 = vmatpush1.bf16.msra.mxu0 %v2360
      %2385 = vmatprep.subr.bf16.mxu0 0
      %2386 = vmatpush1.bf16.msra.mxu0 0
      %2387 = vmatprep.subr.bf16.mxu0 0
      %2388 = vmatpush1.bf16.msra.mxu0 0
      %2389 = vmatprep.subr.bf16.mxu0 0
      %2390 = vmatpush1.bf16.msra.mxu0 0
      %2391 = vmatprep.subr.bf16.mxu0 0
      %2392 = vmatpush1.bf16.msra.mxu0 0
      %2393 = vmatprep.subr.bf16.mxu0 0
      %2394 = vmatpush1.bf16.msra.mxu0 0
      %2395 = vmatprep.subr.bf16.mxu0 0
      %2396 = vmatpush1.bf16.msra.mxu0 0
      %2397 = vmatprep.subr.bf16.mxu0 0
      %2398 = vmatpush1.bf16.msra.mxu0 0
      %2399 = vmatprep.subr.bf16.mxu0 0
      %2400 = vmatpush1.bf16.msra.mxu0 0
      %2401 = vmatprep.mubr.bf16.mxu0 0
      %2402 = vmatmul.mubr.bf16.gmra.mrb[0].mxu0 %v2256
      %v2403 = vpop.f32.mrb[0].mxu0
      %v2404 = vadd.f32 0.0, %v2403
      %v2405 = vpop.f32.mrb[0].mxu0
      %v2406 = vpop.f32.mrb[0].mxu0
      %v2407 = vadd.f32 0.0, %v2406
      %v2408 = vpop.f32.mrb[0].mxu0
      %2409 = vmatprep.mubr.bf16.mxu0 0
      %2410 = vmatmul.mubr.bf16.gmra.mrb[0].mxu0 %v2264
      %v2411 = vpop.f32.mrb[0].mxu0
      %v2412 = vadd.f32 0.0, %v2411
      %v2413 = vpop.f32.mrb[0].mxu0
      %v2414 = vpop.f32.mrb[0].mxu0
      %v2415 = vadd.f32 0.0, %v2414
      %v2416 = vpop.f32.mrb[0].mxu0
      %2417 = vmatprep.mubr.bf16.mxu0 0
      %2418 = vmatmul.mubr.bf16.gmra.mrb[0].mxu0 %v2272
      %v2419 = vpop.f32.mrb[0].mxu0
      %v2420 = vadd.f32 0.0, %v2419
      %v2421 = vpop.f32.mrb[0].mxu0
      %v2422 = vpop.f32.mrb[0].mxu0
      %v2423 = vadd.f32 0.0, %v2422
      %v2424 = vpop.f32.mrb[0].mxu0
      %2425 = vmatprep.mubr.bf16.mxu0 0
      %2426 = vmatmul.mubr.bf16.gmra.mrb[0].mxu0 %v2280
      %v2427 = vpop.f32.mrb[0].mxu0
      %v2428 = vadd.f32 0.0, %v2427
      %v2429 = vpop.f32.mrb[0].mxu0
      %v2430 = vpop.f32.mrb[0].mxu0
      %v2431 = vadd.f32 0.0, %v2430
      %v2432 = vpop.f32.mrb[0].mxu0
      %2433 = vmatprep.mubr.bf16.mxu0 0
      %2434 = vmatmul.mubr.bf16.gmra.mrb[0].mxu0 %v2288
      %v2435 = vpop.f32.mrb[0].mxu0
      %v2436 = vadd.f32 0.0, %v2435
      %v2437 = vpop.f32.mrb[0].mxu0
      %v2438 = vpop.f32.mrb[0].mxu0
      %v2439 = vadd.f32 0.0, %v2438
      %v2440 = vpop.f32.mrb[0].mxu0
      %2441 = vmatprep.mubr.bf16.mxu0 0
      %2442 = vmatmul.mubr.bf16.gmra.mrb[0].mxu0 %v2296
      %v2443 = vpop.f32.mrb[0].mxu0
      %v2444 = vadd.f32 0.0, %v2443
      %v2445 = vpop.f32.mrb[0].mxu0
      %v2446 = vpop.f32.mrb[0].mxu0
      %v2447 = vadd.f32 0.0, %v2446
      %v2448 = vpop.f32.mrb[0].mxu0
      %2449 = vmatprep.mubr.bf16.mxu0 0
      %2450 = vmatmul.mubr.bf16.gmra.mrb[0].mxu0 %v2304
      %v2451 = vpop.f32.mrb[0].mxu0
      %v2452 = vadd.f32 0.0, %v2451
      %v2453 = vpop.f32.mrb[0].mxu0
      %v2454 = vpop.f32.mrb[0].mxu0
      %v2455 = vadd.f32 0.0, %v2454
      %v2456 = vpop.f32.mrb[0].mxu0
      %2457 = vmatprep.mubr.bf16.mxu0 0
      %2458 = vmatmul.mubr.bf16.gmra.mrb[0].mxu0 %v2312
      %v2459 = vpop.f32.mrb[0].mxu0
      %v2460 = vadd.f32 0.0, %v2459
      %v2461 = vpop.f32.mrb[0].mxu0
      %v2462 = vpop.f32.mrb[0].mxu0
      %v2463 = vadd.f32 0.0, %v2462
      %v2464 = vpop.f32.mrb[0].mxu0
      %2465 = vdwg.mxu0
      %v2466 = vadd.f32 %v2157, %v2404
      %v2467 = vadd.f32 %v2160, %v2407
      %v2468 = vadd.f32 %v2165, %v2412
      %v2469 = vadd.f32 %v2168, %v2415
      %v2470 = vadd.f32 %v2173, %v2420
      %v2471 = vadd.f32 %v2176, %v2423
      %v2472 = vadd.f32 %v2181, %v2428
      %v2473 = vadd.f32 %v2184, %v2431
      %v2474 = vadd.f32 %v2189, %v2436
      %v2475 = vadd.f32 %v2192, %v2439
      %v2476 = vadd.f32 %v2197, %v2444
      %v2477 = vadd.f32 %v2200, %v2447
      %v2478 = vadd.f32 %v2205, %v2452
      %v2479 = vadd.f32 %v2208, %v2455
      %v2480 = vadd.f32 %v2213, %v2460
      %v2481 = vadd.f32 %v2216, %v2463
      %v2482 = vld [vmem:[#allocation2 + $0x8] sm:$0x80]
      %v2483 = vld [vmem:[#allocation2 + $0x48] sm:$0xff]
      %v2484 = vld [vmem:[%s4 + $0xc0] sm:$0xf]
      %v2485 = vld [vmem:[%s4 + $0xc4] sm:$0xf]
      %v2486 = vld [vmem:[%s4 + $0xc8] sm:$0xf]
      %v2487 = vld [vmem:[%s4 + $0xcc] sm:$0xf]
      %v2488 = vld [vmem:[%s4 + $0xd0] sm:$0xf]
      %v2489 = vld [vmem:[%s4 + $0xd4] sm:$0xf]
      %v2490 = vld [vmem:[%s4 + $0xd8] sm:$0xf]
      %v2491 = vld [vmem:[%s4 + $0xdc] sm:$0xf]
      %v2492 = vld [vmem:[%s4 + $0xe0] sm:$0xf]
      %v2493 = vld [vmem:[%s4 + $0xe4] sm:$0xf]
      %v2494 = vld [vmem:[%s4 + $0xe8] sm:$0xf]
      %v2495 = vld [vmem:[%s4 + $0xec] sm:$0xf]
      %v2496 = vld [vmem:[%s4 + $0xf0] sm:$0xf]
      %v2497 = vld [vmem:[%s4 + $0xf4] sm:$0xf]
      %v2498 = vld [vmem:[%s4 + $0xf8] sm:$0xf]
      %v2499 = vld [vmem:[%s4 + $0xfc] sm:$0xf]
      %v2501 = vshrl.u32 %v2482, 16
      %v2503 = vrot.slane %v2501, 7
      %v2504 = vrot.slane %v2257, 7
      %v2505 = vor.u32 %v2504, %v2253
      %v2506 = vsel %vm1997, %v2503, %v2505
      %v2507 = vrot.slane %v2265, 7
      %v2508 = vor.u32 %v2507, %v2261
      %v2509 = vsel %vm1997, %v2504, %v2508
      %v2510 = vrot.slane %v2273, 7
      %v2511 = vor.u32 %v2510, %v2269
      %v2512 = vsel %vm1997, %v2507, %v2511
      %v2513 = vrot.slane %v2281, 7
      %v2514 = vor.u32 %v2513, %v2277
      %v2515 = vsel %vm1997, %v2510, %v2514
      %v2516 = vrot.slane %v2289, 7
      %v2517 = vor.u32 %v2516, %v2285
      %v2518 = vsel %vm1997, %v2513, %v2517
      %v2519 = vrot.slane %v2297, 7
      %v2520 = vor.u32 %v2519, %v2293
      %v2521 = vsel %vm1997, %v2516, %v2520
      %v2522 = vrot.slane %v2305, 7
      %v2523 = vor.u32 %v2522, %v2301
      %v2524 = vsel %vm1997, %v2519, %v2523
      %v2526 = vshrl.u32 %v2483, 16
      %v2528 = vrot.slane %v2526, 7
      %v2529 = vshll.u32 %v2483, 16
      %v2531 = vor.u32 %v2528, %v2529
      %v2532 = vsel %vm1997, %v2522, %v2531
      %v2557 = vunpack.c.l.b16 %v2484
      %v2558 = vunpack.c.l.b16 %v2485
      %v2559 = vunpack.c.l.b16 %v2486
      %v2560 = vunpack.c.l.b16 %v2487
      %v2561 = vunpack.c.l.b16 %v2488
      %v2562 = vunpack.c.l.b16 %v2489
      %v2563 = vunpack.c.l.b16 %v2490
      %v2564 = vunpack.c.l.b16 %v2491
      %v2565 = vunpack.c.l.b16 %v2492
      %v2566 = vunpack.c.l.b16 %v2493
      %v2567 = vunpack.c.l.b16 %v2494
      %v2568 = vunpack.c.l.b16 %v2495
      %v2569 = vunpack.c.l.b16 %v2496
      %v2570 = vunpack.c.l.b16 %v2497
      %v2571 = vunpack.c.l.b16 %v2498
      %v2572 = vunpack.c.l.b16 %v2499
      %v2573 = vpack.c.b16 %v2558, %v2557
      %v2574 = vpack.c.b16 %v2560, %v2559
      %v2575 = vpack.c.b16 %v2562, %v2561
      %v2576 = vpack.c.b16 %v2564, %v2563
      %v2577 = vpack.c.b16 %v2566, %v2565
      %v2578 = vpack.c.b16 %v2568, %v2567
      %v2579 = vpack.c.b16 %v2570, %v2569
      %v2580 = vpack.c.b16 %v2572, %v2571
      %2589 = vmatprep.subr.bf16.mxu0 0
      %2590 = vmatpush1.bf16.msra.mxu0 %v2573
      %2591 = vmatprep.subr.bf16.mxu0 0
      %2592 = vmatpush1.bf16.msra.mxu0 %v2574
      %2593 = vmatprep.subr.bf16.mxu0 0
      %2594 = vmatpush1.bf16.msra.mxu0 %v2575
      %2595 = vmatprep.subr.bf16.mxu0 0
      %2596 = vmatpush1.bf16.msra.mxu0 %v2576
      %2597 = vmatprep.subr.bf16.mxu0 0
      %2598 = vmatpush1.bf16.msra.mxu0 %v2577
      %2599 = vmatprep.subr.bf16.mxu0 0
      %2600 = vmatpush1.bf16.msra.mxu0 %v2578
      %2601 = vmatprep.subr.bf16.mxu0 0
      %2602 = vmatpush1.bf16.msra.mxu0 %v2579
      %2603 = vmatprep.subr.bf16.mxu0 0
      %2604 = vmatpush1.bf16.msra.mxu0 %v2580
      %2605 = vmatprep.subr.bf16.mxu0 0
      %2606 = vmatpush1.bf16.msra.mxu0 0
      %2607 = vmatprep.subr.bf16.mxu0 0
      %2608 = vmatpush1.bf16.msra.mxu0 0
      %2609 = vmatprep.subr.bf16.mxu0 0
      %2610 = vmatpush1.bf16.msra.mxu0 0
      %2611 = vmatprep.subr.bf16.mxu0 0
      %2612 = vmatpush1.bf16.msra.mxu0 0
      %2613 = vmatprep.subr.bf16.mxu0 0
      %2614 = vmatpush1.bf16.msra.mxu0 0
      %2615 = vmatprep.subr.bf16.mxu0 0
      %2616 = vmatpush1.bf16.msra.mxu0 0
      %2617 = vmatprep.subr.bf16.mxu0 0
      %2618 = vmatpush1.bf16.msra.mxu0 0
      %2619 = vmatprep.subr.bf16.mxu0 0
      %2620 = vmatpush1.bf16.msra.mxu0 0
      %2621 = vmatprep.mubr.bf16.mxu0 0
      %2622 = vmatmul.mubr.bf16.gmra.mrb[0].mxu0 %v2506
      %v2623 = vpop.f32.mrb[0].mxu0
      %v2624 = vadd.f32 0.0, %v2623
      %v2625 = vpop.f32.mrb[0].mxu0
      %v2626 = vpop.f32.mrb[0].mxu0
      %v2627 = vadd.f32 0.0, %v2626
      %v2628 = vpop.f32.mrb[0].mxu0
      %2629 = vmatprep.mubr.bf16.mxu0 0
      %2630 = vmatmul.mubr.bf16.gmra.mrb[0].mxu0 %v2509
      %v2631 = vpop.f32.mrb[0].mxu0
      %v2632 = vadd.f32 0.0, %v2631
      %v2633 = vpop.f32.mrb[0].mxu0
      %v2634 = vpop.f32.mrb[0].mxu0
      %v2635 = vadd.f32 0.0, %v2634
      %v2636 = vpop.f32.mrb[0].mxu0
      %2637 = vmatprep.mubr.bf16.mxu0 0
      %2638 = vmatmul.mubr.bf16.gmra.mrb[0].mxu0 %v2512
      %v2639 = vpop.f32.mrb[0].mxu0
      %v2640 = vadd.f32 0.0, %v2639
      %v2641 = vpop.f32.mrb[0].mxu0
      %v2642 = vpop.f32.mrb[0].mxu0
      %v2643 = vadd.f32 0.0, %v2642
      %v2644 = vpop.f32.mrb[0].mxu0
      %2645 = vmatprep.mubr.bf16.mxu0 0
      %2646 = vmatmul.mubr.bf16.gmra.mrb[0].mxu0 %v2515
      %v2647 = vpop.f32.mrb[0].mxu0
      %v2648 = vadd.f32 0.0, %v2647
      %v2649 = vpop.f32.mrb[0].mxu0
      %v2650 = vpop.f32.mrb[0].mxu0
      %v2651 = vadd.f32 0.0, %v2650
      %v2652 = vpop.f32.mrb[0].mxu0
      %2653 = vmatprep.mubr.bf16.mxu0 0
      %2654 = vmatmul.mubr.bf16.gmra.mrb[0].mxu0 %v2518
      %v2655 = vpop.f32.mrb[0].mxu0
      %v2656 = vadd.f32 0.0, %v2655
      %v2657 = vpop.f32.mrb[0].mxu0
      %v2658 = vpop.f32.mrb[0].mxu0
      %v2659 = vadd.f32 0.0, %v2658
      %v2660 = vpop.f32.mrb[0].mxu0
      %2661 = vmatprep.mubr.bf16.mxu0 0
      %2662 = vmatmul.mubr.bf16.gmra.mrb[0].mxu0 %v2521
      %v2663 = vpop.f32.mrb[0].mxu0
      %v2664 = vadd.f32 0.0, %v2663
      %v2665 = vpop.f32.mrb[0].mxu0
      %v2666 = vpop.f32.mrb[0].mxu0
      %v2667 = vadd.f32 0.0, %v2666
      %v2668 = vpop.f32.mrb[0].mxu0
      %2669 = vmatprep.mubr.bf16.mxu0 0
      %2670 = vmatmul.mubr.bf16.gmra.mrb[0].mxu0 %v2524
      %v2671 = vpop.f32.mrb[0].mxu0
      %v2672 = vadd.f32 0.0, %v2671
      %v2673 = vpop.f32.mrb[0].mxu0
      %v2674 = vpop.f32.mrb[0].mxu0
      %v2675 = vadd.f32 0.0, %v2674
      %v2676 = vpop.f32.mrb[0].mxu0
      %2677 = vmatprep.mubr.bf16.mxu0 0
      %2678 = vmatmul.mubr.bf16.gmra.mrb[0].mxu0 %v2532
      %v2679 = vpop.f32.mrb[0].mxu0
      %v2680 = vadd.f32 0.0, %v2679
      %v2681 = vpop.f32.mrb[0].mxu0
      %v2682 = vpop.f32.mrb[0].mxu0
      %v2683 = vadd.f32 0.0, %v2682
      %v2684 = vpop.f32.mrb[0].mxu0
      %2685 = vdwg.mxu0
      %v2686 = vadd.f32 %v2466, %v2624
      %v2687 = vadd.f32 %v2467, %v2627
      %v2688 = vadd.f32 %v2468, %v2632
      %v2689 = vadd.f32 %v2469, %v2635
      %v2690 = vadd.f32 %v2470, %v2640
      %v2691 = vadd.f32 %v2471, %v2643
      %v2692 = vadd.f32 %v2472, %v2648
      %v2693 = vadd.f32 %v2473, %v2651
      %v2694 = vadd.f32 %v2474, %v2656
      %v2695 = vadd.f32 %v2475, %v2659
      %v2696 = vadd.f32 %v2476, %v2664
      %v2697 = vadd.f32 %v2477, %v2667
      %v2698 = vadd.f32 %v2478, %v2672
      %v2699 = vadd.f32 %v2479, %v2675
      %v2700 = vadd.f32 %v2480, %v2680
      %v2701 = vadd.f32 %v2481, %v2683
      %v2702 = vld [vmem:[%s4 + $0x100] sm:$0xf]
      %v2703 = vld [vmem:[%s4 + $0x104] sm:$0xf]
      %v2704 = vld [vmem:[%s4 + $0x108] sm:$0xf]
      %v2705 = vld [vmem:[%s4 + $0x10c] sm:$0xf]
      %v2706 = vld [vmem:[%s4 + $0x110] sm:$0xf]
      %v2707 = vld [vmem:[%s4 + $0x114] sm:$0xf]
      %v2708 = vld [vmem:[%s4 + $0x118] sm:$0xf]
      %v2709 = vld [vmem:[%s4 + $0x11c] sm:$0xf]
      %v2710 = vld [vmem:[%s4 + $0x120] sm:$0xf]
      %v2711 = vld [vmem:[%s4 + $0x124] sm:$0xf]
      %v2712 = vld [vmem:[%s4 + $0x128] sm:$0xf]
      %v2713 = vld [vmem:[%s4 + $0x12c] sm:$0xf]
      %v2714 = vld [vmem:[%s4 + $0x130] sm:$0xf]
      %v2715 = vld [vmem:[%s4 + $0x134] sm:$0xf]
      %v2716 = vld [vmem:[%s4 + $0x138] sm:$0xf]
      %v2717 = vld [vmem:[%s4 + $0x13c] sm:$0xf]
      %v2734 = vunpack.c.l.b16 %v2702
      %v2735 = vunpack.c.l.b16 %v2703
      %v2736 = vunpack.c.l.b16 %v2704
      %v2737 = vunpack.c.l.b16 %v2705
      %v2738 = vunpack.c.l.b16 %v2706
      %v2739 = vunpack.c.l.b16 %v2707
      %v2740 = vunpack.c.l.b16 %v2708
      %v2741 = vunpack.c.l.b16 %v2709
      %v2742 = vunpack.c.l.b16 %v2710
      %v2743 = vunpack.c.l.b16 %v2711
      %v2744 = vunpack.c.l.b16 %v2712
      %v2745 = vunpack.c.l.b16 %v2713
      %v2746 = vunpack.c.l.b16 %v2714
      %v2747 = vunpack.c.l.b16 %v2715
      %v2748 = vunpack.c.l.b16 %v2716
      %v2749 = vunpack.c.l.b16 %v2717
      %v2750 = vpack.c.b16 %v2735, %v2734
      %v2751 = vpack.c.b16 %v2737, %v2736
      %v2752 = vpack.c.b16 %v2739, %v2738
      %v2753 = vpack.c.b16 %v2741, %v2740
      %v2754 = vpack.c.b16 %v2743, %v2742
      %v2755 = vpack.c.b16 %v2745, %v2744
      %v2756 = vpack.c.b16 %v2747, %v2746
      %v2757 = vpack.c.b16 %v2749, %v2748
      %2766 = vmatprep.subr.bf16.mxu0 0
      %2767 = vmatpush1.bf16.msra.mxu0 %v2750
      %2768 = vmatprep.subr.bf16.mxu0 0
      %2769 = vmatpush1.bf16.msra.mxu0 %v2751
      %2770 = vmatprep.subr.bf16.mxu0 0
      %2771 = vmatpush1.bf16.msra.mxu0 %v2752
      %2772 = vmatprep.subr.bf16.mxu0 0
      %2773 = vmatpush1.bf16.msra.mxu0 %v2753
      %2774 = vmatprep.subr.bf16.mxu0 0
      %2775 = vmatpush1.bf16.msra.mxu0 %v2754
      %2776 = vmatprep.subr.bf16.mxu0 0
      %2777 = vmatpush1.bf16.msra.mxu0 %v2755
      %2778 = vmatprep.subr.bf16.mxu0 0
      %2779 = vmatpush1.bf16.msra.mxu0 %v2756
      %2780 = vmatprep.subr.bf16.mxu0 0
      %2781 = vmatpush1.bf16.msra.mxu0 %v2757
      %2782 = vmatprep.subr.bf16.mxu0 0
      %2783 = vmatpush1.bf16.msra.mxu0 0
      %2784 = vmatprep.subr.bf16.mxu0 0
      %2785 = vmatpush1.bf16.msra.mxu0 0
      %2786 = vmatprep.subr.bf16.mxu0 0
      %2787 = vmatpush1.bf16.msra.mxu0 0
      %2788 = vmatprep.subr.bf16.mxu0 0
      %2789 = vmatpush1.bf16.msra.mxu0 0
      %2790 = vmatprep.subr.bf16.mxu0 0
      %2791 = vmatpush1.bf16.msra.mxu0 0
      %2792 = vmatprep.subr.bf16.mxu0 0
      %2793 = vmatpush1.bf16.msra.mxu0 0
      %2794 = vmatprep.subr.bf16.mxu0 0
      %2795 = vmatpush1.bf16.msra.mxu0 0
      %2796 = vmatprep.subr.bf16.mxu0 0
      %2797 = vmatpush1.bf16.msra.mxu0 0
      %2798 = vmatprep.mubr.bf16.mxu0 0
      %2799 = vmatmul.mubr.bf16.gmra.mrb[0].mxu0 %v2220
      %v2800 = vpop.f32.mrb[0].mxu0
      %v2801 = vadd.f32 0.0, %v2800
      %v2802 = vpop.f32.mrb[0].mxu0
      %v2803 = vpop.f32.mrb[0].mxu0
      %v2804 = vadd.f32 0.0, %v2803
      %v2805 = vpop.f32.mrb[0].mxu0
      %2806 = vmatprep.mubr.bf16.mxu0 0
      %2807 = vmatmul.mubr.bf16.gmra.mrb[0].mxu0 %v2221
      %v2808 = vpop.f32.mrb[0].mxu0
      %v2809 = vadd.f32 0.0, %v2808
      %v2810 = vpop.f32.mrb[0].mxu0
      %v2811 = vpop.f32.mrb[0].mxu0
      %v2812 = vadd.f32 0.0, %v2811
      %v2813 = vpop.f32.mrb[0].mxu0
      %2814 = vmatprep.mubr.bf16.mxu0 0
      %2815 = vmatmul.mubr.bf16.gmra.mrb[0].mxu0 %v2222
      %v2816 = vpop.f32.mrb[0].mxu0
      %v2817 = vadd.f32 0.0, %v2816
      %v2818 = vpop.f32.mrb[0].mxu0
      %v2819 = vpop.f32.mrb[0].mxu0
      %v2820 = vadd.f32 0.0, %v2819
      %v2821 = vpop.f32.mrb[0].mxu0
      %2822 = vmatprep.mubr.bf16.mxu0 0
      %2823 = vmatmul.mubr.bf16.gmra.mrb[0].mxu0 %v2223
      %v2824 = vpop.f32.mrb[0].mxu0
      %v2825 = vadd.f32 0.0, %v2824
      %v2826 = vpop.f32.mrb[0].mxu0
      %v2827 = vpop.f32.mrb[0].mxu0
      %v2828 = vadd.f32 0.0, %v2827
      %v2829 = vpop.f32.mrb[0].mxu0
      %2830 = vmatprep.mubr.bf16.mxu0 0
      %2831 = vmatmul.mubr.bf16.gmra.mrb[0].mxu0 %v2224
      %v2832 = vpop.f32.mrb[0].mxu0
      %v2833 = vadd.f32 0.0, %v2832
      %v2834 = vpop.f32.mrb[0].mxu0
      %v2835 = vpop.f32.mrb[0].mxu0
      %v2836 = vadd.f32 0.0, %v2835
      %v2837 = vpop.f32.mrb[0].mxu0
      %2838 = vmatprep.mubr.bf16.mxu0 0
      %2839 = vmatmul.mubr.bf16.gmra.mrb[0].mxu0 %v2225
      %v2840 = vpop.f32.mrb[0].mxu0
      %v2841 = vadd.f32 0.0, %v2840
      %v2842 = vpop.f32.mrb[0].mxu0
      %v2843 = vpop.f32.mrb[0].mxu0
      %v2844 = vadd.f32 0.0, %v2843
      %v2845 = vpop.f32.mrb[0].mxu0
      %2846 = vmatprep.mubr.bf16.mxu0 0
      %2847 = vmatmul.mubr.bf16.gmra.mrb[0].mxu0 %v2226
      %v2848 = vpop.f32.mrb[0].mxu0
      %v2849 = vadd.f32 0.0, %v2848
      %v2850 = vpop.f32.mrb[0].mxu0
      %v2851 = vpop.f32.mrb[0].mxu0
      %v2852 = vadd.f32 0.0, %v2851
      %v2853 = vpop.f32.mrb[0].mxu0
      %2854 = vmatprep.mubr.bf16.mxu0 0
      %2855 = vmatmul.mubr.bf16.gmra.mrb[0].mxu0 %v2483
      %v2856 = vpop.f32.mrb[0].mxu0
      %v2857 = vadd.f32 0.0, %v2856
      %v2858 = vpop.f32.mrb[0].mxu0
      %v2859 = vpop.f32.mrb[0].mxu0
      %v2860 = vadd.f32 0.0, %v2859
      %v2861 = vpop.f32.mrb[0].mxu0
      %2862 = vdwg.mxu0
      %v2863 = vadd.f32 %v2686, %v2801
      %v2864 = vadd.f32 %v2687, %v2804
      %v2865 = vadd.f32 %v2688, %v2809
      %v2866 = vadd.f32 %v2689, %v2812
      %v2867 = vadd.f32 %v2690, %v2817
      %v2868 = vadd.f32 %v2691, %v2820
      %v2869 = vadd.f32 %v2692, %v2825
      %v2870 = vadd.f32 %v2693, %v2828
      %v2871 = vadd.f32 %v2694, %v2833
      %v2872 = vadd.f32 %v2695, %v2836
      %v2873 = vadd.f32 %v2696, %v2841
      %v2874 = vadd.f32 %v2697, %v2844
      %v2875 = vadd.f32 %v2698, %v2849
      %v2876 = vadd.f32 %v2699, %v2852
      %v2877 = vadd.f32 %v2700, %v2857
      %v2878 = vadd.f32 %v2701, %v2860
      %v2879 = vld [vmem:[#allocation2 + $0x10] sm:$0xff]
      %v2880 = vld [vmem:[#allocation2 + $0x18] sm:$0xff]
      %v2881 = vld [vmem:[#allocation2 + $0x20] sm:$0xff]
      %v2882 = vld [vmem:[#allocation2 + $0x28] sm:$0xff]
      %v2883 = vld [vmem:[#allocation2 + $0x30] sm:$0xff]
      %v2884 = vld [vmem:[#allocation2 + $0x38] sm:$0xff]
      %v2885 = vld [vmem:[#allocation2 + $0x40] sm:$0xff]
      %v2886 = vld [vmem:[#allocation2 + $0x48] sm:$0xff]
      %v2887 = vld [vmem:[#allocation2 + $0x50] sm:$0x1]
      %v2888 = vld [vmem:[%s4 + $0x140] sm:$0xf]
      %v2889 = vld [vmem:[%s4 + $0x144] sm:$0xf]
      %v2890 = vld [vmem:[%s4 + $0x148] sm:$0xf]
      %v2891 = vld [vmem:[%s4 + $0x14c] sm:$0xf]
      %v2892 = vld [vmem:[%s4 + $0x150] sm:$0xf]
      %v2893 = vld [vmem:[%s4 + $0x154] sm:$0xf]
      %v2894 = vld [vmem:[%s4 + $0x158] sm:$0xf]
      %v2895 = vld [vmem:[%s4 + $0x15c] sm:$0xf]
      %v2896 = vld [vmem:[%s4 + $0x160] sm:$0xf]
      %v2897 = vld [vmem:[%s4 + $0x164] sm:$0xf]
      %v2898 = vld [vmem:[%s4 + $0x168] sm:$0xf]
      %v2899 = vld [vmem:[%s4 + $0x16c] sm:$0xf]
      %v2900 = vld [vmem:[%s4 + $0x170] sm:$0xf]
      %v2901 = vld [vmem:[%s4 + $0x174] sm:$0xf]
      %v2902 = vld [vmem:[%s4 + $0x178] sm:$0xf]
      %v2903 = vld [vmem:[%s4 + $0x17c] sm:$0xf]
      %v2905 = vshrl.u32 %v2879, 16
      %v2907 = vshll.u32 %v2879, 16
      %v2909 = vrot.slane %v2907, 1
      %v2910 = vor.u32 %v2905, %v2909
      %v2912 = vshll.u32 %v2880, 16
      %v2914 = vrot.slane %v2912, 1
      %v2915 = vsel %vm2244, %v2910, %v2914
      %v2916 = vshrl.u32 %v2880, 16
      %v2918 = vor.u32 %v2916, %v2914
      %v2920 = vshll.u32 %v2881, 16
      %v2922 = vrot.slane %v2920, 1
      %v2923 = vsel %vm2244, %v2918, %v2922
      %v2924 = vshrl.u32 %v2881, 16
      %v2926 = vor.u32 %v2924, %v2922
      %v2928 = vshll.u32 %v2882, 16
      %v2930 = vrot.slane %v2928, 1
      %v2931 = vsel %vm2244, %v2926, %v2930
      %v2932 = vshrl.u32 %v2882, 16
      %v2934 = vor.u32 %v2932, %v2930
      %v2936 = vshll.u32 %v2883, 16
      %v2938 = vrot.slane %v2936, 1
      %v2939 = vsel %vm2244, %v2934, %v2938
      %v2940 = vshrl.u32 %v2883, 16
      %v2942 = vor.u32 %v2940, %v2938
      %v2944 = vshll.u32 %v2884, 16
      %v2946 = vrot.slane %v2944, 1
      %v2947 = vsel %vm2244, %v2942, %v2946
      %v2948 = vshrl.u32 %v2884, 16
      %v2950 = vor.u32 %v2948, %v2946
      %v2952 = vshll.u32 %v2885, 16
      %v2954 = vrot.slane %v2952, 1
      %v2955 = vsel %vm2244, %v2950, %v2954
      %v2956 = vshrl.u32 %v2885, 16
      %v2958 = vor.u32 %v2956, %v2954
      %v2960 = vshll.u32 %v2886, 16
      %v2962 = vrot.slane %v2960, 1
      %v2963 = vsel %vm2244, %v2958, %v2962
      %v2964 = vshrl.u32 %v2886, 16
      %v2966 = vor.u32 %v2964, %v2962
      %v2968 = vshll.u32 %v2887, 16
      %v2970 = vrot.slane %v2968, 1
      %v2971 = vsel %vm2244, %v2966, %v2970
      %v2996 = vunpack.c.l.b16 %v2888
      %v2997 = vunpack.c.l.b16 %v2889
      %v2998 = vunpack.c.l.b16 %v2890
      %v2999 = vunpack.c.l.b16 %v2891
      %v3000 = vunpack.c.l.b16 %v2892
      %v3001 = vunpack.c.l.b16 %v2893
      %v3002 = vunpack.c.l.b16 %v2894
      %v3003 = vunpack.c.l.b16 %v2895
      %v3004 = vunpack.c.l.b16 %v2896
      %v3005 = vunpack.c.l.b16 %v2897
      %v3006 = vunpack.c.l.b16 %v2898
      %v3007 = vunpack.c.l.b16 %v2899
      %v3008 = vunpack.c.l.b16 %v2900
      %v3009 = vunpack.c.l.b16 %v2901
      %v3010 = vunpack.c.l.b16 %v2902
      %v3011 = vunpack.c.l.b16 %v2903
      %v3012 = vpack.c.b16 %v2997, %v2996
      %v3013 = vpack.c.b16 %v2999, %v2998
      %v3014 = vpack.c.b16 %v3001, %v3000
      %v3015 = vpack.c.b16 %v3003, %v3002
      %v3016 = vpack.c.b16 %v3005, %v3004
      %v3017 = vpack.c.b16 %v3007, %v3006
      %v3018 = vpack.c.b16 %v3009, %v3008
      %v3019 = vpack.c.b16 %v3011, %v3010
      %3028 = vmatprep.subr.bf16.mxu0 0
      %3029 = vmatpush1.bf16.msra.mxu0 %v3012
      %3030 = vmatprep.subr.bf16.mxu0 0
      %3031 = vmatpush1.bf16.msra.mxu0 %v3013
      %3032 = vmatprep.subr.bf16.mxu0 0
      %3033 = vmatpush1.bf16.msra.mxu0 %v3014
      %3034 = vmatprep.subr.bf16.mxu0 0
      %3035 = vmatpush1.bf16.msra.mxu0 %v3015
      %3036 = vmatprep.subr.bf16.mxu0 0
      %3037 = vmatpush1.bf16.msra.mxu0 %v3016
      %3038 = vmatprep.subr.bf16.mxu0 0
      %3039 = vmatpush1.bf16.msra.mxu0 %v3017
      %3040 = vmatprep.subr.bf16.mxu0 0
      %3041 = vmatpush1.bf16.msra.mxu0 %v3018
      %3042 = vmatprep.subr.bf16.mxu0 0
      %3043 = vmatpush1.bf16.msra.mxu0 %v3019
      %3044 = vmatprep.subr.bf16.mxu0 0
      %3045 = vmatpush1.bf16.msra.mxu0 0
      %3046 = vmatprep.subr.bf16.mxu0 0
      %3047 = vmatpush1.bf16.msra.mxu0 0
      %3048 = vmatprep.subr.bf16.mxu0 0
      %3049 = vmatpush1.bf16.msra.mxu0 0
      %3050 = vmatprep.subr.bf16.mxu0 0
      %3051 = vmatpush1.bf16.msra.mxu0 0
      %3052 = vmatprep.subr.bf16.mxu0 0
      %3053 = vmatpush1.bf16.msra.mxu0 0
      %3054 = vmatprep.subr.bf16.mxu0 0
      %3055 = vmatpush1.bf16.msra.mxu0 0
      %3056 = vmatprep.subr.bf16.mxu0 0
      %3057 = vmatpush1.bf16.msra.mxu0 0
      %3058 = vmatprep.subr.bf16.mxu0 0
      %3059 = vmatpush1.bf16.msra.mxu0 0
      %3060 = vmatprep.mubr.bf16.mxu0 0
      %3061 = vmatmul.mubr.bf16.gmra.mrb[0].mxu0 %v2915
      %v3062 = vpop.f32.mrb[0].mxu0
      %v3063 = vadd.f32 0.0, %v3062
      %v3064 = vpop.f32.mrb[0].mxu0
      %v3065 = vpop.f32.mrb[0].mxu0
      %v3066 = vadd.f32 0.0, %v3065
      %v3067 = vpop.f32.mrb[0].mxu0
      %3068 = vmatprep.mubr.bf16.mxu0 0
      %3069 = vmatmul.mubr.bf16.gmra.mrb[0].mxu0 %v2923
      %v3070 = vpop.f32.mrb[0].mxu0
      %v3071 = vadd.f32 0.0, %v3070
      %v3072 = vpop.f32.mrb[0].mxu0
      %v3073 = vpop.f32.mrb[0].mxu0
      %v3074 = vadd.f32 0.0, %v3073
      %v3075 = vpop.f32.mrb[0].mxu0
      %3076 = vmatprep.mubr.bf16.mxu0 0
      %3077 = vmatmul.mubr.bf16.gmra.mrb[0].mxu0 %v2931
      %v3078 = vpop.f32.mrb[0].mxu0
      %v3079 = vadd.f32 0.0, %v3078
      %v3080 = vpop.f32.mrb[0].mxu0
      %v3081 = vpop.f32.mrb[0].mxu0
      %v3082 = vadd.f32 0.0, %v3081
      %v3083 = vpop.f32.mrb[0].mxu0
      %3084 = vmatprep.mubr.bf16.mxu0 0
      %3085 = vmatmul.mubr.bf16.gmra.mrb[0].mxu0 %v2939
      %v3086 = vpop.f32.mrb[0].mxu0
      %v3087 = vadd.f32 0.0, %v3086
      %v3088 = vpop.f32.mrb[0].mxu0
      %v3089 = vpop.f32.mrb[0].mxu0
      %v3090 = vadd.f32 0.0, %v3089
      %v3091 = vpop.f32.mrb[0].mxu0
      %3092 = vmatprep.mubr.bf16.mxu0 0
      %3093 = vmatmul.mubr.bf16.gmra.mrb[0].mxu0 %v2947
      %v3094 = vpop.f32.mrb[0].mxu0
      %v3095 = vadd.f32 0.0, %v3094
      %v3096 = vpop.f32.mrb[0].mxu0
      %v3097 = vpop.f32.mrb[0].mxu0
      %v3098 = vadd.f32 0.0, %v3097
      %v3099 = vpop.f32.mrb[0].mxu0
      %3100 = vmatprep.mubr.bf16.mxu0 0
      %3101 = vmatmul.mubr.bf16.gmra.mrb[0].mxu0 %v2955
      %v3102 = vpop.f32.mrb[0].mxu0
      %v3103 = vadd.f32 0.0, %v3102
      %v3104 = vpop.f32.mrb[0].mxu0
      %v3105 = vpop.f32.mrb[0].mxu0
      %v3106 = vadd.f32 0.0, %v3105
      %v3107 = vpop.f32.mrb[0].mxu0
      %3108 = vmatprep.mubr.bf16.mxu0 0
      %3109 = vmatmul.mubr.bf16.gmra.mrb[0].mxu0 %v2963
      %v3110 = vpop.f32.mrb[0].mxu0
      %v3111 = vadd.f32 0.0, %v3110
      %v3112 = vpop.f32.mrb[0].mxu0
      %v3113 = vpop.f32.mrb[0].mxu0
      %v3114 = vadd.f32 0.0, %v3113
      %v3115 = vpop.f32.mrb[0].mxu0
      %3116 = vmatprep.mubr.bf16.mxu0 0
      %3117 = vmatmul.mubr.bf16.gmra.mrb[0].mxu0 %v2971
      %v3118 = vpop.f32.mrb[0].mxu0
      %v3119 = vadd.f32 0.0, %v3118
      %v3120 = vpop.f32.mrb[0].mxu0
      %v3121 = vpop.f32.mrb[0].mxu0
      %v3122 = vadd.f32 0.0, %v3121
      %v3123 = vpop.f32.mrb[0].mxu0
      %3124 = vdwg.mxu0
      %v3125 = vadd.f32 %v2863, %v3063
      %v3126 = vadd.f32 %v2864, %v3066
      %v3127 = vadd.f32 %v2865, %v3071
      %v3128 = vadd.f32 %v2866, %v3074
      %v3129 = vadd.f32 %v2867, %v3079
      %v3130 = vadd.f32 %v2868, %v3082
      %v3131 = vadd.f32 %v2869, %v3087
      %v3132 = vadd.f32 %v2870, %v3090
      %v3133 = vadd.f32 %v2871, %v3095
      %v3134 = vadd.f32 %v2872, %v3098
      %v3135 = vadd.f32 %v2873, %v3103
      %v3136 = vadd.f32 %v2874, %v3106
      %v3137 = vadd.f32 %v2875, %v3111
      %v3138 = vadd.f32 %v2876, %v3114
      %v3139 = vadd.f32 %v2877, %v3119
      %v3140 = vadd.f32 %v2878, %v3122
      %v3141 = vld [vmem:[#allocation2 + $0x10] sm:$0x80]
      %v3142 = vld [vmem:[#allocation2 + $0x50] sm:$0xff]
      %v3143 = vld [vmem:[%s4 + $0x180] sm:$0xf]
      %v3144 = vld [vmem:[%s4 + $0x184] sm:$0xf]
      %v3145 = vld [vmem:[%s4 + $0x188] sm:$0xf]
      %v3146 = vld [vmem:[%s4 + $0x18c] sm:$0xf]
      %v3147 = vld [vmem:[%s4 + $0x190] sm:$0xf]
      %v3148 = vld [vmem:[%s4 + $0x194] sm:$0xf]
      %v3149 = vld [vmem:[%s4 + $0x198] sm:$0xf]
      %v3150 = vld [vmem:[%s4 + $0x19c] sm:$0xf]
      %v3151 = vld [vmem:[%s4 + $0x1a0] sm:$0xf]
      %v3152 = vld [vmem:[%s4 + $0x1a4] sm:$0xf]
      %v3153 = vld [vmem:[%s4 + $0x1a8] sm:$0xf]
      %v3154 = vld [vmem:[%s4 + $0x1ac] sm:$0xf]
      %v3155 = vld [vmem:[%s4 + $0x1b0] sm:$0xf]
      %v3156 = vld [vmem:[%s4 + $0x1b4] sm:$0xf]
      %v3157 = vld [vmem:[%s4 + $0x1b8] sm:$0xf]
      %v3158 = vld [vmem:[%s4 + $0x1bc] sm:$0xf]
      %v3160 = vshrl.u32 %v3141, 16
      %v3162 = vrot.slane %v3160, 7
      %v3163 = vrot.slane %v2916, 7
      %v3164 = vor.u32 %v3163, %v2912
      %v3165 = vsel %vm1997, %v3162, %v3164
      %v3166 = vrot.slane %v2924, 7
      %v3167 = vor.u32 %v3166, %v2920
      %v3168 = vsel %vm1997, %v3163, %v3167
      %v3169 = vrot.slane %v2932, 7
      %v3170 = vor.u32 %v3169, %v2928
      %v3171 = vsel %vm1997, %v3166, %v3170
      %v3172 = vrot.slane %v2940, 7
      %v3173 = vor.u32 %v3172, %v2936
      %v3174 = vsel %vm1997, %v3169, %v3173
      %v3175 = vrot.slane %v2948, 7
      %v3176 = vor.u32 %v3175, %v2944
      %v3177 = vsel %vm1997, %v3172, %v3176
      %v3178 = vrot.slane %v2956, 7
      %v3179 = vor.u32 %v3178, %v2952
      %v3180 = vsel %vm1997, %v3175, %v3179
      %v3181 = vrot.slane %v2964, 7
      %v3182 = vor.u32 %v3181, %v2960
      %v3183 = vsel %vm1997, %v3178, %v3182
      %v3185 = vshrl.u32 %v3142, 16
      %v3187 = vrot.slane %v3185, 7
      %v3188 = vshll.u32 %v3142, 16
      %v3190 = vor.u32 %v3187, %v3188
      %v3191 = vsel %vm1997, %v3181, %v3190
      %v3216 = vunpack.c.l.b16 %v3143
      %v3217 = vunpack.c.l.b16 %v3144
      %v3218 = vunpack.c.l.b16 %v3145
      %v3219 = vunpack.c.l.b16 %v3146
      %v3220 = vunpack.c.l.b16 %v3147
      %v3221 = vunpack.c.l.b16 %v3148
      %v3222 = vunpack.c.l.b16 %v3149
      %v3223 = vunpack.c.l.b16 %v3150
      %v3224 = vunpack.c.l.b16 %v3151
      %v3225 = vunpack.c.l.b16 %v3152
      %v3226 = vunpack.c.l.b16 %v3153
      %v3227 = vunpack.c.l.b16 %v3154
      %v3228 = vunpack.c.l.b16 %v3155
      %v3229 = vunpack.c.l.b16 %v3156
      %v3230 = vunpack.c.l.b16 %v3157
      %v3231 = vunpack.c.l.b16 %v3158
      %v3232 = vpack.c.b16 %v3217, %v3216
      %v3233 = vpack.c.b16 %v3219, %v3218
      %v3234 = vpack.c.b16 %v3221, %v3220
      %v3235 = vpack.c.b16 %v3223, %v3222
      %v3236 = vpack.c.b16 %v3225, %v3224
      %v3237 = vpack.c.b16 %v3227, %v3226
      %v3238 = vpack.c.b16 %v3229, %v3228
      %v3239 = vpack.c.b16 %v3231, %v3230
      %3248 = vmatprep.subr.bf16.mxu0 0
      %3249 = vmatpush1.bf16.msra.mxu0 %v3232
      %3250 = vmatprep.subr.bf16.mxu0 0
      %3251 = vmatpush1.bf16.msra.mxu0 %v3233
      %3252 = vmatprep.subr.bf16.mxu0 0
      %3253 = vmatpush1.bf16.msra.mxu0 %v3234
      %3254 = vmatprep.subr.bf16.mxu0 0
      %3255 = vmatpush1.bf16.msra.mxu0 %v3235
      %3256 = vmatprep.subr.bf16.mxu0 0
      %3257 = vmatpush1.bf16.msra.mxu0 %v3236
      %3258 = vmatprep.subr.bf16.mxu0 0
      %3259 = vmatpush1.bf16.msra.mxu0 %v3237
      %3260 = vmatprep.subr.bf16.mxu0 0
      %3261 = vmatpush1.bf16.msra.mxu0 %v3238
      %3262 = vmatprep.subr.bf16.mxu0 0
      %3263 = vmatpush1.bf16.msra.mxu0 %v3239
      %3264 = vmatprep.subr.bf16.mxu0 0
      %3265 = vmatpush1.bf16.msra.mxu0 0
      %3266 = vmatprep.subr.bf16.mxu0 0
      %3267 = vmatpush1.bf16.msra.mxu0 0
      %3268 = vmatprep.subr.bf16.mxu0 0
      %3269 = vmatpush1.bf16.msra.mxu0 0
      %3270 = vmatprep.subr.bf16.mxu0 0
      %3271 = vmatpush1.bf16.msra.mxu0 0
      %3272 = vmatprep.subr.bf16.mxu0 0
      %3273 = vmatpush1.bf16.msra.mxu0 0
      %3274 = vmatprep.subr.bf16.mxu0 0
      %3275 = vmatpush1.bf16.msra.mxu0 0
      %3276 = vmatprep.subr.bf16.mxu0 0
      %3277 = vmatpush1.bf16.msra.mxu0 0
      %3278 = vmatprep.subr.bf16.mxu0 0
      %3279 = vmatpush1.bf16.msra.mxu0 0
      %3280 = vmatprep.mubr.bf16.mxu0 0
      %3281 = vmatmul.mubr.bf16.gmra.mrb[0].mxu0 %v3165
      %v3282 = vpop.f32.mrb[0].mxu0
      %v3283 = vadd.f32 0.0, %v3282
      %v3284 = vpop.f32.mrb[0].mxu0
      %v3285 = vpop.f32.mrb[0].mxu0
      %v3286 = vadd.f32 0.0, %v3285
      %v3287 = vpop.f32.mrb[0].mxu0
      %3288 = vmatprep.mubr.bf16.mxu0 0
      %3289 = vmatmul.mubr.bf16.gmra.mrb[0].mxu0 %v3168
      %v3290 = vpop.f32.mrb[0].mxu0
      %v3291 = vadd.f32 0.0, %v3290
      %v3292 = vpop.f32.mrb[0].mxu0
      %v3293 = vpop.f32.mrb[0].mxu0
      %v3294 = vadd.f32 0.0, %v3293
      %v3295 = vpop.f32.mrb[0].mxu0
      %3296 = vmatprep.mubr.bf16.mxu0 0
      %3297 = vmatmul.mubr.bf16.gmra.mrb[0].mxu0 %v3171
      %v3298 = vpop.f32.mrb[0].mxu0
      %v3299 = vadd.f32 0.0, %v3298
      %v3300 = vpop.f32.mrb[0].mxu0
      %v3301 = vpop.f32.mrb[0].mxu0
      %v3302 = vadd.f32 0.0, %v3301
      %v3303 = vpop.f32.mrb[0].mxu0
      %3304 = vmatprep.mubr.bf16.mxu0 0
      %3305 = vmatmul.mubr.bf16.gmra.mrb[0].mxu0 %v3174
      %v3306 = vpop.f32.mrb[0].mxu0
      %v3307 = vadd.f32 0.0, %v3306
      %v3308 = vpop.f32.mrb[0].mxu0
      %v3309 = vpop.f32.mrb[0].mxu0
      %v3310 = vadd.f32 0.0, %v3309
      %v3311 = vpop.f32.mrb[0].mxu0
      %3312 = vmatprep.mubr.bf16.mxu0 0
      %3313 = vmatmul.mubr.bf16.gmra.mrb[0].mxu0 %v3177
      %v3314 = vpop.f32.mrb[0].mxu0
      %v3315 = vadd.f32 0.0, %v3314
      %v3316 = vpop.f32.mrb[0].mxu0
      %v3317 = vpop.f32.mrb[0].mxu0
      %v3318 = vadd.f32 0.0, %v3317
      %v3319 = vpop.f32.mrb[0].mxu0
      %3320 = vmatprep.mubr.bf16.mxu0 0
      %3321 = vmatmul.mubr.bf16.gmra.mrb[0].mxu0 %v3180
      %v3322 = vpop.f32.mrb[0].mxu0
      %v3323 = vadd.f32 0.0, %v3322
      %v3324 = vpop.f32.mrb[0].mxu0
      %v3325 = vpop.f32.mrb[0].mxu0
      %v3326 = vadd.f32 0.0, %v3325
      %v3327 = vpop.f32.mrb[0].mxu0
      %3328 = vmatprep.mubr.bf16.mxu0 0
      %3329 = vmatmul.mubr.bf16.gmra.mrb[0].mxu0 %v3183
      %v3330 = vpop.f32.mrb[0].mxu0
      %v3331 = vadd.f32 0.0, %v3330
      %v3332 = vpop.f32.mrb[0].mxu0
      %v3333 = vpop.f32.mrb[0].mxu0
      %v3334 = vadd.f32 0.0, %v3333
      %v3335 = vpop.f32.mrb[0].mxu0
      %3336 = vmatprep.mubr.bf16.mxu0 0
      %3337 = vmatmul.mubr.bf16.gmra.mrb[0].mxu0 %v3191
      %v3338 = vpop.f32.mrb[0].mxu0
      %v3339 = vadd.f32 0.0, %v3338
      %v3340 = vpop.f32.mrb[0].mxu0
      %v3341 = vpop.f32.mrb[0].mxu0
      %v3342 = vadd.f32 0.0, %v3341
      %v3343 = vpop.f32.mrb[0].mxu0
      %3344 = vdwg.mxu0
      %v3345 = vadd.f32 %v3125, %v3283
      %v3346 = vadd.f32 %v3126, %v3286
      %v3347 = vadd.f32 %v3127, %v3291
      %v3348 = vadd.f32 %v3128, %v3294
      %v3349 = vadd.f32 %v3129, %v3299
      %v3350 = vadd.f32 %v3130, %v3302
      %v3351 = vadd.f32 %v3131, %v3307
      %v3352 = vadd.f32 %v3132, %v3310
      %v3353 = vadd.f32 %v3133, %v3315
      %v3354 = vadd.f32 %v3134, %v3318
      %v3355 = vadd.f32 %v3135, %v3323
      %v3356 = vadd.f32 %v3136, %v3326
      %v3357 = vadd.f32 %v3137, %v3331
      %v3358 = vadd.f32 %v3138, %v3334
      %v3359 = vadd.f32 %v3139, %v3339
      %v3360 = vadd.f32 %v3140, %v3342
      %v3361 = vld [vmem:[%s4 + $0x1c0] sm:$0xf]
      %v3362 = vld [vmem:[%s4 + $0x1c4] sm:$0xf]
      %v3363 = vld [vmem:[%s4 + $0x1c8] sm:$0xf]
      %v3364 = vld [vmem:[%s4 + $0x1cc] sm:$0xf]
      %v3365 = vld [vmem:[%s4 + $0x1d0] sm:$0xf]
      %v3366 = vld [vmem:[%s4 + $0x1d4] sm:$0xf]
      %v3367 = vld [vmem:[%s4 + $0x1d8] sm:$0xf]
      %v3368 = vld [vmem:[%s4 + $0x1dc] sm:$0xf]
      %v3369 = vld [vmem:[%s4 + $0x1e0] sm:$0xf]
      %v3370 = vld [vmem:[%s4 + $0x1e4] sm:$0xf]
      %v3371 = vld [vmem:[%s4 + $0x1e8] sm:$0xf]
      %v3372 = vld [vmem:[%s4 + $0x1ec] sm:$0xf]
      %v3373 = vld [vmem:[%s4 + $0x1f0] sm:$0xf]
      %v3374 = vld [vmem:[%s4 + $0x1f4] sm:$0xf]
      %v3375 = vld [vmem:[%s4 + $0x1f8] sm:$0xf]
      %v3376 = vld [vmem:[%s4 + $0x1fc] sm:$0xf]
      %v3393 = vunpack.c.l.b16 %v3361
      %v3394 = vunpack.c.l.b16 %v3362
      %v3395 = vunpack.c.l.b16 %v3363
      %v3396 = vunpack.c.l.b16 %v3364
      %v3397 = vunpack.c.l.b16 %v3365
      %v3398 = vunpack.c.l.b16 %v3366
      %v3399 = vunpack.c.l.b16 %v3367
      %v3400 = vunpack.c.l.b16 %v3368
      %v3401 = vunpack.c.l.b16 %v3369
      %v3402 = vunpack.c.l.b16 %v3370
      %v3403 = vunpack.c.l.b16 %v3371
      %v3404 = vunpack.c.l.b16 %v3372
      %v3405 = vunpack.c.l.b16 %v3373
      %v3406 = vunpack.c.l.b16 %v3374
      %v3407 = vunpack.c.l.b16 %v3375
      %v3408 = vunpack.c.l.b16 %v3376
      %v3409 = vpack.c.b16 %v3394, %v3393
      %v3410 = vpack.c.b16 %v3396, %v3395
      %v3411 = vpack.c.b16 %v3398, %v3397
      %v3412 = vpack.c.b16 %v3400, %v3399
      %v3413 = vpack.c.b16 %v3402, %v3401
      %v3414 = vpack.c.b16 %v3404, %v3403
      %v3415 = vpack.c.b16 %v3406, %v3405
      %v3416 = vpack.c.b16 %v3408, %v3407
      %3425 = vmatprep.subr.bf16.mxu0 0
      %3426 = vmatpush1.bf16.msra.mxu0 %v3409
      %3427 = vmatprep.subr.bf16.mxu0 0
      %3428 = vmatpush1.bf16.msra.mxu0 %v3410
      %3429 = vmatprep.subr.bf16.mxu0 0
      %3430 = vmatpush1.bf16.msra.mxu0 %v3411
      %3431 = vmatprep.subr.bf16.mxu0 0
      %3432 = vmatpush1.bf16.msra.mxu0 %v3412
      %3433 = vmatprep.subr.bf16.mxu0 0
      %3434 = vmatpush1.bf16.msra.mxu0 %v3413
      %3435 = vmatprep.subr.bf16.mxu0 0
      %3436 = vmatpush1.bf16.msra.mxu0 %v3414
      %3437 = vmatprep.subr.bf16.mxu0 0
      %3438 = vmatpush1.bf16.msra.mxu0 %v3415
      %3439 = vmatprep.subr.bf16.mxu0 0
      %3440 = vmatpush1.bf16.msra.mxu0 %v3416
      %3441 = vmatprep.subr.bf16.mxu0 0
      %3442 = vmatpush1.bf16.msra.mxu0 0
      %3443 = vmatprep.subr.bf16.mxu0 0
      %3444 = vmatpush1.bf16.msra.mxu0 0
      %3445 = vmatprep.subr.bf16.mxu0 0
      %3446 = vmatpush1.bf16.msra.mxu0 0
      %3447 = vmatprep.subr.bf16.mxu0 0
      %3448 = vmatpush1.bf16.msra.mxu0 0
      %3449 = vmatprep.subr.bf16.mxu0 0
      %3450 = vmatpush1.bf16.msra.mxu0 0
      %3451 = vmatprep.subr.bf16.mxu0 0
      %3452 = vmatpush1.bf16.msra.mxu0 0
      %3453 = vmatprep.subr.bf16.mxu0 0
      %3454 = vmatpush1.bf16.msra.mxu0 0
      %3455 = vmatprep.subr.bf16.mxu0 0
      %3456 = vmatpush1.bf16.msra.mxu0 0
      %3457 = vmatprep.mubr.bf16.mxu0 0
      %3458 = vmatmul.mubr.bf16.gmra.mrb[0].mxu0 %v2880
      %v3459 = vpop.f32.mrb[0].mxu0
      %v3460 = vadd.f32 0.0, %v3459
      %v3461 = vpop.f32.mrb[0].mxu0
      %v3462 = vpop.f32.mrb[0].mxu0
      %v3463 = vadd.f32 0.0, %v3462
      %v3464 = vpop.f32.mrb[0].mxu0
      %3465 = vmatprep.mubr.bf16.mxu0 0
      %3466 = vmatmul.mubr.bf16.gmra.mrb[0].mxu0 %v2881
      %v3467 = vpop.f32.mrb[0].mxu0
      %v3468 = vadd.f32 0.0, %v3467
      %v3469 = vpop.f32.mrb[0].mxu0
      %v3470 = vpop.f32.mrb[0].mxu0
      %v3471 = vadd.f32 0.0, %v3470
      %v3472 = vpop.f32.mrb[0].mxu0
      %3473 = vmatprep.mubr.bf16.mxu0 0
      %3474 = vmatmul.mubr.bf16.gmra.mrb[0].mxu0 %v2882
      %v3475 = vpop.f32.mrb[0].mxu0
      %v3476 = vadd.f32 0.0, %v3475
      %v3477 = vpop.f32.mrb[0].mxu0
      %v3478 = vpop.f32.mrb[0].mxu0
      %v3479 = vadd.f32 0.0, %v3478
      %v3480 = vpop.f32.mrb[0].mxu0
      %3481 = vmatprep.mubr.bf16.mxu0 0
      %3482 = vmatmul.mubr.bf16.gmra.mrb[0].mxu0 %v2883
      %v3483 = vpop.f32.mrb[0].mxu0
      %v3484 = vadd.f32 0.0, %v3483
      %v3485 = vpop.f32.mrb[0].mxu0
      %v3486 = vpop.f32.mrb[0].mxu0
      %v3487 = vadd.f32 0.0, %v3486
      %v3488 = vpop.f32.mrb[0].mxu0
      %3489 = vmatprep.mubr.bf16.mxu0 0
      %3490 = vmatmul.mubr.bf16.gmra.mrb[0].mxu0 %v2884
      %v3491 = vpop.f32.mrb[0].mxu0
      %v3492 = vadd.f32 0.0, %v3491
      %v3493 = vpop.f32.mrb[0].mxu0
      %v3494 = vpop.f32.mrb[0].mxu0
      %v3495 = vadd.f32 0.0, %v3494
      %v3496 = vpop.f32.mrb[0].mxu0
      %3497 = vmatprep.mubr.bf16.mxu0 0
      %3498 = vmatmul.mubr.bf16.gmra.mrb[0].mxu0 %v2885
      %v3499 = vpop.f32.mrb[0].mxu0
      %v3500 = vadd.f32 0.0, %v3499
      %v3501 = vpop.f32.mrb[0].mxu0
      %v3502 = vpop.f32.mrb[0].mxu0
      %v3503 = vadd.f32 0.0, %v3502
      %v3504 = vpop.f32.mrb[0].mxu0
      %3505 = vmatprep.mubr.bf16.mxu0 0
      %3506 = vmatmul.mubr.bf16.gmra.mrb[0].mxu0 %v2886
      %v3507 = vpop.f32.mrb[0].mxu0
      %v3508 = vadd.f32 0.0, %v3507
      %v3509 = vpop.f32.mrb[0].mxu0
      %v3510 = vpop.f32.mrb[0].mxu0
      %v3511 = vadd.f32 0.0, %v3510
      %v3512 = vpop.f32.mrb[0].mxu0
      %3513 = vmatprep.mubr.bf16.mxu0 0
      %3514 = vmatmul.mubr.bf16.gmra.mrb[0].mxu0 %v3142
      %v3515 = vpop.f32.mrb[0].mxu0
      %v3516 = vadd.f32 0.0, %v3515
      %v3517 = vpop.f32.mrb[0].mxu0
      %v3518 = vpop.f32.mrb[0].mxu0
      %v3519 = vadd.f32 0.0, %v3518
      %v3520 = vpop.f32.mrb[0].mxu0
      %3521 = vdwg.mxu0
      %v3522 = vadd.f32 %v3345, %v3460
      %v3523 = vadd.f32 %v3346, %v3463
      %v3524 = vadd.f32 %v3347, %v3468
      %v3525 = vadd.f32 %v3348, %v3471
      %v3526 = vadd.f32 %v3349, %v3476
      %v3527 = vadd.f32 %v3350, %v3479
      %v3528 = vadd.f32 %v3351, %v3484
      %v3529 = vadd.f32 %v3352, %v3487
      %v3530 = vadd.f32 %v3353, %v3492
      %v3531 = vadd.f32 %v3354, %v3495
      %v3532 = vadd.f32 %v3355, %v3500
      %v3533 = vadd.f32 %v3356, %v3503
      %v3534 = vadd.f32 %v3357, %v3508
      %v3535 = vadd.f32 %v3358, %v3511
      %v3536 = vadd.f32 %v3359, %v3516
      %v3537 = vadd.f32 %v3360, %v3519
      %v3538 = vld [vmem:[#allocation2 + $0x18] sm:$0xff]
      %v3539 = vld [vmem:[#allocation2 + $0x20] sm:$0xff]
      %v3540 = vld [vmem:[#allocation2 + $0x28] sm:$0xff]
      %v3541 = vld [vmem:[#allocation2 + $0x30] sm:$0xff]
      %v3542 = vld [vmem:[#allocation2 + $0x38] sm:$0xff]
      %v3543 = vld [vmem:[#allocation2 + $0x40] sm:$0xff]
      %v3544 = vld [vmem:[#allocation2 + $0x48] sm:$0xff]
      %v3545 = vld [vmem:[#allocation2 + $0x50] sm:$0xff]
      %v3546 = vld [vmem:[#allocation2 + $0x58] sm:$0x1]
      %v3547 = vld [vmem:[%s4 + $0x200] sm:$0xf]
      %v3548 = vld [vmem:[%s4 + $0x204] sm:$0xf]
      %v3549 = vld [vmem:[%s4 + $0x208] sm:$0xf]
      %v3550 = vld [vmem:[%s4 + $0x20c] sm:$0xf]
      %v3551 = vld [vmem:[%s4 + $0x210] sm:$0xf]
      %v3552 = vld [vmem:[%s4 + $0x214] sm:$0xf]
      %v3553 = vld [vmem:[%s4 + $0x218] sm:$0xf]
      %v3554 = vld [vmem:[%s4 + $0x21c] sm:$0xf]
      %v3555 = vld [vmem:[%s4 + $0x220] sm:$0xf]
      %v3556 = vld [vmem:[%s4 + $0x224] sm:$0xf]
      %v3557 = vld [vmem:[%s4 + $0x228] sm:$0xf]
      %v3558 = vld [vmem:[%s4 + $0x22c] sm:$0xf]
      %v3559 = vld [vmem:[%s4 + $0x230] sm:$0xf]
      %v3560 = vld [vmem:[%s4 + $0x234] sm:$0xf]
      %v3561 = vld [vmem:[%s4 + $0x238] sm:$0xf]
      %v3562 = vld [vmem:[%s4 + $0x23c] sm:$0xf]
      %v3564 = vshrl.u32 %v3538, 16
      %v3566 = vshll.u32 %v3538, 16
      %v3568 = vrot.slane %v3566, 1
      %v3569 = vor.u32 %v3564, %v3568
      %v3571 = vshll.u32 %v3539, 16
      %v3573 = vrot.slane %v3571, 1
      %v3574 = vsel %vm2244, %v3569, %v3573
      %v3575 = vshrl.u32 %v3539, 16
      %v3577 = vor.u32 %v3575, %v3573
      %v3579 = vshll.u32 %v3540, 16
      %v3581 = vrot.slane %v3579, 1
      %v3582 = vsel %vm2244, %v3577, %v3581
      %v3583 = vshrl.u32 %v3540, 16
      %v3585 = vor.u32 %v3583, %v3581
      %v3587 = vshll.u32 %v3541, 16
      %v3589 = vrot.slane %v3587, 1
      %v3590 = vsel %vm2244, %v3585, %v3589
      %v3591 = vshrl.u32 %v3541, 16
      %v3593 = vor.u32 %v3591, %v3589
      %v3595 = vshll.u32 %v3542, 16
      %v3597 = vrot.slane %v3595, 1
      %v3598 = vsel %vm2244, %v3593, %v3597
      %v3599 = vshrl.u32 %v3542, 16
      %v3601 = vor.u32 %v3599, %v3597
      %v3603 = vshll.u32 %v3543, 16
      %v3605 = vrot.slane %v3603, 1
      %v3606 = vsel %vm2244, %v3601, %v3605
      %v3607 = vshrl.u32 %v3543, 16
      %v3609 = vor.u32 %v3607, %v3605
      %v3611 = vshll.u32 %v3544, 16
      %v3613 = vrot.slane %v3611, 1
      %v3614 = vsel %vm2244, %v3609, %v3613
      %v3615 = vshrl.u32 %v3544, 16
      %v3617 = vor.u32 %v3615, %v3613
      %v3619 = vshll.u32 %v3545, 16
      %v3621 = vrot.slane %v3619, 1
      %v3622 = vsel %vm2244, %v3617, %v3621
      %v3623 = vshrl.u32 %v3545, 16
      %v3625 = vor.u32 %v3623, %v3621
      %v3627 = vshll.u32 %v3546, 16
      %v3629 = vrot.slane %v3627, 1
      %v3630 = vsel %vm2244, %v3625, %v3629
      %v3655 = vunpack.c.l.b16 %v3547
      %v3656 = vunpack.c.l.b16 %v3548
      %v3657 = vunpack.c.l.b16 %v3549
      %v3658 = vunpack.c.l.b16 %v3550
      %v3659 = vunpack.c.l.b16 %v3551
      %v3660 = vunpack.c.l.b16 %v3552
      %v3661 = vunpack.c.l.b16 %v3553
      %v3662 = vunpack.c.l.b16 %v3554
      %v3663 = vunpack.c.l.b16 %v3555
      %v3664 = vunpack.c.l.b16 %v3556
      %v3665 = vunpack.c.l.b16 %v3557
      %v3666 = vunpack.c.l.b16 %v3558
      %v3667 = vunpack.c.l.b16 %v3559
      %v3668 = vunpack.c.l.b16 %v3560
      %v3669 = vunpack.c.l.b16 %v3561
      %v3670 = vunpack.c.l.b16 %v3562
      %v3671 = vpack.c.b16 %v3656, %v3655
      %v3672 = vpack.c.b16 %v3658, %v3657
      %v3673 = vpack.c.b16 %v3660, %v3659
      %v3674 = vpack.c.b16 %v3662, %v3661
      %v3675 = vpack.c.b16 %v3664, %v3663
      %v3676 = vpack.c.b16 %v3666, %v3665
      %v3677 = vpack.c.b16 %v3668, %v3667
      %v3678 = vpack.c.b16 %v3670, %v3669
      %3687 = vmatprep.subr.bf16.mxu0 0
      %3688 = vmatpush1.bf16.msra.mxu0 %v3671
      %3689 = vmatprep.subr.bf16.mxu0 0
      %3690 = vmatpush1.bf16.msra.mxu0 %v3672
      %3691 = vmatprep.subr.bf16.mxu0 0
      %3692 = vmatpush1.bf16.msra.mxu0 %v3673
      %3693 = vmatprep.subr.bf16.mxu0 0
      %3694 = vmatpush1.bf16.msra.mxu0 %v3674
      %3695 = vmatprep.subr.bf16.mxu0 0
      %3696 = vmatpush1.bf16.msra.mxu0 %v3675
      %3697 = vmatprep.subr.bf16.mxu0 0
      %3698 = vmatpush1.bf16.msra.mxu0 %v3676
      %3699 = vmatprep.subr.bf16.mxu0 0
      %3700 = vmatpush1.bf16.msra.mxu0 %v3677
      %3701 = vmatprep.subr.bf16.mxu0 0
      %3702 = vmatpush1.bf16.msra.mxu0 %v3678
      %3703 = vmatprep.subr.bf16.mxu0 0
      %3704 = vmatpush1.bf16.msra.mxu0 0
      %3705 = vmatprep.subr.bf16.mxu0 0
      %3706 = vmatpush1.bf16.msra.mxu0 0
      %3707 = vmatprep.subr.bf16.mxu0 0
      %3708 = vmatpush1.bf16.msra.mxu0 0
      %3709 = vmatprep.subr.bf16.mxu0 0
      %3710 = vmatpush1.bf16.msra.mxu0 0
      %3711 = vmatprep.subr.bf16.mxu0 0
      %3712 = vmatpush1.bf16.msra.mxu0 0
      %3713 = vmatprep.subr.bf16.mxu0 0
      %3714 = vmatpush1.bf16.msra.mxu0 0
      %3715 = vmatprep.subr.bf16.mxu0 0
      %3716 = vmatpush1.bf16.msra.mxu0 0
      %3717 = vmatprep.subr.bf16.mxu0 0
      %3718 = vmatpush1.bf16.msra.mxu0 0
      %3719 = vmatprep.mubr.bf16.mxu0 0
      %3720 = vmatmul.mubr.bf16.gmra.mrb[0].mxu0 %v3574
      %v3721 = vpop.f32.mrb[0].mxu0
      %v3722 = vadd.f32 0.0, %v3721
      %v3723 = vpop.f32.mrb[0].mxu0
      %v3724 = vpop.f32.mrb[0].mxu0
      %v3725 = vadd.f32 0.0, %v3724
      %v3726 = vpop.f32.mrb[0].mxu0
      %3727 = vmatprep.mubr.bf16.mxu0 0
      %3728 = vmatmul.mubr.bf16.gmra.mrb[0].mxu0 %v3582
      %v3729 = vpop.f32.mrb[0].mxu0
      %v3730 = vadd.f32 0.0, %v3729
      %v3731 = vpop.f32.mrb[0].mxu0
      %v3732 = vpop.f32.mrb[0].mxu0
      %v3733 = vadd.f32 0.0, %v3732
      %v3734 = vpop.f32.mrb[0].mxu0
      %3735 = vmatprep.mubr.bf16.mxu0 0
      %3736 = vmatmul.mubr.bf16.gmra.mrb[0].mxu0 %v3590
      %v3737 = vpop.f32.mrb[0].mxu0
      %v3738 = vadd.f32 0.0, %v3737
      %v3739 = vpop.f32.mrb[0].mxu0
      %v3740 = vpop.f32.mrb[0].mxu0
      %v3741 = vadd.f32 0.0, %v3740
      %v3742 = vpop.f32.mrb[0].mxu0
      %3743 = vmatprep.mubr.bf16.mxu0 0
      %3744 = vmatmul.mubr.bf16.gmra.mrb[0].mxu0 %v3598
      %v3745 = vpop.f32.mrb[0].mxu0
      %v3746 = vadd.f32 0.0, %v3745
      %v3747 = vpop.f32.mrb[0].mxu0
      %v3748 = vpop.f32.mrb[0].mxu0
      %v3749 = vadd.f32 0.0, %v3748
      %v3750 = vpop.f32.mrb[0].mxu0
      %3751 = vmatprep.mubr.bf16.mxu0 0
      %3752 = vmatmul.mubr.bf16.gmra.mrb[0].mxu0 %v3606
      %v3753 = vpop.f32.mrb[0].mxu0
      %v3754 = vadd.f32 0.0, %v3753
      %v3755 = vpop.f32.mrb[0].mxu0
      %v3756 = vpop.f32.mrb[0].mxu0
      %v3757 = vadd.f32 0.0, %v3756
      %v3758 = vpop.f32.mrb[0].mxu0
      %3759 = vmatprep.mubr.bf16.mxu0 0
      %3760 = vmatmul.mubr.bf16.gmra.mrb[0].mxu0 %v3614
      %v3761 = vpop.f32.mrb[0].mxu0
      %v3762 = vadd.f32 0.0, %v3761
      %v3763 = vpop.f32.mrb[0].mxu0
      %v3764 = vpop.f32.mrb[0].mxu0
      %v3765 = vadd.f32 0.0, %v3764
      %v3766 = vpop.f32.mrb[0].mxu0
      %3767 = vmatprep.mubr.bf16.mxu0 0
      %3768 = vmatmul.mubr.bf16.gmra.mrb[0].mxu0 %v3622
      %v3769 = vpop.f32.mrb[0].mxu0
      %v3770 = vadd.f32 0.0, %v3769
      %v3771 = vpop.f32.mrb[0].mxu0
      %v3772 = vpop.f32.mrb[0].mxu0
      %v3773 = vadd.f32 0.0, %v3772
      %v3774 = vpop.f32.mrb[0].mxu0
      %3775 = vmatprep.mubr.bf16.mxu0 0
      %3776 = vmatmul.mubr.bf16.gmra.mrb[0].mxu0 %v3630
      %v3777 = vpop.f32.mrb[0].mxu0
      %v3778 = vadd.f32 0.0, %v3777
      %v3779 = vpop.f32.mrb[0].mxu0
      %v3780 = vpop.f32.mrb[0].mxu0
      %v3781 = vadd.f32 0.0, %v3780
      %v3782 = vpop.f32.mrb[0].mxu0
      %3783 = vdwg.mxu0
      %v3784 = vadd.f32 %v3522, %v3722
      %v3785 = vadd.f32 %v3523, %v3725
      %v3786 = vadd.f32 %v3524, %v3730
      %v3787 = vadd.f32 %v3525, %v3733
      %v3788 = vadd.f32 %v3526, %v3738
      %v3789 = vadd.f32 %v3527, %v3741
      %v3790 = vadd.f32 %v3528, %v3746
      %v3791 = vadd.f32 %v3529, %v3749
      %v3792 = vadd.f32 %v3530, %v3754
      %v3793 = vadd.f32 %v3531, %v3757
      %v3794 = vadd.f32 %v3532, %v3762
      %v3795 = vadd.f32 %v3533, %v3765
      %v3796 = vadd.f32 %v3534, %v3770
      %v3797 = vadd.f32 %v3535, %v3773
      %v3798 = vadd.f32 %v3536, %v3778
      %v3799 = vadd.f32 %v3537, %v3781
      %v3800 = vld [vmem:[%s6 + $0x5] sm:$0x1]
      %v3801 = vlaneseq
      %v3802 = vshrl.u32 %v3801, 7
      %v3803 = vsub.s32 0, %v3802
      %v3804 = vrot.slane %v3800, %v3803
      %v3805 = vadd.f32 %v3784, %v3804
      %v3806 = vadd.f32 %v3785, %v3804
      %v3807 = vadd.f32 %v3786, %v3804
      %v3808 = vadd.f32 %v3787, %v3804
      %v3809 = vadd.f32 %v3788, %v3804
      %v3810 = vadd.f32 %v3789, %v3804
      %v3811 = vadd.f32 %v3790, %v3804
      %v3812 = vadd.f32 %v3791, %v3804
      %v3813 = vadd.f32 %v3792, %v3804
      %v3814 = vadd.f32 %v3793, %v3804
      %v3815 = vadd.f32 %v3794, %v3804
      %v3816 = vadd.f32 %v3795, %v3804
      %v3817 = vadd.f32 %v3796, %v3804
      %v3818 = vadd.f32 %v3797, %v3804
      %v3819 = vadd.f32 %v3798, %v3804
      %v3820 = vadd.f32 %v3799, %v3804
      %v3821 = vmax.f32 %v3805, 0.0
      %v3822 = vmax.f32 %v3806, 0.0
      %v3823 = vmax.f32 %v3807, 0.0
      %v3824 = vmax.f32 %v3808, 0.0
      %v3825 = vmax.f32 %v3809, 0.0
      %v3826 = vmax.f32 %v3810, 0.0
      %v3827 = vmax.f32 %v3811, 0.0
      %v3828 = vmax.f32 %v3812, 0.0
      %v3829 = vmax.f32 %v3813, 0.0
      %v3830 = vmax.f32 %v3814, 0.0
      %v3831 = vmax.f32 %v3815, 0.0
      %v3832 = vmax.f32 %v3816, 0.0
      %v3833 = vmax.f32 %v3817, 0.0
      %v3834 = vmax.f32 %v3818, 0.0
      %v3835 = vmax.f32 %v3819, 0.0
      %v3836 = vmax.f32 %v3820, 0.0
      %v3837 = vld [vmem:[%s5] sm:$0xf]
      %v3838 = vld [vmem:[%s5 + $0x4] sm:$0xf]
      %v3839 = vld [vmem:[%s5 + $0x8] sm:$0xf]
      %v3840 = vld [vmem:[%s5 + $0xc] sm:$0xf]
      %v3841 = vld [vmem:[%s5 + $0x10] sm:$0xf]
      %v3842 = vld [vmem:[%s5 + $0x14] sm:$0xf]
      %v3843 = vld [vmem:[%s5 + $0x18] sm:$0xf]
      %v3844 = vld [vmem:[%s5 + $0x1c] sm:$0xf]
      %v3845 = vld [vmem:[%s6 + $0x6] sm:$0x1]
      %v3846 = vpack.c.bf16 %v3822, %v3821
      %v3847 = vpack.c.bf16 %v3824, %v3823
      %v3848 = vpack.c.bf16 %v3826, %v3825
      %v3849 = vpack.c.bf16 %v3828, %v3827
      %v3850 = vpack.c.bf16 %v3830, %v3829
      %v3851 = vpack.c.bf16 %v3832, %v3831
      %v3852 = vpack.c.bf16 %v3834, %v3833
      %v3853 = vpack.c.bf16 %v3836, %v3835
      %v3854 = vlaneseq
      %v3855 = vshrl.u32 %v3854, 7
      %v3856 = vsub.s32 0, %v3855
      %v3857 = vrot.slane %v3845, %v3856
      %v3866 = vunpack.c.l.b16 %v3837
      %v3867 = vunpack.c.l.b16 %v3838
      %v3868 = vunpack.c.l.b16 %v3839
      %v3869 = vunpack.c.l.b16 %v3840
      %v3870 = vunpack.c.l.b16 %v3841
      %v3871 = vunpack.c.l.b16 %v3842
      %v3872 = vunpack.c.l.b16 %v3843
      %v3873 = vunpack.c.l.b16 %v3844
      %v3874 = vpack.c.b16 %v3867, %v3866
      %v3875 = vpack.c.b16 %v3869, %v3868
      %v3876 = vpack.c.b16 %v3871, %v3870
      %v3877 = vpack.c.b16 %v3873, %v3872
      %v3883 = vsel %vm377, %v3846, 0
      %v3886 = vsel %vm377, %v3847, 0
      %v3889 = vsel %vm377, %v3848, 0
      %v3892 = vsel %vm377, %v3849, 0
      %v3895 = vsel %vm377, %v3850, 0
      %v3898 = vsel %vm377, %v3851, 0
      %v3901 = vsel %vm377, %v3852, 0
      %v3904 = vsel %vm377, %v3853, 0
      %3906 = vmatprep.subr.bf16.mxu0 0
      %3907 = vmatpush1.bf16.msra.mxu0 %v3874
      %3908 = vmatprep.subr.bf16.mxu0 0
      %3909 = vmatpush1.bf16.msra.mxu0 %v3875
      %3910 = vmatprep.subr.bf16.mxu0 0
      %3911 = vmatpush1.bf16.msra.mxu0 %v3876
      %3912 = vmatprep.subr.bf16.mxu0 0
      %3913 = vmatpush1.bf16.msra.mxu0 %v3877
      %3914 = vmatprep.subr.bf16.mxu0 0
      %3915 = vmatpush1.bf16.msra.mxu0 0
      %3916 = vmatprep.subr.bf16.mxu0 0
      %3917 = vmatpush1.bf16.msra.mxu0 0
      %3918 = vmatprep.subr.bf16.mxu0 0
      %3919 = vmatpush1.bf16.msra.mxu0 0
      %3920 = vmatprep.subr.bf16.mxu0 0
      %3921 = vmatpush1.bf16.msra.mxu0 0
      %3922 = vmatprep.subr.bf16.mxu0 0
      %3923 = vmatpush1.bf16.msra.mxu0 0
      %3924 = vmatprep.subr.bf16.mxu0 0
      %3925 = vmatpush1.bf16.msra.mxu0 0
      %3926 = vmatprep.subr.bf16.mxu0 0
      %3927 = vmatpush1.bf16.msra.mxu0 0
      %3928 = vmatprep.subr.bf16.mxu0 0
      %3929 = vmatpush1.bf16.msra.mxu0 0
      %3930 = vmatprep.subr.bf16.mxu0 0
      %3931 = vmatpush1.bf16.msra.mxu0 0
      %3932 = vmatprep.subr.bf16.mxu0 0
      %3933 = vmatpush1.bf16.msra.mxu0 0
      %3934 = vmatprep.subr.bf16.mxu0 0
      %3935 = vmatpush1.bf16.msra.mxu0 0
      %3936 = vmatprep.subr.bf16.mxu0 0
      %3937 = vmatpush1.bf16.msra.mxu0 0
      %3938 = vmatprep.mubr.bf16.mxu0 0
      %3939 = vmatmul.mubr.bf16.gmra.mrb[0].mxu0 %v3883
      %v3940 = vpop.f32.mrb[0].mxu0
      %v3941 = vadd.f32 %v3857, %v3940
      %v3942 = vpop.f32.mrb[0].mxu0
      %v3943 = vpop.f32.mrb[0].mxu0
      %v3944 = vadd.f32 %v3857, %v3943
      %v3945 = vpop.f32.mrb[0].mxu0
      %3946 = vmatprep.mubr.bf16.mxu0 0
      %3947 = vmatmul.mubr.bf16.gmra.mrb[0].mxu0 %v3886
      %v3948 = vpop.f32.mrb[0].mxu0
      %v3949 = vadd.f32 %v3857, %v3948
      %v3950 = vpop.f32.mrb[0].mxu0
      %v3951 = vpop.f32.mrb[0].mxu0
      %v3952 = vadd.f32 %v3857, %v3951
      %v3953 = vpop.f32.mrb[0].mxu0
      %3954 = vmatprep.mubr.bf16.mxu0 0
      %3955 = vmatmul.mubr.bf16.gmra.mrb[0].mxu0 %v3889
      %v3956 = vpop.f32.mrb[0].mxu0
      %v3957 = vadd.f32 %v3857, %v3956
      %v3958 = vpop.f32.mrb[0].mxu0
      %v3959 = vpop.f32.mrb[0].mxu0
      %v3960 = vadd.f32 %v3857, %v3959
      %v3961 = vpop.f32.mrb[0].mxu0
      %3962 = vmatprep.mubr.bf16.mxu0 0
      %3963 = vmatmul.mubr.bf16.gmra.mrb[0].mxu0 %v3892
      %v3964 = vpop.f32.mrb[0].mxu0
      %v3965 = vadd.f32 %v3857, %v3964
      %v3966 = vpop.f32.mrb[0].mxu0
      %v3967 = vpop.f32.mrb[0].mxu0
      %v3968 = vadd.f32 %v3857, %v3967
      %v3969 = vpop.f32.mrb[0].mxu0
      %3970 = vmatprep.mubr.bf16.mxu0 0
      %3971 = vmatmul.mubr.bf16.gmra.mrb[0].mxu0 %v3895
      %v3972 = vpop.f32.mrb[0].mxu0
      %v3973 = vadd.f32 %v3857, %v3972
      %v3974 = vpop.f32.mrb[0].mxu0
      %v3975 = vpop.f32.mrb[0].mxu0
      %v3976 = vadd.f32 %v3857, %v3975
      %v3977 = vpop.f32.mrb[0].mxu0
      %3978 = vmatprep.mubr.bf16.mxu0 0
      %3979 = vmatmul.mubr.bf16.gmra.mrb[0].mxu0 %v3898
      %v3980 = vpop.f32.mrb[0].mxu0
      %v3981 = vadd.f32 %v3857, %v3980
      %v3982 = vpop.f32.mrb[0].mxu0
      %v3983 = vpop.f32.mrb[0].mxu0
      %v3984 = vadd.f32 %v3857, %v3983
      %v3985 = vpop.f32.mrb[0].mxu0
      %3986 = vmatprep.mubr.bf16.mxu0 0
      %3987 = vmatmul.mubr.bf16.gmra.mrb[0].mxu0 %v3901
      %v3988 = vpop.f32.mrb[0].mxu0
      %v3989 = vadd.f32 %v3857, %v3988
      %v3990 = vpop.f32.mrb[0].mxu0
      %v3991 = vpop.f32.mrb[0].mxu0
      %v3992 = vadd.f32 %v3857, %v3991
      %v3993 = vpop.f32.mrb[0].mxu0
      %3994 = vmatprep.mubr.bf16.mxu0 0
      %3995 = vmatmul.mubr.bf16.gmra.mrb[0].mxu0 %v3904
      %v3996 = vpop.f32.mrb[0].mxu0
      %v3997 = vadd.f32 %v3857, %v3996
      %v3998 = vpop.f32.mrb[0].mxu0
      %v3999 = vpop.f32.mrb[0].mxu0
      %v4000 = vadd.f32 %v3857, %v3999
      %v4001 = vpop.f32.mrb[0].mxu0
      %4002 = vdwg.mxu0
      %v4003 = vmax.f32 %v3941, 0.0
      %v4004 = vmax.f32 %v3944, 0.0
      %v4005 = vmax.f32 %v3949, 0.0
      %v4006 = vmax.f32 %v3952, 0.0
      %v4007 = vmax.f32 %v3957, 0.0
      %v4008 = vmax.f32 %v3960, 0.0
      %v4009 = vmax.f32 %v3965, 0.0
      %v4010 = vmax.f32 %v3968, 0.0
      %v4011 = vmax.f32 %v3973, 0.0
      %v4012 = vmax.f32 %v3976, 0.0
      %v4013 = vmax.f32 %v3981, 0.0
      %v4014 = vmax.f32 %v3984, 0.0
      %v4015 = vmax.f32 %v3989, 0.0
      %v4016 = vmax.f32 %v3992, 0.0
      %v4017 = vmax.f32 %v3997, 0.0
      %v4018 = vmax.f32 %v4000, 0.0
      %v4019 = vld [vmem:[%s273 + $0x20] sm:$0xff]
      %v4020 = vld [vmem:[%s273 + $0x28] sm:$0xff]
      %v4021 = vld [vmem:[%s273 + $0x30] sm:$0xff]
      %v4022 = vld [vmem:[%s273 + $0x38] sm:$0xff]
      %v4023 = vld [vmem:[%s273 + $0x40] sm:$0xff]
      %v4024 = vld [vmem:[%s273 + $0x48] sm:$0xff]
      %v4025 = vld [vmem:[%s273 + $0x50] sm:$0xff]
      %v4026 = vld [vmem:[%s273 + $0x58] sm:$0xff]
      %v4027 = vld [vmem:[%s273 + $0x60] sm:$0xff]
      %v4028 = vld [vmem:[%s273 + $0x68] sm:$0xff]
      %v4029 = vld [vmem:[%s273 + $0x70] sm:$0xff]
      %v4030 = vld [vmem:[%s273 + $0x78] sm:$0xff]
      %v4031 = vld [vmem:[%s273 + $0x80] sm:$0xff]
      %v4032 = vld [vmem:[%s273 + $0x88] sm:$0xff]
      %v4033 = vld [vmem:[%s273 + $0x90] sm:$0xff]
      %v4034 = vld [vmem:[%s273 + $0x98] sm:$0xff]
      %v4035 = vadd.f32 %v4003, %v4019
      %v4036 = vadd.f32 %v4004, %v4020
      %v4037 = vadd.f32 %v4005, %v4021
      %v4038 = vadd.f32 %v4006, %v4022
      %v4039 = vadd.f32 %v4007, %v4023
      %v4040 = vadd.f32 %v4008, %v4024
      %v4041 = vadd.f32 %v4009, %v4025
      %v4042 = vadd.f32 %v4010, %v4026
      %v4043 = vadd.f32 %v4011, %v4027
      %v4044 = vadd.f32 %v4012, %v4028
      %v4045 = vadd.f32 %v4013, %v4029
      %v4046 = vadd.f32 %v4014, %v4030
      %v4047 = vadd.f32 %v4015, %v4031
      %v4048 = vadd.f32 %v4016, %v4032
      %v4049 = vadd.f32 %v4017, %v4033
      %v4050 = vadd.f32 %v4018, %v4034
      %v4051 = vmax.f32 %v4035, 0.0
      %v4052 = vmax.f32 %v4036, 0.0
      %v4053 = vmax.f32 %v4037, 0.0
      %v4054 = vmax.f32 %v4038, 0.0
      %v4055 = vmax.f32 %v4039, 0.0
      %v4056 = vmax.f32 %v4040, 0.0
      %v4057 = vmax.f32 %v4041, 0.0
      %v4058 = vmax.f32 %v4042, 0.0
      %v4059 = vmax.f32 %v4043, 0.0
      %v4060 = vmax.f32 %v4044, 0.0
      %v4061 = vmax.f32 %v4045, 0.0
      %v4062 = vmax.f32 %v4046, 0.0
      %v4063 = vmax.f32 %v4047, 0.0
      %v4064 = vmax.f32 %v4048, 0.0
      %v4065 = vmax.f32 %v4049, 0.0
      %v4066 = vmax.f32 %v4050, 0.0
      %4067 = vst.msk [vmem:[%s278] sm:$0xff] %vm377, %v4051
      %4068 = vst.msk [vmem:[%s278 + $0x8] sm:$0xff] %vm377, %v4052
      %4069 = vst.msk [vmem:[%s278 + $0x10] sm:$0xff] %vm377, %v4053
      %4070 = vst.msk [vmem:[%s278 + $0x18] sm:$0xff] %vm377, %v4054
      %4071 = vst.msk [vmem:[%s278 + $0x20] sm:$0xff] %vm377, %v4055
      %4072 = vst.msk [vmem:[%s278 + $0x28] sm:$0xff] %vm377, %v4056
      %4073 = vst.msk [vmem:[%s278 + $0x30] sm:$0xff] %vm377, %v4057
      %4074 = vst.msk [vmem:[%s278 + $0x38] sm:$0xff] %vm377, %v4058
      %4075 = vst.msk [vmem:[%s278 + $0x40] sm:$0xff] %vm377, %v4059
      %4076 = vst.msk [vmem:[%s278 + $0x48] sm:$0xff] %vm377, %v4060
      %4077 = vst.msk [vmem:[%s278 + $0x50] sm:$0xff] %vm377, %v4061
      %4078 = vst.msk [vmem:[%s278 + $0x58] sm:$0xff] %vm377, %v4062
      %4079 = vst.msk [vmem:[%s278 + $0x60] sm:$0xff] %vm377, %v4063
      %4080 = vst.msk [vmem:[%s278 + $0x68] sm:$0xff] %vm377, %v4064
      %4081 = vst.msk [vmem:[%s278 + $0x70] sm:$0xff] %vm377, %v4065
      %4082 = vst.msk [vmem:[%s278 + $0x78] sm:$0xff] %vm377, %v4066
      %p4083 = scmp.lt.s32.totalorder %s18, 1
      %s4084 = scalar_select %p4083, %s18, 1
      %s4085 = smul.addr %s4084, 16
      %s4086 = smul.addr %s4085, 8
      %s4087 = scalar_lea.vmem %s7, %s4086
      // Predicated region
      $region49: #{bottleneck_forward.1} parent=47 // pred_check
        %p4088 = pneg %p188
      $region50: #{bottleneck_forward.1} parent=47 // pred_check_branch
        %4090 = sbr.rel (%p4088) target = $region52
      $region51: #{bottleneck_forward.1} parent=47 // pred_region
        _
      $region52: #{bottleneck_forward.1} parent=47 // pred_fallthru
        _
    $region48: #{bottleneck_forward.1} parent=5 // pred_fallthru
      _
    %p4091 = scmp.le.s32.totalorder 2, %s13
    // Predicated region
    $region53: #{bottleneck_forward.1} parent=5 // pred_check
      %p4092 = pneg %p4091
    $region54: #{bottleneck_forward.1} parent=5 // pred_check_branch
      %4094 = sbr.rel (%p4092) target = $region56
    $region55: #{bottleneck_forward.1} parent=5 // pred_region
      %s4095 = ssub.s32 %s13, 2
      // Predicated region
      $region57: #{bottleneck_forward.1} parent=55 // pred_check
        %p4096 = pneg %p194
      $region58: #{bottleneck_forward.1} parent=55 // pred_check_branch
        %4098 = sbr.rel (%p4096) target = $region60
      $region59: #{bottleneck_forward.1} parent=55 // pred_region
        %p4099 = scmp.lt.s32.totalorder %s19, 1
        %s4100 = scalar_select %p4099, %s19, 1
        %s4101 = smul.addr %s4100, 16
        %s4102 = smul.addr %s4101, 8
        %s4103 = scalar_lea.vmem %s7, %s4102
      $region60: #{bottleneck_forward.1} parent=55 // pred_fallthru
        _
    $region56: #{bottleneck_forward.1} parent=5 // pred_fallthru
      _
  $region6: #{bottleneck_forward.1} parent=0 // loop_footer
    %s17 = sadd.s32 1, %s13
  $region7: #{bottleneck_forward.1} parent=0 // loop_footer_branch
    %12 = sbr.rel target = $region3
  $region8: #{bottleneck_forward.1} parent=0 // loop_exit
    _

</llo_original>
